<compile_context>
chip_gen: v5e
topology: v5e:2x2
jax: 0.10.0
libtpu: 0.0.40
codegen_flags: <defaults>
</compile_context>

<pallas_src>
import jax
import jax.numpy as jnp
from jax.experimental import pallas as pl
from jax.experimental.pallas import tpu as pltpu

EPS = 1e-5
LANE = 128
P_CHUNKS = 2                       # leading 'parallel' grid axis (v7x: 2 TensorCores)
VMEM_LIMIT = 48 * 1024 * 1024      # explicit scoped-VMEM limit (fits v7x's 64 MiB)


def _round_up(x, m):
    return (x + m - 1) // m * m


def _cdiv(a, b):
    return -(-a // b)


# --------------------------------------------------------------------------- #
# Kernel 1: conv3x3 (9 row-shifted MXU matmuls) + streamed masked BN statistics
# --------------------------------------------------------------------------- #
def _make_conv_kernel(tm, halo, wp):
    win_rows = tm + 2 * halo
    # sublane offset inside the halo'd window of tap (kh, kw), kh/kw in {0,1,2}
    offs = [halo + (kh - 1) * wp + (kw - 1) for kh in range(3) for kw in range(3)]

    def kernel(x_hbm, w_ref, mask_ref, y_ref, ssum_ref, ssq_ref, win_buf, sem):
        p = pl.program_id(0)
        i = pl.program_id(1)
        ni = pl.num_programs(1)
        t = p * ni + i                         # global row-tile index
        slot = jax.lax.rem(i, 2)

        def issue(tile, dst_slot):
            start = pl.multiple_of(tile * tm + (tm - halo), 8)
            pltpu.make_async_copy(x_hbm.at[pl.ds(start, win_rows), :],
                                  win_buf.at[dst_slot],
                                  sem.at[dst_slot]).start()

        @pl.when(i == 0)
        def _():
            issue(t, slot)                     # prime this chunk's first window
            ssum_ref[...] = jnp.zeros_like(ssum_ref)
            ssq_ref[...] = jnp.zeros_like(ssq_ref)

        @pl.when(i + 1 < ni)                   # prefetch next window (overlap DMA)
        def _():
            issue(t + 1, 1 - slot)

        start = pl.multiple_of(t * tm + (tm - halo), 8)
        pltpu.make_async_copy(x_hbm.at[pl.ds(start, win_rows), :],
                              win_buf.at[slot], sem.at[slot]).wait()

        xw = win_buf.at[slot]                  # (win_rows, Cin_p) bf16 view
        acc = jnp.dot(xw[offs[0]:offs[0] + tm, :], w_ref[0],
                      preferred_element_type=jnp.float32)
        for tap in range(1, 9):
            o = offs[tap]
            acc = acc + jnp.dot(xw[o:o + tm, :], w_ref[tap],
                                preferred_element_type=jnp.float32)

        y_ref[...] = acc                       # bias-less conv output, f32

        # masked partial BN statistics (where(), not *, so garbage halo rows
        # from never-written frame blocks can never poison the sums)
        valid = mask_ref[...] > 0.0            # (tm, 1) bool
        vals = jnp.where(valid, acc, 0.0)
        ssum_ref[...] += jnp.sum(vals, axis=0)[None, None, :]
        ssq_ref[...] += jnp.sum(vals * vals, axis=0)[None, None, :]

    return kernel


# --------------------------------------------------------------------------- #
# Kernel 2: per-channel affine (BN folded) + ReLU + border zeroing
# --------------------------------------------------------------------------- #
def _bn_relu_kernel(y_ref, mask_ref, scale_ref, shift_ref, o_ref):
    y = y_ref[...]                                         # (tm, Cp) f32
    z = jnp.maximum(y * scale_ref[...] + shift_ref[...], 0.0)
    out = jnp.where(mask_ref[...] > 0.0, z, 0.0)           # exact zeros on the frame
    o_ref[...] = out.astype(o_ref.dtype)


# --------------------------------------------------------------------------- #
# One (conv => BN(train) => ReLU) stage on the flat framed layout
# --------------------------------------------------------------------------- #
def _conv_bn_relu_stage(x_flat, mask, w9, bias, gamma, beta, geom, out_dtype):
    """x_flat: ((nt2+2)*tm, cin_p) bf16 framed activation (zero borders)
    mask:   (nt2*tm, 1) f32, 1.0 at valid interior positions
    w9:     (9, cin_p, cout_p) bf16;  bias/gamma/beta: (cout_p,) f32
    returns ((nt2+2)*tm, cout_p) out_dtype in the same framed layout."""
    tm, halo, wp, nt2, ntpp, total_rows, count = geom
    cin_p = x_flat.shape[1]
    cout_p = w9.shape[2]

    y_conv, ssum, ssq = pl.pallas_call(
        _make_conv_kernel(tm, halo, wp),
        grid_spec=pltpu.PrefetchScalarGridSpec(
            num_scalar_prefetch=0,
            grid=(P_CHUNKS, ntpp),
            in_specs=[
                pl.BlockSpec(memory_space=pl.ANY),                          # x in HBM
                pl.BlockSpec((9, cin_p, cout_p), lambda pp, ii: (0, 0, 0)),  # weights
                pl.BlockSpec((tm, 1), lambda pp, ii: (pp * ntpp + ii, 0)),   # mask
            ],
            out_specs=[
                pl.BlockSpec((tm, cout_p), lambda pp, ii: (pp * ntpp + ii, 0)),
                pl.BlockSpec((1, 1, cout_p), lambda pp, ii: (pp, 0, 0)),     # sum acc
                pl.BlockSpec((1, 1, cout_p), lambda pp, ii: (pp, 0, 0)),     # sumsq acc
            ],
            scratch_shapes=[
                pltpu.VMEM((2, tm + 2 * halo, cin_p), jnp.bfloat16),  # dbl-buf window
                pltpu.SemaphoreType.DMA((2,)),
            ],
        ),
        out_shape=(
            jax.ShapeDtypeStruct((nt2 * tm, cout_p), jnp.float32),
            jax.ShapeDtypeStruct((P_CHUNKS, 1, cout_p), jnp.float32),
            jax.ShapeDtypeStruct((P_CHUNKS, 1, cout_p), jnp.float32),
        ),
        compiler_params=pltpu.CompilerParams(
            dimension_semantics=("parallel", "arbitrary"),
            vmem_limit_bytes=VMEM_LIMIT,
        ),
    )(x_flat, w9, mask)

    # -------- global BN stats (f32) folded into a single per-channel affine ----
    s1 = jnp.sum(ssum[:, 0, :], axis=0)
    s2 = jnp.sum(ssq[:, 0, :], axis=0)
    mean_y = s1 / count                                   # mean of bias-less conv
    var = jnp.maximum(s2 / count - mean_y * mean_y, 0.0)  # biased batch variance
    mean_z = mean_y + bias                                # batch mean incl. conv bias
    scale = gamma * jax.lax.rsqrt(var + EPS)
    # kernel 1 stored the bias-less conv output y; z = y + bias, so
    #   BN(z) = (y + bias - mean_z) * scale + beta = y * scale + shift
    shift = (bias - mean_z) * scale + beta

    return pl.pallas_call(
        _bn_relu_kernel,
        grid_spec=pltpu.PrefetchScalarGridSpec(
            num_scalar_prefetch=0,
            grid=(nt2,),
            in_specs=[
                pl.BlockSpec((tm, cout_p), lambda tt: (tt, 0)),
                pl.BlockSpec((tm, 1), lambda tt: (tt, 0)),
                pl.BlockSpec((1, cout_p), lambda tt: (0, 0)),
                pl.BlockSpec((1, cout_p), lambda tt: (0, 0)),
            ],
            # write into the halo-framed layout expected by the next conv
            out_specs=pl.BlockSpec((tm, cout_p), lambda tt: (tt + 1, 0)),
        ),
        out_shape=jax.ShapeDtypeStruct((total_rows, cout_p), out_dtype),
        compiler_params=pltpu.CompilerParams(
            dimension_semantics=("parallel",),
            vmem_limit_bytes=VMEM_LIMIT,
        ),
    )(y_conv, mask,
      scale.reshape(1, cout_p).astype(jnp.float32),
      shift.reshape(1, cout_p).astype(jnp.float32))


# --------------------------------------------------------------------------- #
# Forward pass
# --------------------------------------------------------------------------- #
@jax.jit
def double_conv_forward(x_nchw, params):
    N, cin, H, W = x_nchw.shape
    cout = params["w1"].shape[0]
    Hp, Wp = H + 2, W + 2
    Mp = N * Hp * Wp

    halo = _round_up(Wp + 1, 8)                 # farthest 3x3 tap shift, 8-aligned
    tm = max(halo, min(512, _round_up(max(Mp // 8, 128), 8)))   # rows per grid step
    nt = _cdiv(Mp, tm)
    ntpp = _cdiv(nt, P_CHUNKS)
    nt2 = ntpp * P_CHUNKS
    total_rows = (nt2 + 2) * tm                 # one spare row-block each side (halo)
    count = float(N * H * W)                    # BN normalizer (valid positions only)

    cin_p = _round_up(cin, LANE)                # lane-dense channel padding
    cmid_p = _round_up(cout, LANE)
    geom = (tm, halo, Wp, nt2, ntpp, total_rows, count)

    # ---- pack the input into the flat framed layout (NCHW -> NHWC -> pad) ----
    x = jnp.transpose(x_nchw, (0, 2, 3, 1))
    x = jnp.pad(x, ((0, 0), (1, 1), (1, 1), (0, cin_p - cin)))
    x = x.reshape(Mp, cin_p)
    x = jnp.pad(x, ((tm, total_rows - tm - Mp), (0, 0))).astype(jnp.bfloat16)

    # validity mask, shared by both stages (same spatial geometry)
    mask = jnp.pad(jnp.ones((N, H, W, 1), jnp.float32),
                   ((0, 0), (1, 1), (1, 1), (0, 0))).reshape(Mp, 1)
    mask = jnp.pad(mask, ((0, nt2 * tm - Mp), (0, 0)))

    def prep(w, b, g, be, ci_p, co_p):
        o, i_ = w.shape[0], w.shape[1]
        w9 = jnp.transpose(w, (2, 3, 1, 0)).reshape(9, i_, o)        # (kh*3+kw, I, O)
        w9 = jnp.pad(w9, ((0, 0), (0, ci_p - i_), (0, co_p - o))).astype(jnp.bfloat16)
        cpad = ((0, co_p - o),)
        return (w9, jnp.pad(b, cpad).astype(jnp.float32),
                jnp.pad(g, cpad).astype(jnp.float32),
                jnp.pad(be, cpad).astype(jnp.float32))

    w1, b1, g1, be1 = prep(params["w1"], params["b1"], params["gamma1"],
                           params["beta1"], cin_p, cmid_p)
    w2, b2, g2, be2 = prep(params["w2"], params["b2"], params["gamma2"],
                           params["beta2"], cmid_p, cmid_p)

    y1 = _conv_bn_relu_stage(x, mask, w1, b1, g1, be1, geom, jnp.bfloat16)
    y2 = _conv_bn_relu_stage(y1, mask, w2, b2, g2, be2, geom, jnp.float32)

    # ---- unpack: framed flat -> NHWC -> crop -> NCHW ----
    y = y2[tm:tm + Mp].reshape(N, Hp, Wp, cmid_p)[:, 1:H + 1, 1:W + 1, :cout]
    return jnp.transpose(y, (0, 3, 1, 2))


# --------------------------------------------------------------------------- #
# Params / reference / test
# --------------------------------------------------------------------------- #
def init_params(key, in_ch, out_ch):
    k = jax.random.split(key, 8)
    scale1 = 1.0 / jnp.sqrt(in_ch * 9.0)
    scale2 = 1.0 / jnp.sqrt(out_ch * 9.0)
    return {
        "w1": jax.random.normal(k[0], (out_ch, in_ch, 3, 3), jnp.float32) * scale1,
        "b1": jax.random.normal(k[1], (out_ch,), jnp.float32) * scale1,
        "gamma1": 1.0 + 0.1 * jax.random.normal(k[2], (out_ch,), jnp.float32),
        "beta1": 0.1 * jax.random.normal(k[3], (out_ch,), jnp.float32),
        "w2": jax.random.normal(k[4], (out_ch, out_ch, 3, 3), jnp.float32) * scale2,
        "b2": jax.random.normal(k[5], (out_ch,), jnp.float32) * scale2,
        "gamma2": 1.0 + 0.1 * jax.random.normal(k[6], (out_ch,), jnp.float32),
        "beta2": 0.1 * jax.random.normal(k[7], (out_ch,), jnp.float32),
    }


def _reference(x_nchw, params):
    """Pure-JAX f32 reference (lax conv + training-mode BN + ReLU)."""
    def stage(x, w, b, g, be):
        y = jax.lax.conv_general_dilated(
            x, w, window_strides=(1, 1), padding="SAME",
            dimension_numbers=("NCHW", "OIHW", "NCHW"))
        y = y + b[None, :, None, None]
        mean = jnp.mean(y, axis=(0, 2, 3), keepdims=True)
        var = jnp.mean((y - mean) ** 2, axis=(0, 2, 3), keepdims=True)
        y = (y - mean) * jax.lax.rsqrt(var + EPS)
        y = y * g[None, :, None, None] + be[None, :, None, None]
        return jnp.maximum(y, 0.0)

    y = stage(x_nchw, params["w1"], params["b1"], params["gamma1"], params["beta1"])
    y = stage(y, params["w2"], params["b2"], params["gamma2"], params["beta2"])
    return y


if __name__ == "__main__":
    key = jax.random.PRNGKey(0)
    kx, kp = jax.random.split(key)

    N, in_ch, out_ch, H, W = 2, 4, 8, 16, 16
    x = jax.random.normal(kx, (N, in_ch, H, W), jnp.float32)
    params = init_params(kp, in_ch, out_ch)

    out = jax.block_until_ready(double_conv_forward(x, params))
    assert out.shape == (N, out_ch, H, W), out.shape

    ref = jax.block_until_ready(_reference(x, params))
    max_err = float(jnp.max(jnp.abs(out - ref)))
    rel_err = float(jnp.linalg.norm((out - ref).ravel())
                    / jnp.linalg.norm(ref.ravel()))
    # bf16 MXU operands (f32 accumulation / BN statistics) => slightly looser
    # tolerance than the pure-f32 version, as anticipated in the perf review.
    assert max_err < 1e-1 and rel_err < 3e-2, (max_err, rel_err)

    print("KERNEL_OK")
</pallas_src>

<mosaic_0001>
module attributes {stable_mosaic.version = 11 : i64} {
  func.func @_bn_relu_kernel(%arg0: i32, %arg1: memref<128x128xf32, #tpu.memory_space<vmem>>, %arg2: memref<128x1xf32, #tpu.memory_space<vmem>>, %arg3: memref<1x128xf32, #tpu.memory_space<vmem>>, %arg4: memref<1x128xf32, #tpu.memory_space<vmem>>, %arg5: memref<128x128xbf16, #tpu.memory_space<vmem>>) attributes {dimension_semantics = [#tpu.dimension_semantics<parallel>], iteration_bounds = array<i64: 6>, scalar_prefetch = 0 : i64, scratch_operands = 0 : i64, tpu.core_type = #tpu.core_type<tc>, window_params = [{transform_indices = @transform_0, window_bounds = array<i64: 128, 128>}, {transform_indices = @transform_1, window_bounds = array<i64: 128, 1>}, {pipeline_mode = #tpu.pipeline_mode<synchronous>, transform_indices = @transform_2, window_bounds = array<i64: 1, 128>}, {pipeline_mode = #tpu.pipeline_mode<synchronous>, transform_indices = @transform_3, window_bounds = array<i64: 1, 128>}, {transform_indices = @transform_4, window_bounds = array<i64: 128, 128>}]} {
    %c0 = arith.constant 0 : index
    %c0_0 = arith.constant 0 : index
    %0 = vector.load %arg1[%c0, %c0_0] : memref<128x128xf32, #tpu.memory_space<vmem>>, vector<128x128xf32>
    %c0_1 = arith.constant 0 : index
    %c0_2 = arith.constant 0 : index
    %1 = vector.load %arg3[%c0_1, %c0_2] : memref<1x128xf32, #tpu.memory_space<vmem>>, vector<1x128xf32>
    %2 = vector.broadcast %1 : vector<1x128xf32> to vector<128x128xf32>
    %3 = arith.mulf %0, %2 : vector<128x128xf32>
    %c0_3 = arith.constant 0 : index
    %c0_4 = arith.constant 0 : index
    %4 = vector.load %arg4[%c0_3, %c0_4] : memref<1x128xf32, #tpu.memory_space<vmem>>, vector<1x128xf32>
    %5 = vector.broadcast %4 : vector<1x128xf32> to vector<128x128xf32>
    %6 = arith.addf %3, %5 : vector<128x128xf32>
    %cst = arith.constant 0.000000e+00 : f32
    %7 = vector.broadcast %cst : f32 to vector<128x128xf32>
    %8 = arith.maximumf %6, %7 : vector<128x128xf32>
    %c0_5 = arith.constant 0 : index
    %c0_6 = arith.constant 0 : index
    %9 = vector.load %arg2[%c0_5, %c0_6] : memref<128x1xf32, #tpu.memory_space<vmem>>, vector<128x1xf32>
    %cst_7 = arith.constant 0.000000e+00 : f32
    %10 = vector.broadcast %cst_7 : f32 to vector<128x1xf32>
    %11 = arith.cmpf ogt, %9, %10 : vector<128x1xf32>
    %cst_8 = arith.constant 0.000000e+00 : f32
    %12 = vector.shape_cast %11 : vector<128x1xi1> to vector<128x1xi1>
    %13 = vector.broadcast %12 : vector<128x1xi1> to vector<128x128xi1>
    %14 = vector.broadcast %cst_8 : f32 to vector<128x128xf32>
    %15 = arith.select %13, %8, %14 : vector<128x128xi1>, vector<128x128xf32>
    %16 = arith.truncf %15 : vector<128x128xf32> to vector<128x128xbf16>
    %c0_9 = arith.constant 0 : index
    %c0_10 = arith.constant 0 : index
    %17 = vector.load %arg5[%c0_9, %c0_10] : memref<128x128xbf16, #tpu.memory_space<vmem>>, vector<128x128xbf16>
    tpu.vector_store %arg5[%c0_9, %c0_10], %16 {strides = array<i32>} : memref<128x128xbf16, #tpu.memory_space<vmem>>, vector<128x128xbf16>,
    return
  }
  func.func @transform_0(%arg0: i32) -> (i32, i32) {
    %c0_i32 = arith.constant 0 : i32
    %c0_i32_0 = arith.constant 0 : i32
    return %arg0, %c0_i32 : i32, i32
  }
  func.func @transform_1(%arg0: i32) -> (i32, i32) {
    %c0_i32 = arith.constant 0 : i32
    %c0_i32_0 = arith.constant 0 : i32
    return %arg0, %c0_i32 : i32, i32
  }
  func.func @transform_2(%arg0: i32) -> (i32, i32) {
    %c0_i32 = arith.constant 0 : i32
    %c0_i32_0 = arith.constant 0 : i32
    %c0_i32_1 = arith.constant 0 : i32
    return %c0_i32, %c0_i32_0 : i32, i32
  }
  func.func @transform_3(%arg0: i32) -> (i32, i32) {
    %c0_i32 = arith.constant 0 : i32
    %c0_i32_0 = arith.constant 0 : i32
    %c0_i32_1 = arith.constant 0 : i32
    return %c0_i32, %c0_i32_0 : i32, i32
  }
  func.func @transform_4(%arg0: i32) -> (i32, i32) {
    %c1_i32 = arith.constant 1 : i32
    %0 = arith.addi %arg0, %c1_i32 : i32
    %c0_i32 = arith.constant 0 : i32
    %c0_i32_0 = arith.constant 0 : i32
    return %0, %c0_i32 : i32, i32
  }
}

module attributes {stable_mosaic.version = 11 : i64} {
  func.func @kernel(%arg0: i32, %arg1: i32, %arg2: memref<1024x128xbf16, #tpu.memory_space<any>>, %arg3: memref<9x128x128xbf16, #tpu.memory_space<vmem>>, %arg4: memref<128x1xf32, #tpu.memory_space<vmem>>, %arg5: memref<128x128xf32, #tpu.memory_space<vmem>>, %arg6: memref<1x1x128xf32, #tpu.memory_space<vmem>>, %arg7: memref<1x1x128xf32, #tpu.memory_space<vmem>>, %arg8: memref<2x176x128xbf16, #tpu.memory_space<vmem>>, %arg9: memref<2x!tpu.dma_semaphore, #tpu.memory_space<semaphore_mem>>) attributes {dimension_semantics = [#tpu.dimension_semantics<parallel>, #tpu.dimension_semantics<arbitrary>], iteration_bounds = array<i64: 2, 3>, scalar_prefetch = 0 : i64, scratch_operands = 2 : i64, tpu.core_type = #tpu.core_type<tc>, window_params = [{}, {pipeline_mode = #tpu.pipeline_mode<synchronous>, transform_indices = @transform_1, window_bounds = array<i64: 9, 128, 128>}, {transform_indices = @transform_2, window_bounds = array<i64: 128, 1>}, {transform_indices = @transform_3, window_bounds = array<i64: 128, 128>}, {transform_indices = @transform_4, window_bounds = array<i64: 1, 1, 128>}, {transform_indices = @transform_5, window_bounds = array<i64: 1, 1, 128>}]} {
    %c3_i32 = arith.constant 3 : i32
    %0 = arith.muli %arg0, %c3_i32 : i32
    %1 = arith.addi %0, %arg1 : i32
    %c2_i32 = arith.constant 2 : i32
    %2 = arith.remsi %arg1, %c2_i32 : i32
    %c0_i32 = arith.constant 0 : i32
    %3 = arith.cmpi eq, %arg1, %c0_i32 : i32
    %4 = arith.extui %3 : i1 to i32
    %c0_i32_0 = arith.constant 0 : i32
    %5 = arith.cmpi ne, %4, %c0_i32_0 : i32
    scf.if %5 {
      %c128_i32_82 = arith.constant 128 : i32
      %99 = arith.muli %1, %c128_i32_82 : i32
      %c104_i32_83 = arith.constant 104 : i32
      %100 = arith.addi %99, %c104_i32_83 : i32
      %101 = tpu.assume_multiple %100, 8 : i32
      %c0_i32_84 = arith.constant 0 : i32
      %102 = tpu.memref_slice %arg2[%101, %c0_i32_84] : memref<1024x128xbf16, #tpu.memory_space<any>> -> memref<176x128xbf16, #tpu.memory_space<any>>
      %c0_i32_85 = arith.constant 0 : i32
      %c0_i32_86 = arith.constant 0 : i32
      %103 = tpu.memref_slice %arg8[%2, %c0_i32_85, %c0_i32_86] : memref<2x176x128xbf16, #tpu.memory_space<vmem>> -> memref<1x176x128xbf16, #tpu.memory_space<vmem>>
      %104 = tpu.memref_squeeze %103 : memref<1x176x128xbf16, #tpu.memory_space<vmem>> -> memref<176x128xbf16, #tpu.memory_space<vmem>>
      %105 = tpu.memref_slice %arg9[%2] : memref<2x!tpu.dma_semaphore, #tpu.memory_space<semaphore_mem>> -> memref<1x!tpu.dma_semaphore, #tpu.memory_space<semaphore_mem>>
      %106 = tpu.memref_squeeze %105 : memref<1x!tpu.dma_semaphore, #tpu.memory_space<semaphore_mem>> -> memref<!tpu.dma_semaphore, #tpu.memory_space<semaphore_mem>>
      tpu.enqueue_dma source(%102 : memref<176x128xbf16, #tpu.memory_space<any>>) target(%104 : memref<176x128xbf16, #tpu.memory_space<vmem>>) target_semaphore(%106 : memref<!tpu.dma_semaphore, #tpu.memory_space<semaphore_mem>>)
      %cst_87 = arith.constant 0.000000e+00 : f32
      %107 = vector.broadcast %cst_87 : f32 to vector<1x1x128xf32>
      %c0_88 = arith.constant 0 : index
      %c0_89 = arith.constant 0 : index
      %c0_90 = arith.constant 0 : index
      %108 = vector.load %arg6[%c0_88, %c0_89, %c0_90] : memref<1x1x128xf32, #tpu.memory_space<vmem>>, vector<1x1x128xf32>
      tpu.vector_store %arg6[%c0_88, %c0_89, %c0_90], %107 {strides = array<i32>} : memref<1x1x128xf32, #tpu.memory_space<vmem>>, vector<1x1x128xf32>,
      %cst_91 = arith.constant 0.000000e+00 : f32
      %109 = vector.broadcast %cst_91 : f32 to vector<1x1x128xf32>
      %c0_92 = arith.constant 0 : index
      %c0_93 = arith.constant 0 : index
      %c0_94 = arith.constant 0 : index
      %110 = vector.load %arg7[%c0_92, %c0_93, %c0_94] : memref<1x1x128xf32, #tpu.memory_space<vmem>>, vector<1x1x128xf32>
      tpu.vector_store %arg7[%c0_92, %c0_93, %c0_94], %109 {strides = array<i32>} : memref<1x1x128xf32, #tpu.memory_space<vmem>>, vector<1x1x128xf32>,
    } else {
    }
    %c1_i32 = arith.constant 1 : i32
    %6 = arith.addi %arg1, %c1_i32 : i32
    %c3_i32_1 = arith.constant 3 : i32
    %7 = arith.cmpi slt, %6, %c3_i32_1 : i32
    %8 = arith.extui %7 : i1 to i32
    %c0_i32_2 = arith.constant 0 : i32
    %9 = arith.cmpi ne, %8, %c0_i32_2 : i32
    scf.if %9 {
      %c1_i32_82 = arith.constant 1 : i32
      %99 = arith.addi %1, %c1_i32_82 : i32
      %c1_i32_83 = arith.constant 1 : i32
      %100 = arith.subi %c1_i32_83, %2 : i32
      %c128_i32_84 = arith.constant 128 : i32
      %101 = arith.muli %99, %c128_i32_84 : i32
      %c104_i32_85 = arith.constant 104 : i32
      %102 = arith.addi %101, %c104_i32_85 : i32
      %103 = tpu.assume_multiple %102, 8 : i32
      %c0_i32_86 = arith.constant 0 : i32
      %104 = tpu.memref_slice %arg2[%103, %c0_i32_86] : memref<1024x128xbf16, #tpu.memory_space<any>> -> memref<176x128xbf16, #tpu.memory_space<any>>
      %c0_i32_87 = arith.constant 0 : i32
      %c0_i32_88 = arith.constant 0 : i32
      %105 = tpu.memref_slice %arg8[%100, %c0_i32_87, %c0_i32_88] : memref<2x176x128xbf16, #tpu.memory_space<vmem>> -> memref<1x176x128xbf16, #tpu.memory_space<vmem>>
      %106 = tpu.memref_squeeze %105 : memref<1x176x128xbf16, #tpu.memory_space<vmem>> -> memref<176x128xbf16, #tpu.memory_space<vmem>>
      %107 = tpu.memref_slice %arg9[%100] : memref<2x!tpu.dma_semaphore, #tpu.memory_space<semaphore_mem>> -> memref<1x!tpu.dma_semaphore, #tpu.memory_space<semaphore_mem>>
      %108 = tpu.memref_squeeze %107 : memref<1x!tpu.dma_semaphore, #tpu.memory_space<semaphore_mem>> -> memref<!tpu.dma_semaphore, #tpu.memory_space<semaphore_mem>>
      tpu.enqueue_dma source(%104 : memref<176x128xbf16, #tpu.memory_space<any>>) target(%106 : memref<176x128xbf16, #tpu.memory_space<vmem>>) target_semaphore(%108 : memref<!tpu.dma_semaphore, #tpu.memory_space<semaphore_mem>>)
    } else {
    }
    %c128_i32 = arith.constant 128 : i32
    %10 = arith.muli %1, %c128_i32 : i32
    %c104_i32 = arith.constant 104 : i32
    %11 = arith.addi %10, %c104_i32 : i32
    %12 = tpu.assume_multiple %11, 8 : i32
    %c0_i32_3 = arith.constant 0 : i32
    %13 = tpu.memref_slice %arg2[%12, %c0_i32_3] : memref<1024x128xbf16, #tpu.memory_space<any>> -> memref<176x128xbf16, #tpu.memory_space<any>>
    %c0_i32_4 = arith.constant 0 : i32
    %c0_i32_5 = arith.constant 0 : i32
    %14 = tpu.memref_slice %arg8[%2, %c0_i32_4, %c0_i32_5] : memref<2x176x128xbf16, #tpu.memory_space<vmem>> -> memref<1x176x128xbf16, #tpu.memory_space<vmem>>
    %15 = tpu.memref_squeeze %14 : memref<1x176x128xbf16, #tpu.memory_space<vmem>> -> memref<176x128xbf16, #tpu.memory_space<vmem>>
    %16 = tpu.memref_slice %arg9[%2] : memref<2x!tpu.dma_semaphore, #tpu.memory_space<semaphore_mem>> -> memref<1x!tpu.dma_semaphore, #tpu.memory_space<semaphore_mem>>
    %17 = tpu.memref_squeeze %16 : memref<1x!tpu.dma_semaphore, #tpu.memory_space<semaphore_mem>> -> memref<!tpu.dma_semaphore, #tpu.memory_space<semaphore_mem>>
    tpu.wait_dma2 semaphore(%17 : memref<!tpu.dma_semaphore, #tpu.memory_space<semaphore_mem>>) src(%13 : memref<176x128xbf16, #tpu.memory_space<any>>) dst(%15 : memref<176x128xbf16, #tpu.memory_space<vmem>>)
    %c0_i32_6 = arith.constant 0 : i32
    %c0_i32_7 = arith.constant 0 : i32
    %18 = tpu.memref_slice %arg8[%2, %c0_i32_6, %c0_i32_7] : memref<2x176x128xbf16, #tpu.memory_space<vmem>> -> memref<1x176x128xbf16, #tpu.memory_space<vmem>>
    %19 = tpu.memref_squeeze %18 : memref<1x176x128xbf16, #tpu.memory_space<vmem>> -> memref<176x128xbf16, #tpu.memory_space<vmem>>
    %c5 = arith.constant 5 : index
    %c0 = arith.constant 0 : index
    %20 = vector.load %19[%c5, %c0] : memref<176x128xbf16, #tpu.memory_space<vmem>>, vector<128x128xbf16>
    %c0_8 = arith.constant 0 : index
    %c0_9 = arith.constant 0 : index
    %c0_10 = arith.constant 0 : index
    %21 = vector.load %arg3[%c0_8, %c0_9, %c0_10] : memref<9x128x128xbf16, #tpu.memory_space<vmem>>, vector<1x128x128xbf16>
    %22 = vector.shape_cast %21 : vector<1x128x128xbf16> to vector<128x128xbf16>
    %cst = arith.constant dense<0.000000e+00> : vector<128x128xf32>
    %23 = tpu.matmul %20, %22, %cst {dimension_numbers = #tpu.dot_dimension_numbers<[1], [0], [0], [1], [0, 0, 1, 1], [], []>} : vector<128x128xbf16>, vector<128x128xbf16>, vector<128x128xf32> -> vector<128x128xf32>
    %c0_i32_11 = arith.constant 0 : i32
    %c0_i32_12 = arith.constant 0 : i32
    %24 = tpu.memref_slice %arg8[%2, %c0_i32_11, %c0_i32_12] : memref<2x176x128xbf16, #tpu.memory_space<vmem>> -> memref<1x176x128xbf16, #tpu.memory_space<vmem>>
    %25 = tpu.memref_squeeze %24 : memref<1x176x128xbf16, #tpu.memory_space<vmem>> -> memref<176x128xbf16, #tpu.memory_space<vmem>>
    %c6 = arith.constant 6 : index
    %c0_13 = arith.constant 0 : index
    %26 = vector.load %25[%c6, %c0_13] : memref<176x128xbf16, #tpu.memory_space<vmem>>, vector<128x128xbf16>
    %c1 = arith.constant 1 : index
    %c0_14 = arith.constant 0 : index
    %c0_15 = arith.constant 0 : index
    %27 = vector.load %arg3[%c1, %c0_14, %c0_15] : memref<9x128x128xbf16, #tpu.memory_space<vmem>>, vector<1x128x128xbf16>
    %28 = vector.shape_cast %27 : vector<1x128x128xbf16> to vector<128x128xbf16>
    %cst_16 = arith.constant dense<0.000000e+00> : vector<128x128xf32>
    %29 = tpu.matmul %26, %28, %cst_16 {dimension_numbers = #tpu.dot_dimension_numbers<[1], [0], [0], [1], [0, 0, 1, 1], [], []>} : vector<128x128xbf16>, vector<128x128xbf16>, vector<128x128xf32> -> vector<128x128xf32>
    %30 = arith.addf %23, %29 : vector<128x128xf32>
    %c0_i32_17 = arith.constant 0 : i32
    %c0_i32_18 = arith.constant 0 : i32
    %31 = tpu.memref_slice %arg8[%2, %c0_i32_17, %c0_i32_18] : memref<2x176x128xbf16, #tpu.memory_space<vmem>> -> memref<1x176x128xbf16, #tpu.memory_space<vmem>>
    %32 = tpu.memref_squeeze %31 : memref<1x176x128xbf16, #tpu.memory_space<vmem>> -> memref<176x128xbf16, #tpu.memory_space<vmem>>
    %c7 = arith.constant 7 : index
    %c0_19 = arith.constant 0 : index
    %33 = vector.load %32[%c7, %c0_19] : memref<176x128xbf16, #tpu.memory_space<vmem>>, vector<128x128xbf16>
    %c2 = arith.constant 2 : index
    %c0_20 = arith.constant 0 : index
    %c0_21 = arith.constant 0 : index
    %34 = vector.load %arg3[%c2, %c0_20, %c0_21] : memref<9x128x128xbf16, #tpu.memory_space<vmem>>, vector<1x128x128xbf16>
    %35 = vector.shape_cast %34 : vector<1x128x128xbf16> to vector<128x128xbf16>
    %cst_22 = arith.constant dense<0.000000e+00> : vector<128x128xf32>
    %36 = tpu.matmul %33, %35, %cst_22 {dimension_numbers = #tpu.dot_dimension_numbers<[1], [0], [0], [1], [0, 0, 1, 1], [], []>} : vector<128x128xbf16>, vector<128x128xbf16>, vector<128x128xf32> -> vector<128x128xf32>
    %37 = arith.addf %30, %36 : vector<128x128xf32>
    %c0_i32_23 = arith.constant 0 : i32
    %c0_i32_24 = arith.constant 0 : i32
    %38 = tpu.memref_slice %arg8[%2, %c0_i32_23, %c0_i32_24] : memref<2x176x128xbf16, #tpu.memory_space<vmem>> -> memref<1x176x128xbf16, #tpu.memory_space<vmem>>
    %39 = tpu.memref_squeeze %38 : memref<1x176x128xbf16, #tpu.memory_space<vmem>> -> memref<176x128xbf16, #tpu.memory_space<vmem>>
    %c23 = arith.constant 23 : index
    %c0_25 = arith.constant 0 : index
    %40 = vector.load %39[%c23, %c0_25] : memref<176x128xbf16, #tpu.memory_space<vmem>>, vector<128x128xbf16>
    %c3 = arith.constant 3 : index
    %c0_26 = arith.constant 0 : index
    %c0_27 = arith.constant 0 : index
    %41 = vector.load %arg3[%c3, %c0_26, %c0_27] : memref<9x128x128xbf16, #tpu.memory_space<vmem>>, vector<1x128x128xbf16>
    %42 = vector.shape_cast %41 : vector<1x128x128xbf16> to vector<128x128xbf16>
    %cst_28 = arith.constant dense<0.000000e+00> : vector<128x128xf32>
    %43 = tpu.matmul %40, %42, %cst_28 {dimension_numbers = #tpu.dot_dimension_numbers<[1], [0], [0], [1], [0, 0, 1, 1], [], []>} : vector<128x128xbf16>, vector<128x128xbf16>, vector<128x128xf32> -> vector<128x128xf32>
    %44 = arith.addf %37, %43 : vector<128x128xf32>
    %c0_i32_29 = arith.constant 0 : i32
    %c0_i32_30 = arith.constant 0 : i32
    %45 = tpu.memref_slice %arg8[%2, %c0_i32_29, %c0_i32_30] : memref<2x176x128xbf16, #tpu.memory_space<vmem>> -> memref<1x176x128xbf16, #tpu.memory_space<vmem>>
    %46 = tpu.memref_squeeze %45 : memref<1x176x128xbf16, #tpu.memory_space<vmem>> -> memref<176x128xbf16, #tpu.memory_space<vmem>>
    %c24 = arith.constant 24 : index
    %c0_31 = arith.constant 0 : index
    %47 = vector.load %46[%c24, %c0_31] : memref<176x128xbf16, #tpu.memory_space<vmem>>, vector<128x128xbf16>
    %c4 = arith.constant 4 : index
    %c0_32 = arith.constant 0 : index
    %c0_33 = arith.constant 0 : index
    %48 = vector.load %arg3[%c4, %c0_32, %c0_33] : memref<9x128x128xbf16, #tpu.memory_space<vmem>>, vector<1x128x128xbf16>
    %49 = vector.shape_cast %48 : vector<1x128x128xbf16> to vector<128x128xbf16>
    %cst_34 = arith.constant dense<0.000000e+00> : vector<128x128xf32>
    %50 = tpu.matmul %47, %49, %cst_34 {dimension_numbers = #tpu.dot_dimension_numbers<[1], [0], [0], [1], [0, 0, 1, 1], [], []>} : vector<128x128xbf16>, vector<128x128xbf16>, vector<128x128xf32> -> vector<128x128xf32>
    %51 = arith.addf %44, %50 : vector<128x128xf32>
    %c0_i32_35 = arith.constant 0 : i32
    %c0_i32_36 = arith.constant 0 : i32
    %52 = tpu.memref_slice %arg8[%2, %c0_i32_35, %c0_i32_36] : memref<2x176x128xbf16, #tpu.memory_space<vmem>> -> memref<1x176x128xbf16, #tpu.memory_space<vmem>>
    %53 = tpu.memref_squeeze %52 : memref<1x176x128xbf16, #tpu.memory_space<vmem>> -> memref<176x128xbf16, #tpu.memory_space<vmem>>
    %c25 = arith.constant 25 : index
    %c0_37 = arith.constant 0 : index
    %54 = vector.load %53[%c25, %c0_37] : memref<176x128xbf16, #tpu.memory_space<vmem>>, vector<128x128xbf16>
    %c5_38 = arith.constant 5 : index
    %c0_39 = arith.constant 0 : index
    %c0_40 = arith.constant 0 : index
    %55 = vector.load %arg3[%c5_38, %c0_39, %c0_40] : memref<9x128x128xbf16, #tpu.memory_space<vmem>>, vector<1x128x128xbf16>
    %56 = vector.shape_cast %55 : vector<1x128x128xbf16> to vector<128x128xbf16>
    %cst_41 = arith.constant dense<0.000000e+00> : vector<128x128xf32>
    %57 = tpu.matmul %54, %56, %cst_41 {dimension_numbers = #tpu.dot_dimension_numbers<[1], [0], [0], [1], [0, 0, 1, 1], [], []>} : vector<128x128xbf16>, vector<128x128xbf16>, vector<128x128xf32> -> vector<128x128xf32>
    %58 = arith.addf %51, %57 : vector<128x128xf32>
    %c0_i32_42 = arith.constant 0 : i32
    %c0_i32_43 = arith.constant 0 : i32
    %59 = tpu.memref_slice %arg8[%2, %c0_i32_42, %c0_i32_43] : memref<2x176x128xbf16, #tpu.memory_space<vmem>> -> memref<1x176x128xbf16, #tpu.memory_space<vmem>>
    %60 = tpu.memref_squeeze %59 : memref<1x176x128xbf16, #tpu.memory_space<vmem>> -> memref<176x128xbf16, #tpu.memory_space<vmem>>
    %c41 = arith.constant 41 : index
    %c0_44 = arith.constant 0 : index
    %61 = vector.load %60[%c41, %c0_44] : memref<176x128xbf16, #tpu.memory_space<vmem>>, vector<128x128xbf16>
    %c6_45 = arith.constant 6 : index
    %c0_46 = arith.constant 0 : index
    %c0_47 = arith.constant 0 : index
    %62 = vector.load %arg3[%c6_45, %c0_46, %c0_47] : memref<9x128x128xbf16, #tpu.memory_space<vmem>>, vector<1x128x128xbf16>
    %63 = vector.shape_cast %62 : vector<1x128x128xbf16> to vector<128x128xbf16>
    %cst_48 = arith.constant dense<0.000000e+00> : vector<128x128xf32>
    %64 = tpu.matmul %61, %63, %cst_48 {dimension_numbers = #tpu.dot_dimension_numbers<[1], [0], [0], [1], [0, 0, 1, 1], [], []>} : vector<128x128xbf16>, vector<128x128xbf16>, vector<128x128xf32> -> vector<128x128xf32>
    %65 = arith.addf %58, %64 : vector<128x128xf32>
    %c0_i32_49 = arith.constant 0 : i32
    %c0_i32_50 = arith.constant 0 : i32
    %66 = tpu.memref_slice %arg8[%2, %c0_i32_49, %c0_i32_50] : memref<2x176x128xbf16, #tpu.memory_space<vmem>> -> memref<1x176x128xbf16, #tpu.memory_space<vmem>>
    %67 = tpu.memref_squeeze %66 : memref<1x176x128xbf16, #tpu.memory_space<vmem>> -> memref<176x128xbf16, #tpu.memory_space<vmem>>
    %c42 = arith.constant 42 : index
    %c0_51 = arith.constant 0 : index
    %68 = vector.load %67[%c42, %c0_51] : memref<176x128xbf16, #tpu.memory_space<vmem>>, vector<128x128xbf16>
    %c7_52 = arith.constant 7 : index
    %c0_53 = arith.constant 0 : index
    %c0_54 = arith.constant 0 : index
    %69 = vector.load %arg3[%c7_52, %c0_53, %c0_54] : memref<9x128x128xbf16, #tpu.memory_space<vmem>>, vector<1x128x128xbf16>
    %70 = vector.shape_cast %69 : vector<1x128x128xbf16> to vector<128x128xbf16>
    %cst_55 = arith.constant dense<0.000000e+00> : vector<128x128xf32>
    %71 = tpu.matmul %68, %70, %cst_55 {dimension_numbers = #tpu.dot_dimension_numbers<[1], [0], [0], [1], [0, 0, 1, 1], [], []>} : vector<128x128xbf16>, vector<128x128xbf16>, vector<128x128xf32> -> vector<128x128xf32>
    %72 = arith.addf %65, %71 : vector<128x128xf32>
    %c0_i32_56 = arith.constant 0 : i32
    %c0_i32_57 = arith.constant 0 : i32
    %73 = tpu.memref_slice %arg8[%2, %c0_i32_56, %c0_i32_57] : memref<2x176x128xbf16, #tpu.memory_space<vmem>> -> memref<1x176x128xbf16, #tpu.memory_space<vmem>>
    %74 = tpu.memref_squeeze %73 : memref<1x176x128xbf16, #tpu.memory_space<vmem>> -> memref<176x128xbf16, #tpu.memory_space<vmem>>
    %c43 = arith.constant 43 : index
    %c0_58 = arith.constant 0 : index
    %75 = vector.load %74[%c43, %c0_58] : memref<176x128xbf16, #tpu.memory_space<vmem>>, vector<128x128xbf16>
    %c8 = arith.constant 8 : index
    %c0_59 = arith.constant 0 : index
    %c0_60 = arith.constant 0 : index
    %76 = vector.load %arg3[%c8, %c0_59, %c0_60] : memref<9x128x128xbf16, #tpu.memory_space<vmem>>, vector<1x128x128xbf16>
    %77 = vector.shape_cast %76 : vector<1x128x128xbf16> to vector<128x128xbf16>
    %cst_61 = arith.constant dense<0.000000e+00> : vector<128x128xf32>
    %78 = tpu.matmul %75, %77, %cst_61 {dimension_numbers = #tpu.dot_dimension_numbers<[1], [0], [0], [1], [0, 0, 1, 1], [], []>} : vector<128x128xbf16>, vector<128x128xbf16>, vector<128x128xf32> -> vector<128x128xf32>
    %79 = arith.addf %72, %78 : vector<128x128xf32>
    %c0_62 = arith.constant 0 : index
    %c0_63 = arith.constant 0 : index
    %80 = vector.load %arg5[%c0_62, %c0_63] : memref<128x128xf32, #tpu.memory_space<vmem>>, vector<128x128xf32>
    tpu.vector_store %arg5[%c0_62, %c0_63], %79 {strides = array<i32>} : memref<128x128xf32, #tpu.memory_space<vmem>>, vector<128x128xf32>,
    %c0_64 = arith.constant 0 : index
    %c0_65 = arith.constant 0 : index
    %81 = vector.load %arg4[%c0_64, %c0_65] : memref<128x1xf32, #tpu.memory_space<vmem>>, vector<128x1xf32>
    %cst_66 = arith.constant 0.000000e+00 : f32
    %82 = vector.broadcast %cst_66 : f32 to vector<128x1xf32>
    %83 = arith.cmpf ogt, %81, %82 : vector<128x1xf32>
    %cst_67 = arith.constant 0.000000e+00 : f32
    %84 = vector.shape_cast %83 : vector<128x1xi1> to vector<128x1xi1>
    %85 = vector.broadcast %84 : vector<128x1xi1> to vector<128x128xi1>
    %86 = vector.broadcast %cst_67 : f32 to vector<128x128xf32>
    %87 = arith.select %85, %79, %86 : vector<128x128xi1>, vector<128x128xf32>
    %c0_68 = arith.constant 0 : index
    %c0_69 = arith.constant 0 : index
    %c0_70 = arith.constant 0 : index
    %88 = vector.load %arg6[%c0_68, %c0_69, %c0_70] : memref<1x1x128xf32, #tpu.memory_space<vmem>>, vector<1x1x128xf32>
    %cst_71 = arith.constant dense<0.000000e+00> : vector<128xf32>
    %89 = vector.multi_reduction <add>, %87, %cst_71 [0] : vector<128x128xf32> to vector<128xf32>
    %90 = vector.shape_cast %89 : vector<128xf32> to vector<1x1x128xf32>
    %91 = arith.addf %88, %90 : vector<1x1x128xf32>
    %c0_72 = arith.constant 0 : index
    %c0_73 = arith.constant 0 : index
    %c0_74 = arith.constant 0 : index
    %92 = vector.load %arg6[%c0_72, %c0_73, %c0_74] : memref<1x1x128xf32, #tpu.memory_space<vmem>>, vector<1x1x128xf32>
    tpu.vector_store %arg6[%c0_72, %c0_73, %c0_74], %91 {strides = array<i32>} : memref<1x1x128xf32, #tpu.memory_space<vmem>>, vector<1x1x128xf32>,
    %c0_75 = arith.constant 0 : index
    %c0_76 = arith.constant 0 : index
    %c0_77 = arith.constant 0 : index
    %93 = vector.load %arg7[%c0_75, %c0_76, %c0_77] : memref<1x1x128xf32, #tpu.memory_space<vmem>>, vector<1x1x128xf32>
    %94 = arith.mulf %87, %87 : vector<128x128xf32>
    %cst_78 = arith.constant dense<0.000000e+00> : vector<128xf32>
    %95 = vector.multi_reduction <add>, %94, %cst_78 [0] : vector<128x128xf32> to vector<128xf32>
    %96 = vector.shape_cast %95 : vector<128xf32> to vector<1x1x128xf32>
    %97 = arith.addf %93, %96 : vector<1x1x128xf32>
    %c0_79 = arith.constant 0 : index
    %c0_80 = arith.constant 0 : index
    %c0_81 = arith.constant 0 : index
    %98 = vector.load %arg7[%c0_79, %c0_80, %c0_81] : memref<1x1x128xf32, #tpu.memory_space<vmem>>, vector<1x1x128xf32>
    tpu.vector_store %arg7[%c0_79, %c0_80, %c0_81], %97 {strides = array<i32>} : memref<1x1x128xf32, #tpu.memory_space<vmem>>, vector<1x1x128xf32>,
    return
  }
  func.func @transform_1(%arg0: i32, %arg1: i32) -> (i32, i32, i32) {
    %c0_i32 = arith.constant 0 : i32
    %c0_i32_0 = arith.constant 0 : i32
    %c0_i32_1 = arith.constant 0 : i32
    %c0_i32_2 = arith.constant 0 : i32
    return %c0_i32, %c0_i32_0, %c0_i32_1 : i32, i32, i32
  }
  func.func @transform_2(%arg0: i32, %arg1: i32) -> (i32, i32) {
    %c3_i32 = arith.constant 3 : i32
    %0 = arith.muli %arg0, %c3_i32 : i32
    %1 = arith.addi %0, %arg1 : i32
    %c0_i32 = arith.constant 0 : i32
    %c0_i32_0 = arith.constant 0 : i32
    return %1, %c0_i32 : i32, i32
  }
  func.func @transform_3(%arg0: i32, %arg1: i32) -> (i32, i32) {
    %c3_i32 = arith.constant 3 : i32
    %0 = arith.muli %arg0, %c3_i32 : i32
    %1 = arith.addi %0, %arg1 : i32
    %c0_i32 = arith.constant 0 : i32
    %c0_i32_0 = arith.constant 0 : i32
    return %1, %c0_i32 : i32, i32
  }
  func.func @transform_4(%arg0: i32, %arg1: i32) -> (i32, i32, i32) {
    %c0_i32 = arith.constant 0 : i32
    %c0_i32_0 = arith.constant 0 : i32
    %c0_i32_1 = arith.constant 0 : i32
    return %arg0, %c0_i32, %c0_i32_0 : i32, i32, i32
  }
  func.func @transform_5(%arg0: i32, %arg1: i32) -> (i32, i32, i32) {
    %c0_i32 = arith.constant 0 : i32
    %c0_i32_0 = arith.constant 0 : i32
    %c0_i32_1 = arith.constant 0 : i32
    return %arg0, %c0_i32, %c0_i32_0 : i32, i32, i32
  }
}

module attributes {stable_mosaic.version = 11 : i64} {
  func.func @_bn_relu_kernel(%arg0: i32, %arg1: memref<128x128xf32, #tpu.memory_space<vmem>>, %arg2: memref<128x1xf32, #tpu.memory_space<vmem>>, %arg3: memref<1x128xf32, #tpu.memory_space<vmem>>, %arg4: memref<1x128xf32, #tpu.memory_space<vmem>>, %arg5: memref<128x128xf32, #tpu.memory_space<vmem>>) attributes {dimension_semantics = [#tpu.dimension_semantics<parallel>], iteration_bounds = array<i64: 6>, scalar_prefetch = 0 : i64, scratch_operands = 0 : i64, tpu.core_type = #tpu.core_type<tc>, window_params = [{transform_indices = @transform_0, window_bounds = array<i64: 128, 128>}, {transform_indices = @transform_1, window_bounds = array<i64: 128, 1>}, {pipeline_mode = #tpu.pipeline_mode<synchronous>, transform_indices = @transform_2, window_bounds = array<i64: 1, 128>}, {pipeline_mode = #tpu.pipeline_mode<synchronous>, transform_indices = @transform_3, window_bounds = array<i64: 1, 128>}, {transform_indices = @transform_4, window_bounds = array<i64: 128, 128>}]} {
    %c0 = arith.constant 0 : index
    %c0_0 = arith.constant 0 : index
    %0 = vector.load %arg1[%c0, %c0_0] : memref<128x128xf32, #tpu.memory_space<vmem>>, vector<128x128xf32>
    %c0_1 = arith.constant 0 : index
    %c0_2 = arith.constant 0 : index
    %1 = vector.load %arg3[%c0_1, %c0_2] : memref<1x128xf32, #tpu.memory_space<vmem>>, vector<1x128xf32>
    %2 = vector.broadcast %1 : vector<1x128xf32> to vector<128x128xf32>
    %3 = arith.mulf %0, %2 : vector<128x128xf32>
    %c0_3 = arith.constant 0 : index
    %c0_4 = arith.constant 0 : index
    %4 = vector.load %arg4[%c0_3, %c0_4] : memref<1x128xf32, #tpu.memory_space<vmem>>, vector<1x128xf32>
    %5 = vector.broadcast %4 : vector<1x128xf32> to vector<128x128xf32>
    %6 = arith.addf %3, %5 : vector<128x128xf32>
    %cst = arith.constant 0.000000e+00 : f32
    %7 = vector.broadcast %cst : f32 to vector<128x128xf32>
    %8 = arith.maximumf %6, %7 : vector<128x128xf32>
    %c0_5 = arith.constant 0 : index
    %c0_6 = arith.constant 0 : index
    %9 = vector.load %arg2[%c0_5, %c0_6] : memref<128x1xf32, #tpu.memory_space<vmem>>, vector<128x1xf32>
    %cst_7 = arith.constant 0.000000e+00 : f32
    %10 = vector.broadcast %cst_7 : f32 to vector<128x1xf32>
    %11 = arith.cmpf ogt, %9, %10 : vector<128x1xf32>
    %cst_8 = arith.constant 0.000000e+00 : f32
    %12 = vector.shape_cast %11 : vector<128x1xi1> to vector<128x1xi1>
    %13 = vector.broadcast %12 : vector<128x1xi1> to vector<128x128xi1>
    %14 = vector.broadcast %cst_8 : f32 to vector<128x128xf32>
    %15 = arith.select %13, %8, %14 : vector<128x128xi1>, vector<128x128xf32>
    %c0_9 = arith.constant 0 : index
    %c0_10 = arith.constant 0 : index
    %16 = vector.load %arg5[%c0_9, %c0_10] : memref<128x128xf32, #tpu.memory_space<vmem>>, vector<128x128xf32>
    tpu.vector_store %arg5[%c0_9, %c0_10], %15 {strides = array<i32>} : memref<128x128xf32, #tpu.memory_space<vmem>>, vector<128x128xf32>,
    return
  }
  func.func @transform_0(%arg0: i32) -> (i32, i32) {
    %c0_i32 = arith.constant 0 : i32
    %c0_i32_0 = arith.constant 0 : i32
    return %arg0, %c0_i32 : i32, i32
  }
  func.func @transform_1(%arg0: i32) -> (i32, i32) {
    %c0_i32 = arith.constant 0 : i32
    %c0_i32_0 = arith.constant 0 : i32
    return %arg0, %c0_i32 : i32, i32
  }
  func.func @transform_2(%arg0: i32) -> (i32, i32) {
    %c0_i32 = arith.constant 0 : i32
    %c0_i32_0 = arith.constant 0 : i32
    %c0_i32_1 = arith.constant 0 : i32
    return %c0_i32, %c0_i32_0 : i32, i32
  }
  func.func @transform_3(%arg0: i32) -> (i32, i32) {
    %c0_i32 = arith.constant 0 : i32
    %c0_i32_0 = arith.constant 0 : i32
    %c0_i32_1 = arith.constant 0 : i32
    return %c0_i32, %c0_i32_0 : i32, i32
  }
  func.func @transform_4(%arg0: i32) -> (i32, i32) {
    %c1_i32 = arith.constant 1 : i32
    %0 = arith.addi %arg0, %c1_i32 : i32
    %c0_i32 = arith.constant 0 : i32
    %c0_i32_0 = arith.constant 0 : i32
    return %0, %c0_i32 : i32, i32
  }
}

</mosaic_0001>

<llo_original>
// kernel: double_conv_forward.5
$region0: #{double_conv_forward.5}
  #allocation0 [shape = 'u32[]', space=smem, size = 0x4, offset = 0x4, fixed_abs, tag = 'smem constant byte address 0x4 - core index']
  #allocation1 [shape = 'u32[72,128]{1,0:T(1,128)}', space=vmem, size = 0x9000, scoped, tag = 'internal scratch']
  %s0 = inlined_call_operand.vmem [shape: f32[768,128], index: 0, kind: input, shape index: {}]
  %s1 = inlined_call_operand.vmem [shape: f32[768,1], index: 1, kind: input, shape index: {}]
  %s2 = inlined_call_operand.vmem [shape: f32[1,128], index: 2, kind: input, shape index: {}]
  %s3 = inlined_call_operand.vmem [shape: f32[1,128], index: 3, kind: input, shape index: {}]
  %s4 = inlined_call_operand.vmem [shape: bf16[1024,128], index: 4, kind: output, shape index: {}]
  %s5 = sld [smem:[#allocation0]]
  $region49: #{double_conv_forward.5} parent=0
    _
  %s7 = ssub.s32 1, %s5
  %s8 = scalar_select 0, %s7, %s5
  loop: start=0, step=1, limit=8
  $region2: #{double_conv_forward.5} parent=0 // loop_pre_header
    _
  $region3: #{double_conv_forward.5} parent=0 // loop_header
    %s10 = sphi 0, %s14
    %p11 = scmp.ge.s32.totalorder %s10, 8
    %s20 = sphi 0, %s22
    %s23 = sphi 0, %s20
    %s24 = sphi 0, %s23
    %s40 = sphi 0, %s24
    %s46 = sphi 0, %s48
    %s49 = sphi 0, %s46
    %s50 = sphi 0, %s49
    %s66 = sphi 0, %s50
    %s70 = sphi 0, %s70
    %s72 = sphi 0, %s70
    %s73 = sphi 0, %s72
    %s87 = sphi 0, %s73
    %s91 = sphi 0, %s91
    %s93 = sphi 0, %s91
    %s94 = sphi 0, %s93
    %s108 = sphi 0, %s94
    %s116 = sphi 0, %s118
    %s119 = sphi 0, %s116
    %s120 = sphi 0, %s119
    %s136 = sphi 0, %s120
  $region4: #{double_conv_forward.5} parent=0 // loop_header_branch
    %13 = sbr.rel (%p11) target = $region8
  $region5: #{double_conv_forward.5} parent=0 // loop_body
    %s15 = ssub.s32 %s10, 1
    %s16 = ssub.s32 %s10, 2
    %s17 = sadd.s32 %s10, 1
    %s18 = ssub.s32 %s10, %s17
    %p19 = scmp.eq.s32.totalorder %s18, 0
    %s21 = sadd.s32 %s20, 1
    %s22 = scalar_select %p19, %s20, %s21
    %p25 = pneg %p19
    %p26 = scmp.eq.s32.totalorder %s10, 5
    %p27 = por %p25, %p26
    %p28 = scmp.ne.s32.totalorder %s20, %s23
    %p29 = scmp.eq.s32.totalorder %s10, 0
    %p30 = por %p28, %p29
    %p31 = scmp.ne.s32.totalorder %s20, %s23
    %p32 = scmp.eq.s32.totalorder %s15, 5
    %p33 = por %p31, %p32
    %p34 = scmp.ne.s32.totalorder %s23, %s24
    %p35 = scmp.eq.s32.totalorder %s15, 0
    %p36 = por %p34, %p35
    %p37 = scmp.ne.s32.totalorder %s23, %s24
    %p38 = scmp.eq.s32.totalorder %s16, 5
    %p39 = por %p37, %p38
    %p41 = scmp.ne.s32.totalorder %s24, %s40
    %p42 = scmp.eq.s32.totalorder %s16, 0
    %p43 = por %p41, %p42
    %s44 = ssub.s32 %s10, %s17
    %p45 = scmp.eq.s32.totalorder %s44, 0
    %s47 = sadd.s32 %s46, 1
    %s48 = scalar_select %p45, %s46, %s47
    %p51 = pneg %p45
    %p52 = scmp.eq.s32.totalorder %s10, 5
    %p53 = por %p51, %p52
    %p54 = scmp.ne.s32.totalorder %s46, %s49
    %p55 = scmp.eq.s32.totalorder %s10, 0
    %p56 = por %p54, %p55
    %p57 = scmp.ne.s32.totalorder %s46, %s49
    %p58 = scmp.eq.s32.totalorder %s15, 5
    %p59 = por %p57, %p58
    %p60 = scmp.ne.s32.totalorder %s49, %s50
    %p61 = scmp.eq.s32.totalorder %s15, 0
    %p62 = por %p60, %p61
    %p63 = scmp.ne.s32.totalorder %s49, %s50
    %p64 = scmp.eq.s32.totalorder %s16, 5
    %p65 = por %p63, %p64
    %p67 = scmp.ne.s32.totalorder %s50, %s66
    %p68 = scmp.eq.s32.totalorder %s16, 0
    %p69 = por %p67, %p68
    %s71 = sadd.s32 %s70, 1
    %p74 = scmp.eq.s32.totalorder %s10, 5
    %p75 = scmp.ne.s32.totalorder %s70, %s72
    %p76 = scmp.eq.s32.totalorder %s10, 0
    %p77 = por %p75, %p76
    %p78 = scmp.ne.s32.totalorder %s70, %s72
    %p79 = scmp.eq.s32.totalorder %s15, 5
    %p80 = por %p78, %p79
    %p81 = scmp.ne.s32.totalorder %s72, %s73
    %p82 = scmp.eq.s32.totalorder %s15, 0
    %p83 = por %p81, %p82
    %p84 = scmp.ne.s32.totalorder %s72, %s73
    %p85 = scmp.eq.s32.totalorder %s16, 5
    %p86 = por %p84, %p85
    %p88 = scmp.ne.s32.totalorder %s73, %s87
    %p89 = scmp.eq.s32.totalorder %s16, 0
    %p90 = por %p88, %p89
    %s92 = sadd.s32 %s91, 1
    %p95 = scmp.eq.s32.totalorder %s10, 5
    %p96 = scmp.ne.s32.totalorder %s91, %s93
    %p97 = scmp.eq.s32.totalorder %s10, 0
    %p98 = por %p96, %p97
    %p99 = scmp.ne.s32.totalorder %s91, %s93
    %p100 = scmp.eq.s32.totalorder %s15, 5
    %p101 = por %p99, %p100
    %p102 = scmp.ne.s32.totalorder %s93, %s94
    %p103 = scmp.eq.s32.totalorder %s15, 0
    %p104 = por %p102, %p103
    %p105 = scmp.ne.s32.totalorder %s93, %s94
    %p106 = scmp.eq.s32.totalorder %s16, 5
    %p107 = por %p105, %p106
    %p109 = scmp.ne.s32.totalorder %s94, %s108
    %p110 = scmp.eq.s32.totalorder %s16, 0
    %p111 = por %p109, %p110
    %s112 = sadd.s32 %s10, 1
    %s113 = sadd.s32 %s17, 1
    %s114 = ssub.s32 %s112, %s113
    %p115 = scmp.eq.s32.totalorder %s114, 0
    %s117 = sadd.s32 %s116, 1
    %s118 = scalar_select %p115, %s116, %s117
    %p121 = pneg %p115
    %p122 = scmp.eq.s32.totalorder %s10, 5
    %p123 = por %p121, %p122
    %p124 = scmp.ne.s32.totalorder %s116, %s119
    %p125 = scmp.eq.s32.totalorder %s10, 0
    %p126 = por %p124, %p125
    %p127 = scmp.ne.s32.totalorder %s116, %s119
    %p128 = scmp.eq.s32.totalorder %s15, 5
    %p129 = por %p127, %p128
    %p130 = scmp.ne.s32.totalorder %s119, %s120
    %p131 = scmp.eq.s32.totalorder %s15, 0
    %p132 = por %p130, %p131
    %p133 = scmp.ne.s32.totalorder %s119, %s120
    %p134 = scmp.eq.s32.totalorder %s16, 5
    %p135 = por %p133, %p134
    %p137 = scmp.ne.s32.totalorder %s120, %s136
    %p138 = scmp.eq.s32.totalorder %s16, 0
    %p139 = por %p137, %p138
    %p140 = scmp.le.s32.totalorder 1, %s10
    %p141 = scmp.lt.s32.totalorder %s10, 7
    %p142 = pnand %p140, %p141
    %p143 = pneg %p142
    // Predicated region
    $region9: #{double_conv_forward.5} parent=5 // pred_check
      _
    $region10: #{double_conv_forward.5} parent=5 // pred_check_branch
      %145 = sbr.rel (%p142) target = $region12
    $region11: #{double_conv_forward.5} parent=5 // pred_region
      %s146 = ssub.s32 %s10, 1
      // Predicated region
      $region13: #{double_conv_forward.5} parent=11 // pred_check
        %p147 = pneg %p83
      $region14: #{double_conv_forward.5} parent=11 // pred_check_branch
        %149 = sbr.rel (%p147) target = $region16
      $region15: #{double_conv_forward.5} parent=11 // pred_region
        _
      $region16: #{double_conv_forward.5} parent=11 // pred_fallthru
        _
      // Predicated region
      $region17: #{double_conv_forward.5} parent=11 // pred_check
        %p150 = pneg %p104
      $region18: #{double_conv_forward.5} parent=11 // pred_check_branch
        %152 = sbr.rel (%p150) target = $region20
      $region19: #{double_conv_forward.5} parent=11 // pred_region
        _
      $region20: #{double_conv_forward.5} parent=11 // pred_fallthru
        _
    $region12: #{double_conv_forward.5} parent=5 // pred_fallthru
      _
    %p153 = scmp.lt.s32.totalorder %s10, 6
    // Predicated region
    $region21: #{double_conv_forward.5} parent=5 // pred_check
      %p154 = pneg %p153
    $region22: #{double_conv_forward.5} parent=5 // pred_check_branch
      %156 = sbr.rel (%p154) target = $region24
    $region23: #{double_conv_forward.5} parent=5 // pred_region
      // Predicated region
      $region25: #{double_conv_forward.5} parent=23 // pred_check
        %p157 = pneg %p30
      $region26: #{double_conv_forward.5} parent=23 // pred_check_branch
        %159 = sbr.rel (%p157) target = $region28
      $region27: #{double_conv_forward.5} parent=23 // pred_region
        %s160 = smul.u32 16, %s10
        %p161 = scmp.lt.s32.totalorder %s160, 95
        %s162 = scalar_select %p161, %s160, 95
        %s163 = smul.addr %s162, 8
        %s164 = scalar_lea.vmem %s0, %s163
        %s165 = smul.u32 16, %s10
      $region28: #{double_conv_forward.5} parent=23 // pred_fallthru
        _
      // Predicated region
      $region29: #{double_conv_forward.5} parent=23 // pred_check
        %p166 = pneg %p56
      $region30: #{double_conv_forward.5} parent=23 // pred_check_branch
        %168 = sbr.rel (%p166) target = $region32
      $region31: #{double_conv_forward.5} parent=23 // pred_region
        %s169 = smul.u32 16, %s10
        %p170 = scmp.lt.s32.totalorder %s169, 95
        %s171 = scalar_select %p170, %s169, 95
        %s172 = smul.addr %s171, 8
        %s173 = scalar_lea.vmem %s1, %s172
        %s174 = smul.u32 16, %s10
      $region32: #{double_conv_forward.5} parent=23 // pred_fallthru
        _
    $region24: #{double_conv_forward.5} parent=5 // pred_fallthru
      _
    %p175 = scmp.le.s32.totalorder 1, %s10
    %p176 = scmp.lt.s32.totalorder %s10, 7
    %p177 = pnand %p175, %p176
    %p178 = pneg %p177
    // Predicated region
    $region33: #{double_conv_forward.5} parent=5 // pred_check
      _
    $region34: #{double_conv_forward.5} parent=5 // pred_check_branch
      %180 = sbr.rel (%p177) target = $region36
    $region35: #{double_conv_forward.5} parent=5 // pred_region
      %s181 = ssub.s32 %s10, 1
      %s182 = smul.u32 16, %s15
      %p183 = scmp.lt.s32.totalorder %s182, 95
      %s184 = scalar_select %p183, %s182, 95
      %s185 = smul.addr %s184, 8
      %s186 = scalar_lea.vmem %s0, %s185
      %p187 = pneg %p36
      %p188 = pneg %p33
      %s189 = smul.u32 16, %s15
      %p190 = scmp.lt.s32.totalorder %s189, 95
      %s191 = scalar_select %p190, %s189, 95
      %s192 = smul.addr %s191, 8
      %s193 = scalar_lea.vmem %s1, %s192
      %p194 = pneg %p62
      %p195 = pneg %p59
      %p196 = pneg %p83
      %p197 = pneg %p80
      %p198 = pneg %p104
      %p199 = pneg %p101
      %p200 = pneg %p132
      %p201 = pneg %p129
      %s202 = sadd.s32 %s15, 1
      %s203 = smul.u32 16, %s202
      %p204 = scmp.lt.s32.totalorder %s203, 127
      %s205 = scalar_select %p204, %s203, 127
      %s206 = smul.addr %s205, 4
      %s207 = scalar_lea.vmem %s4, %s206
      %s208 = smul.u32 16, %s15
      %p209 = scmp.lt.s32.totalorder %s208, 95
      %s210 = scalar_select %p209, %s208, 95
      %s211 = smul.addr %s210, 8
      %s212 = scalar_lea.vmem %s0, %s211
      %s213 = smul.u32 16, %s15
      %s214 = smul.u32 16, %s15
      %p215 = scmp.lt.s32.totalorder %s214, 95
      %s216 = scalar_select %p215, %s214, 95
      %s217 = smul.addr %s216, 8
      %s218 = scalar_lea.vmem %s1, %s217
      %s219 = smul.u32 16, %s15
      %s220 = sadd.s32 %s15, 1
      %s221 = smul.u32 16, %s220
      %p222 = scmp.lt.s32.totalorder %s221, 127
      %s223 = scalar_select %p222, %s221, 127
      %s224 = smul.addr %s223, 4
      %s225 = scalar_lea.vmem %s4, %s224
      %s226 = sadd.s32 %s15, 1
      %s227 = smul.u32 16, %s226
      %v228 = vld [vmem:[%s212] sm:$0xff]
      %v229 = vld [vmem:[%s212 + $0x8] sm:$0xff]
      %v230 = vld [vmem:[%s212 + $0x10] sm:$0xff]
      %v231 = vld [vmem:[%s212 + $0x18] sm:$0xff]
      %v232 = vld [vmem:[%s212 + $0x20] sm:$0xff]
      %v233 = vld [vmem:[%s212 + $0x28] sm:$0xff]
      %v234 = vld [vmem:[%s212 + $0x30] sm:$0xff]
      %v235 = vld [vmem:[%s212 + $0x38] sm:$0xff]
      %v236 = vld [vmem:[%s212 + $0x40] sm:$0xff]
      %v237 = vld [vmem:[%s212 + $0x48] sm:$0xff]
      %v238 = vld [vmem:[%s212 + $0x50] sm:$0xff]
      %v239 = vld [vmem:[%s212 + $0x58] sm:$0xff]
      %v240 = vld [vmem:[%s212 + $0x60] sm:$0xff]
      %v241 = vld [vmem:[%s212 + $0x68] sm:$0xff]
      %v242 = vld [vmem:[%s212 + $0x70] sm:$0xff]
      %v243 = vld [vmem:[%s212 + $0x78] sm:$0xff]
      %v244 = vld [vmem:[%s2] sm:$0x1]
      %v246 = vperm.slane %v244, 0
      %v248 = vmul.f32 %v228, %v246
      %v249 = vmul.f32 %v229, %v246
      %v250 = vmul.f32 %v230, %v246
      %v251 = vmul.f32 %v231, %v246
      %v252 = vmul.f32 %v232, %v246
      %v253 = vmul.f32 %v233, %v246
      %v254 = vmul.f32 %v234, %v246
      %v255 = vmul.f32 %v235, %v246
      %v256 = vmul.f32 %v236, %v246
      %v257 = vmul.f32 %v237, %v246
      %v258 = vmul.f32 %v238, %v246
      %v259 = vmul.f32 %v239, %v246
      %v260 = vmul.f32 %v240, %v246
      %v261 = vmul.f32 %v241, %v246
      %v262 = vmul.f32 %v242, %v246
      %v263 = vmul.f32 %v243, %v246
      %v264 = vld [vmem:[%s3] sm:$0x1]
      %v266 = vperm.slane %v264, 0
      %v268 = vadd.f32 %v248, %v266
      %v269 = vadd.f32 %v249, %v266
      %v270 = vadd.f32 %v250, %v266
      %v271 = vadd.f32 %v251, %v266
      %v272 = vadd.f32 %v252, %v266
      %v273 = vadd.f32 %v253, %v266
      %v274 = vadd.f32 %v254, %v266
      %v275 = vadd.f32 %v255, %v266
      %v276 = vadd.f32 %v256, %v266
      %v277 = vadd.f32 %v257, %v266
      %v278 = vadd.f32 %v258, %v266
      %v279 = vadd.f32 %v259, %v266
      %v280 = vadd.f32 %v260, %v266
      %v281 = vadd.f32 %v261, %v266
      %v282 = vadd.f32 %v262, %v266
      %v283 = vadd.f32 %v263, %v266
      %v284 = vmax.f32 %v268, 0.0
      %v285 = vmax.f32 %v269, 0.0
      %v286 = vmax.f32 %v270, 0.0
      %v287 = vmax.f32 %v271, 0.0
      %v288 = vmax.f32 %v272, 0.0
      %v289 = vmax.f32 %v273, 0.0
      %v290 = vmax.f32 %v274, 0.0
      %v291 = vmax.f32 %v275, 0.0
      %v292 = vmax.f32 %v276, 0.0
      %v293 = vmax.f32 %v277, 0.0
      %v294 = vmax.f32 %v278, 0.0
      %v295 = vmax.f32 %v279, 0.0
      %v296 = vmax.f32 %v280, 0.0
      %v297 = vmax.f32 %v281, 0.0
      %v298 = vmax.f32 %v282, 0.0
      %v299 = vmax.f32 %v283, 0.0
      %v300 = vld [vmem:[%s218] sm:$0xff]
      %v301 = vld [vmem:[%s218 + $0x8] sm:$0xff]
      %v302 = vld [vmem:[%s218 + $0x10] sm:$0xff]
      %v303 = vld [vmem:[%s218 + $0x18] sm:$0xff]
      %v304 = vld [vmem:[%s218 + $0x20] sm:$0xff]
      %v305 = vld [vmem:[%s218 + $0x28] sm:$0xff]
      %v306 = vld [vmem:[%s218 + $0x30] sm:$0xff]
      %v307 = vld [vmem:[%s218 + $0x38] sm:$0xff]
      %v308 = vld [vmem:[%s218 + $0x40] sm:$0xff]
      %v309 = vld [vmem:[%s218 + $0x48] sm:$0xff]
      %v310 = vld [vmem:[%s218 + $0x50] sm:$0xff]
      %v311 = vld [vmem:[%s218 + $0x58] sm:$0xff]
      %v312 = vld [vmem:[%s218 + $0x60] sm:$0xff]
      %v313 = vld [vmem:[%s218 + $0x68] sm:$0xff]
      %v314 = vld [vmem:[%s218 + $0x70] sm:$0xff]
      %v315 = vld [vmem:[%s218 + $0x78] sm:$0xff]
      %vm316 = vcmp.gt.f32.partialorder %v300, 0.0
      %vm317 = vcmp.gt.f32.partialorder %v301, 0.0
      %vm318 = vcmp.gt.f32.partialorder %v302, 0.0
      %vm319 = vcmp.gt.f32.partialorder %v303, 0.0
      %vm320 = vcmp.gt.f32.partialorder %v304, 0.0
      %vm321 = vcmp.gt.f32.partialorder %v305, 0.0
      %vm322 = vcmp.gt.f32.partialorder %v306, 0.0
      %vm323 = vcmp.gt.f32.partialorder %v307, 0.0
      %vm324 = vcmp.gt.f32.partialorder %v308, 0.0
      %vm325 = vcmp.gt.f32.partialorder %v309, 0.0
      %vm326 = vcmp.gt.f32.partialorder %v310, 0.0
      %vm327 = vcmp.gt.f32.partialorder %v311, 0.0
      %vm328 = vcmp.gt.f32.partialorder %v312, 0.0
      %vm329 = vcmp.gt.f32.partialorder %v313, 0.0
      %vm330 = vcmp.gt.f32.partialorder %v314, 0.0
      %vm331 = vcmp.gt.f32.partialorder %v315, 0.0
      %v332 = vsel %vm316, 1, 0
      %v333 = vsel %vm317, 1, 0
      %v334 = vsel %vm318, 1, 0
      %v335 = vsel %vm319, 1, 0
      %v336 = vsel %vm320, 1, 0
      %v337 = vsel %vm321, 1, 0
      %v338 = vsel %vm322, 1, 0
      %v339 = vsel %vm323, 1, 0
      %v340 = vsel %vm324, 1, 0
      %v341 = vsel %vm325, 1, 0
      %v342 = vsel %vm326, 1, 0
      %v343 = vsel %vm327, 1, 0
      %v344 = vsel %vm328, 1, 0
      %v345 = vsel %vm329, 1, 0
      %v346 = vsel %vm330, 1, 0
      %v347 = vsel %vm331, 1, 0
      %348 = vset.pattern.permute.xlu0 0
      %349 = vperm.xlu0 %348, %v332
      %v350 = vpop.permute.xlu0 %349
      %351 = vset.pattern.permute.xlu0 0
      %352 = vperm.xlu0 %351, %v333
      %v353 = vpop.permute.xlu0 %352
      %354 = vset.pattern.permute.xlu0 0
      %355 = vperm.xlu0 %354, %v334
      %v356 = vpop.permute.xlu0 %355
      %357 = vset.pattern.permute.xlu0 0
      %358 = vperm.xlu0 %357, %v335
      %v359 = vpop.permute.xlu0 %358
      %360 = vset.pattern.permute.xlu0 0
      %361 = vperm.xlu0 %360, %v336
      %v362 = vpop.permute.xlu0 %361
      %363 = vset.pattern.permute.xlu0 0
      %364 = vperm.xlu0 %363, %v337
      %v365 = vpop.permute.xlu0 %364
      %366 = vset.pattern.permute.xlu0 0
      %367 = vperm.xlu0 %366, %v338
      %v368 = vpop.permute.xlu0 %367
      %369 = vset.pattern.permute.xlu0 0
      %370 = vperm.xlu0 %369, %v339
      %v371 = vpop.permute.xlu0 %370
      %372 = vset.pattern.permute.xlu0 0
      %373 = vperm.xlu0 %372, %v340
      %v374 = vpop.permute.xlu0 %373
      %375 = vset.pattern.permute.xlu0 0
      %376 = vperm.xlu0 %375, %v341
      %v377 = vpop.permute.xlu0 %376
      %378 = vset.pattern.permute.xlu0 0
      %379 = vperm.xlu0 %378, %v342
      %v380 = vpop.permute.xlu0 %379
      %381 = vset.pattern.permute.xlu0 0
      %382 = vperm.xlu0 %381, %v343
      %v383 = vpop.permute.xlu0 %382
      %384 = vset.pattern.permute.xlu0 0
      %385 = vperm.xlu0 %384, %v344
      %v386 = vpop.permute.xlu0 %385
      %387 = vset.pattern.permute.xlu0 0
      %388 = vperm.xlu0 %387, %v345
      %v389 = vpop.permute.xlu0 %388
      %390 = vset.pattern.permute.xlu0 0
      %391 = vperm.xlu0 %390, %v346
      %v392 = vpop.permute.xlu0 %391
      %393 = vset.pattern.permute.xlu0 0
      %394 = vperm.xlu0 %393, %v347
      %v395 = vpop.permute.xlu0 %394
      %vm396 = vcmp.eq.s32.totalorder %v350, 1
      %vm397 = vcmp.eq.s32.totalorder %v353, 1
      %vm398 = vcmp.eq.s32.totalorder %v356, 1
      %vm399 = vcmp.eq.s32.totalorder %v359, 1
      %vm400 = vcmp.eq.s32.totalorder %v362, 1
      %vm401 = vcmp.eq.s32.totalorder %v365, 1
      %vm402 = vcmp.eq.s32.totalorder %v368, 1
      %vm403 = vcmp.eq.s32.totalorder %v371, 1
      %vm404 = vcmp.eq.s32.totalorder %v374, 1
      %vm405 = vcmp.eq.s32.totalorder %v377, 1
      %vm406 = vcmp.eq.s32.totalorder %v380, 1
      %vm407 = vcmp.eq.s32.totalorder %v383, 1
      %vm408 = vcmp.eq.s32.totalorder %v386, 1
      %vm409 = vcmp.eq.s32.totalorder %v389, 1
      %vm410 = vcmp.eq.s32.totalorder %v392, 1
      %vm411 = vcmp.eq.s32.totalorder %v395, 1
      %v412 = vsel %vm396, %v284, 0.0
      %v413 = vsel %vm397, %v285, 0.0
      %v414 = vsel %vm398, %v286, 0.0
      %v415 = vsel %vm399, %v287, 0.0
      %v416 = vsel %vm400, %v288, 0.0
      %v417 = vsel %vm401, %v289, 0.0
      %v418 = vsel %vm402, %v290, 0.0
      %v419 = vsel %vm403, %v291, 0.0
      %v420 = vsel %vm404, %v292, 0.0
      %v421 = vsel %vm405, %v293, 0.0
      %v422 = vsel %vm406, %v294, 0.0
      %v423 = vsel %vm407, %v295, 0.0
      %v424 = vsel %vm408, %v296, 0.0
      %v425 = vsel %vm409, %v297, 0.0
      %v426 = vsel %vm410, %v298, 0.0
      %v427 = vsel %vm411, %v299, 0.0
      %v428 = vpack.c.bf16 %v412, %v412
      %v429 = vpack.c.bf16 %v413, %v413
      %v430 = vpack.c.bf16 %v414, %v414
      %v431 = vpack.c.bf16 %v415, %v415
      %v432 = vpack.c.bf16 %v416, %v416
      %v433 = vpack.c.bf16 %v417, %v417
      %v434 = vpack.c.bf16 %v418, %v418
      %v435 = vpack.c.bf16 %v419, %v419
      %v436 = vpack.c.bf16 %v420, %v420
      %v437 = vpack.c.bf16 %v421, %v421
      %v438 = vpack.c.bf16 %v422, %v422
      %v439 = vpack.c.bf16 %v423, %v423
      %v440 = vpack.c.bf16 %v424, %v424
      %v441 = vpack.c.bf16 %v425, %v425
      %v442 = vpack.c.bf16 %v426, %v426
      %v443 = vpack.c.bf16 %v427, %v427
      %444 = vst [vmem:[%s225] sm:$0xf] %v428
      %445 = vst [vmem:[%s225 + $0x4] sm:$0xf] %v429
      %446 = vst [vmem:[%s225 + $0x8] sm:$0xf] %v430
      %447 = vst [vmem:[%s225 + $0xc] sm:$0xf] %v431
      %448 = vst [vmem:[%s225 + $0x10] sm:$0xf] %v432
      %449 = vst [vmem:[%s225 + $0x14] sm:$0xf] %v433
      %450 = vst [vmem:[%s225 + $0x18] sm:$0xf] %v434
      %451 = vst [vmem:[%s225 + $0x1c] sm:$0xf] %v435
      %452 = vst [vmem:[%s225 + $0x20] sm:$0xf] %v436
      %453 = vst [vmem:[%s225 + $0x24] sm:$0xf] %v437
      %454 = vst [vmem:[%s225 + $0x28] sm:$0xf] %v438
      %455 = vst [vmem:[%s225 + $0x2c] sm:$0xf] %v439
      %456 = vst [vmem:[%s225 + $0x30] sm:$0xf] %v440
      %457 = vst [vmem:[%s225 + $0x34] sm:$0xf] %v441
      %458 = vst [vmem:[%s225 + $0x38] sm:$0xf] %v442
      %459 = vst [vmem:[%s225 + $0x3c] sm:$0xf] %v443
      %s460 = sadd.s32 %s15, 1
      %s461 = smul.u32 16, %s460
      %p462 = scmp.lt.s32.totalorder %s461, 127
      %s463 = scalar_select %p462, %s461, 127
      %s464 = smul.addr %s463, 4
      %s465 = scalar_lea.vmem %s4, %s464
      // Predicated region
      $region37: #{double_conv_forward.5} parent=35 // pred_check
        %p466 = pneg %p129
      $region38: #{double_conv_forward.5} parent=35 // pred_check_branch
        %468 = sbr.rel (%p466) target = $region40
      $region39: #{double_conv_forward.5} parent=35 // pred_region
        %s469 = sadd.s32 %s15, 1
        %s470 = smul.u32 16, %s469
      $region40: #{double_conv_forward.5} parent=35 // pred_fallthru
        _
    $region36: #{double_conv_forward.5} parent=5 // pred_fallthru
      _
    %p471 = scmp.le.s32.totalorder 2, %s10
    // Predicated region
    $region41: #{double_conv_forward.5} parent=5 // pred_check
      %p472 = pneg %p471
    $region42: #{double_conv_forward.5} parent=5 // pred_check_branch
      %474 = sbr.rel (%p472) target = $region44
    $region43: #{double_conv_forward.5} parent=5 // pred_region
      %s475 = ssub.s32 %s10, 2
      // Predicated region
      $region45: #{double_conv_forward.5} parent=43 // pred_check
        %p476 = pneg %p135
      $region46: #{double_conv_forward.5} parent=43 // pred_check_branch
        %478 = sbr.rel (%p476) target = $region48
      $region47: #{double_conv_forward.5} parent=43 // pred_region
        %s479 = sadd.s32 %s16, 1
        %s480 = smul.u32 16, %s479
        %p481 = scmp.lt.s32.totalorder %s480, 127
        %s482 = scalar_select %p481, %s480, 127
        %s483 = smul.addr %s482, 4
        %s484 = scalar_lea.vmem %s4, %s483
      $region48: #{double_conv_forward.5} parent=43 // pred_fallthru
        _
    $region44: #{double_conv_forward.5} parent=5 // pred_fallthru
      _
  $region6: #{double_conv_forward.5} parent=0 // loop_footer
    %s14 = sadd.s32 1, %s10
  $region7: #{double_conv_forward.5} parent=0 // loop_footer_branch
    %9 = sbr.rel target = $region3
  $region8: #{double_conv_forward.5} parent=0 // loop_exit
    _

// kernel: double_conv_forward.7
$region0: #{double_conv_forward.7}
  #allocation0 [shape = 'u32[]', space=smem, size = 0x4, offset = 0x4, fixed_abs, tag = 'smem constant byte address 0x4 - core index']
  #allocation1 [shape = 'u32[72,128]{1,0:T(1,128)}', space=vmem, size = 0x9000, scoped, tag = 'internal scratch']
  %s0 = inlined_call_operand.vmem [shape: f32[768,128], index: 0, kind: input, shape index: {}]
  %s1 = inlined_call_operand.vmem [shape: f32[768,1], index: 1, kind: input, shape index: {}]
  %s2 = inlined_call_operand.vmem [shape: f32[1,128], index: 2, kind: input, shape index: {}]
  %s3 = inlined_call_operand.vmem [shape: f32[1,128], index: 3, kind: input, shape index: {}]
  %s4 = inlined_call_operand.vmem [shape: f32[1024,128], index: 4, kind: output, shape index: {}]
  %s5 = sld [smem:[#allocation0]]
  $region49: #{double_conv_forward.7} parent=0
    _
  %s7 = ssub.s32 1, %s5
  %s8 = scalar_select 0, %s7, %s5
  loop: start=0, step=1, limit=8
  $region2: #{double_conv_forward.7} parent=0 // loop_pre_header
    _
  $region3: #{double_conv_forward.7} parent=0 // loop_header
    %s10 = sphi 0, %s14
    %p11 = scmp.ge.s32.totalorder %s10, 8
    %s20 = sphi 0, %s22
    %s23 = sphi 0, %s20
    %s24 = sphi 0, %s23
    %s40 = sphi 0, %s24
    %s46 = sphi 0, %s48
    %s49 = sphi 0, %s46
    %s50 = sphi 0, %s49
    %s66 = sphi 0, %s50
    %s70 = sphi 0, %s70
    %s72 = sphi 0, %s70
    %s73 = sphi 0, %s72
    %s87 = sphi 0, %s73
    %s91 = sphi 0, %s91
    %s93 = sphi 0, %s91
    %s94 = sphi 0, %s93
    %s108 = sphi 0, %s94
    %s116 = sphi 0, %s118
    %s119 = sphi 0, %s116
    %s120 = sphi 0, %s119
    %s136 = sphi 0, %s120
  $region4: #{double_conv_forward.7} parent=0 // loop_header_branch
    %13 = sbr.rel (%p11) target = $region8
  $region5: #{double_conv_forward.7} parent=0 // loop_body
    %s15 = ssub.s32 %s10, 1
    %s16 = ssub.s32 %s10, 2
    %s17 = sadd.s32 %s10, 1
    %s18 = ssub.s32 %s10, %s17
    %p19 = scmp.eq.s32.totalorder %s18, 0
    %s21 = sadd.s32 %s20, 1
    %s22 = scalar_select %p19, %s20, %s21
    %p25 = pneg %p19
    %p26 = scmp.eq.s32.totalorder %s10, 5
    %p27 = por %p25, %p26
    %p28 = scmp.ne.s32.totalorder %s20, %s23
    %p29 = scmp.eq.s32.totalorder %s10, 0
    %p30 = por %p28, %p29
    %p31 = scmp.ne.s32.totalorder %s20, %s23
    %p32 = scmp.eq.s32.totalorder %s15, 5
    %p33 = por %p31, %p32
    %p34 = scmp.ne.s32.totalorder %s23, %s24
    %p35 = scmp.eq.s32.totalorder %s15, 0
    %p36 = por %p34, %p35
    %p37 = scmp.ne.s32.totalorder %s23, %s24
    %p38 = scmp.eq.s32.totalorder %s16, 5
    %p39 = por %p37, %p38
    %p41 = scmp.ne.s32.totalorder %s24, %s40
    %p42 = scmp.eq.s32.totalorder %s16, 0
    %p43 = por %p41, %p42
    %s44 = ssub.s32 %s10, %s17
    %p45 = scmp.eq.s32.totalorder %s44, 0
    %s47 = sadd.s32 %s46, 1
    %s48 = scalar_select %p45, %s46, %s47
    %p51 = pneg %p45
    %p52 = scmp.eq.s32.totalorder %s10, 5
    %p53 = por %p51, %p52
    %p54 = scmp.ne.s32.totalorder %s46, %s49
    %p55 = scmp.eq.s32.totalorder %s10, 0
    %p56 = por %p54, %p55
    %p57 = scmp.ne.s32.totalorder %s46, %s49
    %p58 = scmp.eq.s32.totalorder %s15, 5
    %p59 = por %p57, %p58
    %p60 = scmp.ne.s32.totalorder %s49, %s50
    %p61 = scmp.eq.s32.totalorder %s15, 0
    %p62 = por %p60, %p61
    %p63 = scmp.ne.s32.totalorder %s49, %s50
    %p64 = scmp.eq.s32.totalorder %s16, 5
    %p65 = por %p63, %p64
    %p67 = scmp.ne.s32.totalorder %s50, %s66
    %p68 = scmp.eq.s32.totalorder %s16, 0
    %p69 = por %p67, %p68
    %s71 = sadd.s32 %s70, 1
    %p74 = scmp.eq.s32.totalorder %s10, 5
    %p75 = scmp.ne.s32.totalorder %s70, %s72
    %p76 = scmp.eq.s32.totalorder %s10, 0
    %p77 = por %p75, %p76
    %p78 = scmp.ne.s32.totalorder %s70, %s72
    %p79 = scmp.eq.s32.totalorder %s15, 5
    %p80 = por %p78, %p79
    %p81 = scmp.ne.s32.totalorder %s72, %s73
    %p82 = scmp.eq.s32.totalorder %s15, 0
    %p83 = por %p81, %p82
    %p84 = scmp.ne.s32.totalorder %s72, %s73
    %p85 = scmp.eq.s32.totalorder %s16, 5
    %p86 = por %p84, %p85
    %p88 = scmp.ne.s32.totalorder %s73, %s87
    %p89 = scmp.eq.s32.totalorder %s16, 0
    %p90 = por %p88, %p89
    %s92 = sadd.s32 %s91, 1
    %p95 = scmp.eq.s32.totalorder %s10, 5
    %p96 = scmp.ne.s32.totalorder %s91, %s93
    %p97 = scmp.eq.s32.totalorder %s10, 0
    %p98 = por %p96, %p97
    %p99 = scmp.ne.s32.totalorder %s91, %s93
    %p100 = scmp.eq.s32.totalorder %s15, 5
    %p101 = por %p99, %p100
    %p102 = scmp.ne.s32.totalorder %s93, %s94
    %p103 = scmp.eq.s32.totalorder %s15, 0
    %p104 = por %p102, %p103
    %p105 = scmp.ne.s32.totalorder %s93, %s94
    %p106 = scmp.eq.s32.totalorder %s16, 5
    %p107 = por %p105, %p106
    %p109 = scmp.ne.s32.totalorder %s94, %s108
    %p110 = scmp.eq.s32.totalorder %s16, 0
    %p111 = por %p109, %p110
    %s112 = sadd.s32 %s10, 1
    %s113 = sadd.s32 %s17, 1
    %s114 = ssub.s32 %s112, %s113
    %p115 = scmp.eq.s32.totalorder %s114, 0
    %s117 = sadd.s32 %s116, 1
    %s118 = scalar_select %p115, %s116, %s117
    %p121 = pneg %p115
    %p122 = scmp.eq.s32.totalorder %s10, 5
    %p123 = por %p121, %p122
    %p124 = scmp.ne.s32.totalorder %s116, %s119
    %p125 = scmp.eq.s32.totalorder %s10, 0
    %p126 = por %p124, %p125
    %p127 = scmp.ne.s32.totalorder %s116, %s119
    %p128 = scmp.eq.s32.totalorder %s15, 5
    %p129 = por %p127, %p128
    %p130 = scmp.ne.s32.totalorder %s119, %s120
    %p131 = scmp.eq.s32.totalorder %s15, 0
    %p132 = por %p130, %p131
    %p133 = scmp.ne.s32.totalorder %s119, %s120
    %p134 = scmp.eq.s32.totalorder %s16, 5
    %p135 = por %p133, %p134
    %p137 = scmp.ne.s32.totalorder %s120, %s136
    %p138 = scmp.eq.s32.totalorder %s16, 0
    %p139 = por %p137, %p138
    %p140 = scmp.le.s32.totalorder 1, %s10
    %p141 = scmp.lt.s32.totalorder %s10, 7
    %p142 = pnand %p140, %p141
    %p143 = pneg %p142
    // Predicated region
    $region9: #{double_conv_forward.7} parent=5 // pred_check
      _
    $region10: #{double_conv_forward.7} parent=5 // pred_check_branch
      %145 = sbr.rel (%p142) target = $region12
    $region11: #{double_conv_forward.7} parent=5 // pred_region
      %s146 = ssub.s32 %s10, 1
      // Predicated region
      $region13: #{double_conv_forward.7} parent=11 // pred_check
        %p147 = pneg %p83
      $region14: #{double_conv_forward.7} parent=11 // pred_check_branch
        %149 = sbr.rel (%p147) target = $region16
      $region15: #{double_conv_forward.7} parent=11 // pred_region
        _
      $region16: #{double_conv_forward.7} parent=11 // pred_fallthru
        _
      // Predicated region
      $region17: #{double_conv_forward.7} parent=11 // pred_check
        %p150 = pneg %p104
      $region18: #{double_conv_forward.7} parent=11 // pred_check_branch
        %152 = sbr.rel (%p150) target = $region20
      $region19: #{double_conv_forward.7} parent=11 // pred_region
        _
      $region20: #{double_conv_forward.7} parent=11 // pred_fallthru
        _
    $region12: #{double_conv_forward.7} parent=5 // pred_fallthru
      _
    %p153 = scmp.lt.s32.totalorder %s10, 6
    // Predicated region
    $region21: #{double_conv_forward.7} parent=5 // pred_check
      %p154 = pneg %p153
    $region22: #{double_conv_forward.7} parent=5 // pred_check_branch
      %156 = sbr.rel (%p154) target = $region24
    $region23: #{double_conv_forward.7} parent=5 // pred_region
      // Predicated region
      $region25: #{double_conv_forward.7} parent=23 // pred_check
        %p157 = pneg %p30
      $region26: #{double_conv_forward.7} parent=23 // pred_check_branch
        %159 = sbr.rel (%p157) target = $region28
      $region27: #{double_conv_forward.7} parent=23 // pred_region
        %s160 = smul.u32 16, %s10
        %p161 = scmp.lt.s32.totalorder %s160, 95
        %s162 = scalar_select %p161, %s160, 95
        %s163 = smul.addr %s162, 8
        %s164 = scalar_lea.vmem %s0, %s163
        %s165 = smul.u32 16, %s10
      $region28: #{double_conv_forward.7} parent=23 // pred_fallthru
        _
      // Predicated region
      $region29: #{double_conv_forward.7} parent=23 // pred_check
        %p166 = pneg %p56
      $region30: #{double_conv_forward.7} parent=23 // pred_check_branch
        %168 = sbr.rel (%p166) target = $region32
      $region31: #{double_conv_forward.7} parent=23 // pred_region
        %s169 = smul.u32 16, %s10
        %p170 = scmp.lt.s32.totalorder %s169, 95
        %s171 = scalar_select %p170, %s169, 95
        %s172 = smul.addr %s171, 8
        %s173 = scalar_lea.vmem %s1, %s172
        %s174 = smul.u32 16, %s10
      $region32: #{double_conv_forward.7} parent=23 // pred_fallthru
        _
    $region24: #{double_conv_forward.7} parent=5 // pred_fallthru
      _
    %p175 = scmp.le.s32.totalorder 1, %s10
    %p176 = scmp.lt.s32.totalorder %s10, 7
    %p177 = pnand %p175, %p176
    %p178 = pneg %p177
    // Predicated region
    $region33: #{double_conv_forward.7} parent=5 // pred_check
      _
    $region34: #{double_conv_forward.7} parent=5 // pred_check_branch
      %180 = sbr.rel (%p177) target = $region36
    $region35: #{double_conv_forward.7} parent=5 // pred_region
      %s181 = ssub.s32 %s10, 1
      %s182 = smul.u32 16, %s15
      %p183 = scmp.lt.s32.totalorder %s182, 95
      %s184 = scalar_select %p183, %s182, 95
      %s185 = smul.addr %s184, 8
      %s186 = scalar_lea.vmem %s0, %s185
      %p187 = pneg %p36
      %p188 = pneg %p33
      %s189 = smul.u32 16, %s15
      %p190 = scmp.lt.s32.totalorder %s189, 95
      %s191 = scalar_select %p190, %s189, 95
      %s192 = smul.addr %s191, 8
      %s193 = scalar_lea.vmem %s1, %s192
      %p194 = pneg %p62
      %p195 = pneg %p59
      %p196 = pneg %p83
      %p197 = pneg %p80
      %p198 = pneg %p104
      %p199 = pneg %p101
      %p200 = pneg %p132
      %p201 = pneg %p129
      %s202 = sadd.s32 %s15, 1
      %s203 = smul.u32 16, %s202
      %p204 = scmp.lt.s32.totalorder %s203, 127
      %s205 = scalar_select %p204, %s203, 127
      %s206 = smul.addr %s205, 8
      %s207 = scalar_lea.vmem %s4, %s206
      %s208 = smul.u32 16, %s15
      %p209 = scmp.lt.s32.totalorder %s208, 95
      %s210 = scalar_select %p209, %s208, 95
      %s211 = smul.addr %s210, 8
      %s212 = scalar_lea.vmem %s0, %s211
      %s213 = smul.u32 16, %s15
      %s214 = smul.u32 16, %s15
      %p215 = scmp.lt.s32.totalorder %s214, 95
      %s216 = scalar_select %p215, %s214, 95
      %s217 = smul.addr %s216, 8
      %s218 = scalar_lea.vmem %s1, %s217
      %s219 = smul.u32 16, %s15
      %s220 = sadd.s32 %s15, 1
      %s221 = smul.u32 16, %s220
      %p222 = scmp.lt.s32.totalorder %s221, 127
      %s223 = scalar_select %p222, %s221, 127
      %s224 = smul.addr %s223, 8
      %s225 = scalar_lea.vmem %s4, %s224
      %s226 = sadd.s32 %s15, 1
      %s227 = smul.u32 16, %s226
      %v228 = vld [vmem:[%s212] sm:$0xff]
      %v229 = vld [vmem:[%s212 + $0x8] sm:$0xff]
      %v230 = vld [vmem:[%s212 + $0x10] sm:$0xff]
      %v231 = vld [vmem:[%s212 + $0x18] sm:$0xff]
      %v232 = vld [vmem:[%s212 + $0x20] sm:$0xff]
      %v233 = vld [vmem:[%s212 + $0x28] sm:$0xff]
      %v234 = vld [vmem:[%s212 + $0x30] sm:$0xff]
      %v235 = vld [vmem:[%s212 + $0x38] sm:$0xff]
      %v236 = vld [vmem:[%s212 + $0x40] sm:$0xff]
      %v237 = vld [vmem:[%s212 + $0x48] sm:$0xff]
      %v238 = vld [vmem:[%s212 + $0x50] sm:$0xff]
      %v239 = vld [vmem:[%s212 + $0x58] sm:$0xff]
      %v240 = vld [vmem:[%s212 + $0x60] sm:$0xff]
      %v241 = vld [vmem:[%s212 + $0x68] sm:$0xff]
      %v242 = vld [vmem:[%s212 + $0x70] sm:$0xff]
      %v243 = vld [vmem:[%s212 + $0x78] sm:$0xff]
      %v244 = vld [vmem:[%s2] sm:$0x1]
      %v246 = vperm.slane %v244, 0
      %v248 = vmul.f32 %v228, %v246
      %v249 = vmul.f32 %v229, %v246
      %v250 = vmul.f32 %v230, %v246
      %v251 = vmul.f32 %v231, %v246
      %v252 = vmul.f32 %v232, %v246
      %v253 = vmul.f32 %v233, %v246
      %v254 = vmul.f32 %v234, %v246
      %v255 = vmul.f32 %v235, %v246
      %v256 = vmul.f32 %v236, %v246
      %v257 = vmul.f32 %v237, %v246
      %v258 = vmul.f32 %v238, %v246
      %v259 = vmul.f32 %v239, %v246
      %v260 = vmul.f32 %v240, %v246
      %v261 = vmul.f32 %v241, %v246
      %v262 = vmul.f32 %v242, %v246
      %v263 = vmul.f32 %v243, %v246
      %v264 = vld [vmem:[%s3] sm:$0x1]
      %v266 = vperm.slane %v264, 0
      %v268 = vadd.f32 %v248, %v266
      %v269 = vadd.f32 %v249, %v266
      %v270 = vadd.f32 %v250, %v266
      %v271 = vadd.f32 %v251, %v266
      %v272 = vadd.f32 %v252, %v266
      %v273 = vadd.f32 %v253, %v266
      %v274 = vadd.f32 %v254, %v266
      %v275 = vadd.f32 %v255, %v266
      %v276 = vadd.f32 %v256, %v266
      %v277 = vadd.f32 %v257, %v266
      %v278 = vadd.f32 %v258, %v266
      %v279 = vadd.f32 %v259, %v266
      %v280 = vadd.f32 %v260, %v266
      %v281 = vadd.f32 %v261, %v266
      %v282 = vadd.f32 %v262, %v266
      %v283 = vadd.f32 %v263, %v266
      %v284 = vmax.f32 %v268, 0.0
      %v285 = vmax.f32 %v269, 0.0
      %v286 = vmax.f32 %v270, 0.0
      %v287 = vmax.f32 %v271, 0.0
      %v288 = vmax.f32 %v272, 0.0
      %v289 = vmax.f32 %v273, 0.0
      %v290 = vmax.f32 %v274, 0.0
      %v291 = vmax.f32 %v275, 0.0
      %v292 = vmax.f32 %v276, 0.0
      %v293 = vmax.f32 %v277, 0.0
      %v294 = vmax.f32 %v278, 0.0
      %v295 = vmax.f32 %v279, 0.0
      %v296 = vmax.f32 %v280, 0.0
      %v297 = vmax.f32 %v281, 0.0
      %v298 = vmax.f32 %v282, 0.0
      %v299 = vmax.f32 %v283, 0.0
      %v300 = vld [vmem:[%s218] sm:$0xff]
      %v301 = vld [vmem:[%s218 + $0x8] sm:$0xff]
      %v302 = vld [vmem:[%s218 + $0x10] sm:$0xff]
      %v303 = vld [vmem:[%s218 + $0x18] sm:$0xff]
      %v304 = vld [vmem:[%s218 + $0x20] sm:$0xff]
      %v305 = vld [vmem:[%s218 + $0x28] sm:$0xff]
      %v306 = vld [vmem:[%s218 + $0x30] sm:$0xff]
      %v307 = vld [vmem:[%s218 + $0x38] sm:$0xff]
      %v308 = vld [vmem:[%s218 + $0x40] sm:$0xff]
      %v309 = vld [vmem:[%s218 + $0x48] sm:$0xff]
      %v310 = vld [vmem:[%s218 + $0x50] sm:$0xff]
      %v311 = vld [vmem:[%s218 + $0x58] sm:$0xff]
      %v312 = vld [vmem:[%s218 + $0x60] sm:$0xff]
      %v313 = vld [vmem:[%s218 + $0x68] sm:$0xff]
      %v314 = vld [vmem:[%s218 + $0x70] sm:$0xff]
      %v315 = vld [vmem:[%s218 + $0x78] sm:$0xff]
      %vm316 = vcmp.gt.f32.partialorder %v300, 0.0
      %vm317 = vcmp.gt.f32.partialorder %v301, 0.0
      %vm318 = vcmp.gt.f32.partialorder %v302, 0.0
      %vm319 = vcmp.gt.f32.partialorder %v303, 0.0
      %vm320 = vcmp.gt.f32.partialorder %v304, 0.0
      %vm321 = vcmp.gt.f32.partialorder %v305, 0.0
      %vm322 = vcmp.gt.f32.partialorder %v306, 0.0
      %vm323 = vcmp.gt.f32.partialorder %v307, 0.0
      %vm324 = vcmp.gt.f32.partialorder %v308, 0.0
      %vm325 = vcmp.gt.f32.partialorder %v309, 0.0
      %vm326 = vcmp.gt.f32.partialorder %v310, 0.0
      %vm327 = vcmp.gt.f32.partialorder %v311, 0.0
      %vm328 = vcmp.gt.f32.partialorder %v312, 0.0
      %vm329 = vcmp.gt.f32.partialorder %v313, 0.0
      %vm330 = vcmp.gt.f32.partialorder %v314, 0.0
      %vm331 = vcmp.gt.f32.partialorder %v315, 0.0
      %v332 = vsel %vm316, 1, 0
      %v333 = vsel %vm317, 1, 0
      %v334 = vsel %vm318, 1, 0
      %v335 = vsel %vm319, 1, 0
      %v336 = vsel %vm320, 1, 0
      %v337 = vsel %vm321, 1, 0
      %v338 = vsel %vm322, 1, 0
      %v339 = vsel %vm323, 1, 0
      %v340 = vsel %vm324, 1, 0
      %v341 = vsel %vm325, 1, 0
      %v342 = vsel %vm326, 1, 0
      %v343 = vsel %vm327, 1, 0
      %v344 = vsel %vm328, 1, 0
      %v345 = vsel %vm329, 1, 0
      %v346 = vsel %vm330, 1, 0
      %v347 = vsel %vm331, 1, 0
      %348 = vset.pattern.permute.xlu0 0
      %349 = vperm.xlu0 %348, %v332
      %v350 = vpop.permute.xlu0 %349
      %351 = vset.pattern.permute.xlu0 0
      %352 = vperm.xlu0 %351, %v333
      %v353 = vpop.permute.xlu0 %352
      %354 = vset.pattern.permute.xlu0 0
      %355 = vperm.xlu0 %354, %v334
      %v356 = vpop.permute.xlu0 %355
      %357 = vset.pattern.permute.xlu0 0
      %358 = vperm.xlu0 %357, %v335
      %v359 = vpop.permute.xlu0 %358
      %360 = vset.pattern.permute.xlu0 0
      %361 = vperm.xlu0 %360, %v336
      %v362 = vpop.permute.xlu0 %361
      %363 = vset.pattern.permute.xlu0 0
      %364 = vperm.xlu0 %363, %v337
      %v365 = vpop.permute.xlu0 %364
      %366 = vset.pattern.permute.xlu0 0
      %367 = vperm.xlu0 %366, %v338
      %v368 = vpop.permute.xlu0 %367
      %369 = vset.pattern.permute.xlu0 0
      %370 = vperm.xlu0 %369, %v339
      %v371 = vpop.permute.xlu0 %370
      %372 = vset.pattern.permute.xlu0 0
      %373 = vperm.xlu0 %372, %v340
      %v374 = vpop.permute.xlu0 %373
      %375 = vset.pattern.permute.xlu0 0
      %376 = vperm.xlu0 %375, %v341
      %v377 = vpop.permute.xlu0 %376
      %378 = vset.pattern.permute.xlu0 0
      %379 = vperm.xlu0 %378, %v342
      %v380 = vpop.permute.xlu0 %379
      %381 = vset.pattern.permute.xlu0 0
      %382 = vperm.xlu0 %381, %v343
      %v383 = vpop.permute.xlu0 %382
      %384 = vset.pattern.permute.xlu0 0
      %385 = vperm.xlu0 %384, %v344
      %v386 = vpop.permute.xlu0 %385
      %387 = vset.pattern.permute.xlu0 0
      %388 = vperm.xlu0 %387, %v345
      %v389 = vpop.permute.xlu0 %388
      %390 = vset.pattern.permute.xlu0 0
      %391 = vperm.xlu0 %390, %v346
      %v392 = vpop.permute.xlu0 %391
      %393 = vset.pattern.permute.xlu0 0
      %394 = vperm.xlu0 %393, %v347
      %v395 = vpop.permute.xlu0 %394
      %vm396 = vcmp.eq.s32.totalorder %v350, 1
      %vm397 = vcmp.eq.s32.totalorder %v353, 1
      %vm398 = vcmp.eq.s32.totalorder %v356, 1
      %vm399 = vcmp.eq.s32.totalorder %v359, 1
      %vm400 = vcmp.eq.s32.totalorder %v362, 1
      %vm401 = vcmp.eq.s32.totalorder %v365, 1
      %vm402 = vcmp.eq.s32.totalorder %v368, 1
      %vm403 = vcmp.eq.s32.totalorder %v371, 1
      %vm404 = vcmp.eq.s32.totalorder %v374, 1
      %vm405 = vcmp.eq.s32.totalorder %v377, 1
      %vm406 = vcmp.eq.s32.totalorder %v380, 1
      %vm407 = vcmp.eq.s32.totalorder %v383, 1
      %vm408 = vcmp.eq.s32.totalorder %v386, 1
      %vm409 = vcmp.eq.s32.totalorder %v389, 1
      %vm410 = vcmp.eq.s32.totalorder %v392, 1
      %vm411 = vcmp.eq.s32.totalorder %v395, 1
      %v412 = vsel %vm396, %v284, 0.0
      %v413 = vsel %vm397, %v285, 0.0
      %v414 = vsel %vm398, %v286, 0.0
      %v415 = vsel %vm399, %v287, 0.0
      %v416 = vsel %vm400, %v288, 0.0
      %v417 = vsel %vm401, %v289, 0.0
      %v418 = vsel %vm402, %v290, 0.0
      %v419 = vsel %vm403, %v291, 0.0
      %v420 = vsel %vm404, %v292, 0.0
      %v421 = vsel %vm405, %v293, 0.0
      %v422 = vsel %vm406, %v294, 0.0
      %v423 = vsel %vm407, %v295, 0.0
      %v424 = vsel %vm408, %v296, 0.0
      %v425 = vsel %vm409, %v297, 0.0
      %v426 = vsel %vm410, %v298, 0.0
      %v427 = vsel %vm411, %v299, 0.0
      %428 = vst [vmem:[%s225] sm:$0xff] %v412
      %429 = vst [vmem:[%s225 + $0x8] sm:$0xff] %v413
      %430 = vst [vmem:[%s225 + $0x10] sm:$0xff] %v414
      %431 = vst [vmem:[%s225 + $0x18] sm:$0xff] %v415
      %432 = vst [vmem:[%s225 + $0x20] sm:$0xff] %v416
      %433 = vst [vmem:[%s225 + $0x28] sm:$0xff] %v417
      %434 = vst [vmem:[%s225 + $0x30] sm:$0xff] %v418
      %435 = vst [vmem:[%s225 + $0x38] sm:$0xff] %v419
      %436 = vst [vmem:[%s225 + $0x40] sm:$0xff] %v420
      %437 = vst [vmem:[%s225 + $0x48] sm:$0xff] %v421
      %438 = vst [vmem:[%s225 + $0x50] sm:$0xff] %v422
      %439 = vst [vmem:[%s225 + $0x58] sm:$0xff] %v423
      %440 = vst [vmem:[%s225 + $0x60] sm:$0xff] %v424
      %441 = vst [vmem:[%s225 + $0x68] sm:$0xff] %v425
      %442 = vst [vmem:[%s225 + $0x70] sm:$0xff] %v426
      %443 = vst [vmem:[%s225 + $0x78] sm:$0xff] %v427
      %s444 = sadd.s32 %s15, 1
      %s445 = smul.u32 16, %s444
      %p446 = scmp.lt.s32.totalorder %s445, 127
      %s447 = scalar_select %p446, %s445, 127
      %s448 = smul.addr %s447, 8
      %s449 = scalar_lea.vmem %s4, %s448
      // Predicated region
      $region37: #{double_conv_forward.7} parent=35 // pred_check
        %p450 = pneg %p129
      $region38: #{double_conv_forward.7} parent=35 // pred_check_branch
        %452 = sbr.rel (%p450) target = $region40
      $region39: #{double_conv_forward.7} parent=35 // pred_region
        %s453 = sadd.s32 %s15, 1
        %s454 = smul.u32 16, %s453
      $region40: #{double_conv_forward.7} parent=35 // pred_fallthru
        _
    $region36: #{double_conv_forward.7} parent=5 // pred_fallthru
      _
    %p455 = scmp.le.s32.totalorder 2, %s10
    // Predicated region
    $region41: #{double_conv_forward.7} parent=5 // pred_check
      %p456 = pneg %p455
    $region42: #{double_conv_forward.7} parent=5 // pred_check_branch
      %458 = sbr.rel (%p456) target = $region44
    $region43: #{double_conv_forward.7} parent=5 // pred_region
      %s459 = ssub.s32 %s10, 2
      // Predicated region
      $region45: #{double_conv_forward.7} parent=43 // pred_check
        %p460 = pneg %p135
      $region46: #{double_conv_forward.7} parent=43 // pred_check_branch
        %462 = sbr.rel (%p460) target = $region48
      $region47: #{double_conv_forward.7} parent=43 // pred_region
        %s463 = sadd.s32 %s16, 1
        %s464 = smul.u32 16, %s463
        %p465 = scmp.lt.s32.totalorder %s464, 127
        %s466 = scalar_select %p465, %s464, 127
        %s467 = smul.addr %s466, 8
        %s468 = scalar_lea.vmem %s4, %s467
      $region48: #{double_conv_forward.7} parent=43 // pred_fallthru
        _
    $region44: #{double_conv_forward.7} parent=5 // pred_fallthru
      _
  $region6: #{double_conv_forward.7} parent=0 // loop_footer
    %s14 = sadd.s32 1, %s10
  $region7: #{double_conv_forward.7} parent=0 // loop_footer_branch
    %9 = sbr.rel target = $region3
  $region8: #{double_conv_forward.7} parent=0 // loop_exit
    _

// kernel: double_conv_forward.4
$region0: #{double_conv_forward.4}
  #allocation0 [shape = 'u32[]', space=smem, size = 0x4, offset = 0x4, fixed_abs, tag = 'smem constant byte address 0x4 - core index']
  #allocation1 [shape = 'u32[72,128]{1,0:T(1,128)}', space=vmem, size = 0x9000, scoped, tag = 'internal scratch']
  #allocation2 [shape = 'bf16[2,176,128]{2,1,0:T(8,128)(2,1)}', space=vmem, size = 0x16000, scoped, tag = 'scratch operand']
  #allocation3 [shape = 's32[2]{0}', space=sflag, size = 0x8, scoped, tag = 'scratch operand']
  #allocation4 [shape = 's32[]', space=sflag, size = 0x4, offset = 0, fixed_abs, tag = 'sflag constant byte address 0x0 - dummy sync flag']
  #allocation5 [shape = 's32[]', space=sflag, size = 0x4, offset = 0, fixed_abs, tag = 'sflag constant byte address 0x0 - dummy sync flag']
  %s0 = inlined_call_operand.vmem [shape: bf16[1024,128], index: 0, kind: input, shape index: {}]
  %s1 = inlined_call_operand.vmem [shape: bf16[9,128,128], index: 1, kind: input, shape index: {}]
  %s2 = inlined_call_operand.vmem [shape: f32[768,1], index: 2, kind: input, shape index: {}]
  %s3 = inlined_call_operand.vmem [shape: f32[768,128], index: 3, kind: output, shape index: {0}]
  %s4 = inlined_call_operand.vmem [shape: f32[2,1,128], index: 4, kind: output, shape index: {1}]
  %s5 = inlined_call_operand.vmem [shape: f32[2,1,128], index: 5, kind: output, shape index: {2}]
  %6 = xla_tuple %s3, %s4, %s5
  %s7 = sld [smem:[#allocation0]]
  $region103: #{double_conv_forward.4} parent=0
    _
  %s9 = ssub.s32 1, %s7
  %s10 = scalar_select 0, %s9, %s7
  loop: start=0, step=1, limit=8
  $region2: #{double_conv_forward.4} parent=0 // loop_pre_header
    _
  $region3: #{double_conv_forward.4} parent=0 // loop_header
    %s12 = sphi 0, %s16
    %p13 = scmp.ge.s32.totalorder %s12, 8
    %s19 = sphi 0, %s31
    %s20 = sphi 0, %s27
    %s21 = sphi 0, %s19
    %s22 = sphi 0, %s20
    %s23 = sphi 0, %s21
    %s24 = sphi 0, %s22
    %s32 = sphi 0, %s32
    %s34 = sphi 0, %s32
    %s35 = sphi 0, %s34
    %s49 = sphi 0, %s35
    %s59 = sphi 0, %s61
    %s62 = sphi 0, %s59
    %s63 = sphi 0, %s62
    %s79 = sphi 0, %s63
    %s89 = sphi 0, %s91
    %s92 = sphi 0, %s89
    %s93 = sphi 0, %s92
    %s109 = sphi 0, %s93
    %s115 = sphi 0, %s117
    %s118 = sphi 0, %s115
    %s119 = sphi 0, %s118
    %s135 = sphi 0, %s119
    %s141 = sphi 0, %s143
    %s144 = sphi 0, %s141
    %s145 = sphi 0, %s144
    %s161 = sphi 0, %s145
  $region4: #{double_conv_forward.4} parent=0 // loop_header_branch
    %15 = sbr.rel (%p13) target = $region8
  $region5: #{double_conv_forward.4} parent=0 // loop_body
    %s17 = ssub.s32 %s12, 1
    %s18 = ssub.s32 %s12, 2
    %s25 = sadd.s32 1, %s20
    %p26 = scmp.ge.s32.totalorder %s25, 3
    %s27 = scalar_select %p26, 0, %s25
    %s28 = sadd.s32 1, %s19
    %s29 = scalar_select %p26, %s28, %s19
    %p30 = scmp.ge.s32.totalorder %s29, 2
    %s31 = scalar_select %p30, 0, %s29
    %s33 = sadd.s32 %s32, 1
    %p36 = scmp.eq.s32.totalorder %s12, 5
    %p37 = scmp.ne.s32.totalorder %s32, %s34
    %p38 = scmp.eq.s32.totalorder %s12, 0
    %p39 = por %p37, %p38
    %p40 = scmp.ne.s32.totalorder %s32, %s34
    %p41 = scmp.eq.s32.totalorder %s17, 5
    %p42 = por %p40, %p41
    %p43 = scmp.ne.s32.totalorder %s34, %s35
    %p44 = scmp.eq.s32.totalorder %s17, 0
    %p45 = por %p43, %p44
    %p46 = scmp.ne.s32.totalorder %s34, %s35
    %p47 = scmp.eq.s32.totalorder %s18, 5
    %p48 = por %p46, %p47
    %p50 = scmp.ne.s32.totalorder %s35, %s49
    %p51 = scmp.eq.s32.totalorder %s18, 0
    %p52 = por %p50, %p51
    %s53 = smul.u32 %s19, 3
    %s54 = sadd.s32 %s53, %s20
    %s55 = smul.u32 %s31, 3
    %s56 = sadd.s32 %s55, %s27
    %s57 = ssub.s32 %s54, %s56
    %p58 = scmp.eq.s32.totalorder %s57, 0
    %s60 = sadd.s32 %s59, 1
    %s61 = scalar_select %p58, %s59, %s60
    %p64 = pneg %p58
    %p65 = scmp.eq.s32.totalorder %s12, 5
    %p66 = por %p64, %p65
    %p67 = scmp.ne.s32.totalorder %s59, %s62
    %p68 = scmp.eq.s32.totalorder %s12, 0
    %p69 = por %p67, %p68
    %p70 = scmp.ne.s32.totalorder %s59, %s62
    %p71 = scmp.eq.s32.totalorder %s17, 5
    %p72 = por %p70, %p71
    %p73 = scmp.ne.s32.totalorder %s62, %s63
    %p74 = scmp.eq.s32.totalorder %s17, 0
    %p75 = por %p73, %p74
    %p76 = scmp.ne.s32.totalorder %s62, %s63
    %p77 = scmp.eq.s32.totalorder %s18, 5
    %p78 = por %p76, %p77
    %p80 = scmp.ne.s32.totalorder %s63, %s79
    %p81 = scmp.eq.s32.totalorder %s18, 0
    %p82 = por %p80, %p81
    %s83 = smul.u32 %s19, 3
    %s84 = sadd.s32 %s83, %s20
    %s85 = smul.u32 %s31, 3
    %s86 = sadd.s32 %s85, %s27
    %s87 = ssub.s32 %s84, %s86
    %p88 = scmp.eq.s32.totalorder %s87, 0
    %s90 = sadd.s32 %s89, 1
    %s91 = scalar_select %p88, %s89, %s90
    %p94 = pneg %p88
    %p95 = scmp.eq.s32.totalorder %s12, 5
    %p96 = por %p94, %p95
    %p97 = scmp.ne.s32.totalorder %s89, %s92
    %p98 = scmp.eq.s32.totalorder %s12, 0
    %p99 = por %p97, %p98
    %p100 = scmp.ne.s32.totalorder %s89, %s92
    %p101 = scmp.eq.s32.totalorder %s17, 5
    %p102 = por %p100, %p101
    %p103 = scmp.ne.s32.totalorder %s92, %s93
    %p104 = scmp.eq.s32.totalorder %s17, 0
    %p105 = por %p103, %p104
    %p106 = scmp.ne.s32.totalorder %s92, %s93
    %p107 = scmp.eq.s32.totalorder %s18, 5
    %p108 = por %p106, %p107
    %p110 = scmp.ne.s32.totalorder %s93, %s109
    %p111 = scmp.eq.s32.totalorder %s18, 0
    %p112 = por %p110, %p111
    %s113 = ssub.s32 %s19, %s31
    %p114 = scmp.eq.s32.totalorder %s113, 0
    %s116 = sadd.s32 %s115, 1
    %s117 = scalar_select %p114, %s115, %s116
    %p120 = pneg %p114
    %p121 = scmp.eq.s32.totalorder %s12, 5
    %p122 = por %p120, %p121
    %p123 = scmp.ne.s32.totalorder %s115, %s118
    %p124 = scmp.eq.s32.totalorder %s12, 0
    %p125 = por %p123, %p124
    %p126 = scmp.ne.s32.totalorder %s115, %s118
    %p127 = scmp.eq.s32.totalorder %s17, 5
    %p128 = por %p126, %p127
    %p129 = scmp.ne.s32.totalorder %s118, %s119
    %p130 = scmp.eq.s32.totalorder %s17, 0
    %p131 = por %p129, %p130
    %p132 = scmp.ne.s32.totalorder %s118, %s119
    %p133 = scmp.eq.s32.totalorder %s18, 5
    %p134 = por %p132, %p133
    %p136 = scmp.ne.s32.totalorder %s119, %s135
    %p137 = scmp.eq.s32.totalorder %s18, 0
    %p138 = por %p136, %p137
    %s139 = ssub.s32 %s19, %s31
    %p140 = scmp.eq.s32.totalorder %s139, 0
    %s142 = sadd.s32 %s141, 1
    %s143 = scalar_select %p140, %s141, %s142
    %p146 = pneg %p140
    %p147 = scmp.eq.s32.totalorder %s12, 5
    %p148 = por %p146, %p147
    %p149 = scmp.ne.s32.totalorder %s141, %s144
    %p150 = scmp.eq.s32.totalorder %s12, 0
    %p151 = por %p149, %p150
    %p152 = scmp.ne.s32.totalorder %s141, %s144
    %p153 = scmp.eq.s32.totalorder %s17, 5
    %p154 = por %p152, %p153
    %p155 = scmp.ne.s32.totalorder %s144, %s145
    %p156 = scmp.eq.s32.totalorder %s17, 0
    %p157 = por %p155, %p156
    %p158 = scmp.ne.s32.totalorder %s144, %s145
    %p159 = scmp.eq.s32.totalorder %s18, 5
    %p160 = por %p158, %p159
    %p162 = scmp.ne.s32.totalorder %s145, %s161
    %p163 = scmp.eq.s32.totalorder %s18, 0
    %p164 = por %p162, %p163
    %p165 = scmp.le.s32.totalorder 1, %s12
    %p166 = scmp.lt.s32.totalorder %s12, 7
    %p167 = pnand %p165, %p166
    %p168 = pneg %p167
    // Predicated region
    $region9: #{double_conv_forward.4} parent=5 // pred_check
      _
    $region10: #{double_conv_forward.4} parent=5 // pred_check_branch
      %170 = sbr.rel (%p167) target = $region12
    $region11: #{double_conv_forward.4} parent=5 // pred_region
      %s171 = ssub.s32 %s12, 1
      // Predicated region
      $region13: #{double_conv_forward.4} parent=11 // pred_check
        %p172 = pneg %p45
      $region14: #{double_conv_forward.4} parent=11 // pred_check_branch
        %174 = sbr.rel (%p172) target = $region16
      $region15: #{double_conv_forward.4} parent=11 // pred_region
        _
      $region16: #{double_conv_forward.4} parent=11 // pred_fallthru
        _
    $region12: #{double_conv_forward.4} parent=5 // pred_fallthru
      _
    %p175 = scmp.lt.s32.totalorder %s12, 6
    // Predicated region
    $region17: #{double_conv_forward.4} parent=5 // pred_check
      %p176 = pneg %p175
    $region18: #{double_conv_forward.4} parent=5 // pred_check_branch
      %178 = sbr.rel (%p176) target = $region20
    $region19: #{double_conv_forward.4} parent=5 // pred_region
      // Predicated region
      $region21: #{double_conv_forward.4} parent=19 // pred_check
        %p179 = pneg %p69
      $region22: #{double_conv_forward.4} parent=19 // pred_check_branch
        %181 = sbr.rel (%p179) target = $region24
      $region23: #{double_conv_forward.4} parent=19 // pred_region
        %s182 = smul.u32 %s19, 3
        %s183 = sadd.s32 %s182, %s20
        %s184 = smul.u32 16, %s183
        %p185 = scmp.lt.s32.totalorder %s184, 95
        %s186 = scalar_select %p185, %s184, 95
        %s187 = smul.addr %s186, 8
        %s188 = scalar_lea.vmem %s2, %s187
        %s189 = smul.u32 %s19, 3
        %s190 = sadd.s32 %s189, %s20
        %s191 = smul.u32 16, %s190
      $region24: #{double_conv_forward.4} parent=19 // pred_fallthru
        _
    $region20: #{double_conv_forward.4} parent=5 // pred_fallthru
      _
    %p192 = scmp.le.s32.totalorder 1, %s12
    %p193 = scmp.lt.s32.totalorder %s12, 7
    %p194 = pnand %p192, %p193
    %p195 = pneg %p194
    // Predicated region
    $region25: #{double_conv_forward.4} parent=5 // pred_check
      _
    $region26: #{double_conv_forward.4} parent=5 // pred_check_branch
      %197 = sbr.rel (%p194) target = $region28
    $region27: #{double_conv_forward.4} parent=5 // pred_region
      %s198 = ssub.s32 %s12, 1
      %p199 = pneg %p45
      %p200 = pneg %p42
      %s201 = smul.u32 %s21, 3
      %s202 = sadd.s32 %s201, %s22
      %s203 = smul.u32 16, %s202
      %p204 = scmp.lt.s32.totalorder %s203, 95
      %s205 = scalar_select %p204, %s203, 95
      %s206 = smul.addr %s205, 8
      %s207 = scalar_lea.vmem %s2, %s206
      %p208 = pneg %p75
      %p209 = pneg %p72
      %p210 = pneg %p105
      %p211 = pneg %p102
      %s212 = smul.u32 %s21, 3
      %s213 = sadd.s32 %s212, %s22
      %s214 = smul.u32 16, %s213
      %p215 = scmp.lt.s32.totalorder %s214, 95
      %s216 = scalar_select %p215, %s214, 95
      %s217 = smul.addr %s216, 8
      %s218 = scalar_lea.vmem %s3, %s217
      %p219 = pneg %p131
      %p220 = pneg %p128
      %p221 = scmp.lt.s32.totalorder %s21, 1
      %s222 = scalar_select %p221, %s21, 1
      %s223 = scalar_lea.vmem %s4, %s222
      %p224 = pneg %p157
      %p225 = pneg %p154
      %p226 = scmp.lt.s32.totalorder %s21, 1
      %s227 = scalar_select %p226, %s21, 1
      %s228 = scalar_lea.vmem %s5, %s227
      %s229 = smul.u32 %s21, 3
      %s230 = sadd.s32 %s229, %s22
      %s231 = smul.u32 16, %s230
      %p232 = scmp.lt.s32.totalorder %s231, 95
      %s233 = scalar_select %p232, %s231, 95
      %s234 = smul.addr %s233, 8
      %s235 = scalar_lea.vmem %s2, %s234
      %s236 = smul.u32 %s21, 3
      %s237 = sadd.s32 %s236, %s22
      %s238 = smul.u32 16, %s237
      %s239 = smul.u32 %s21, 3
      %s240 = sadd.s32 %s239, %s22
      %s241 = smul.u32 16, %s240
      %p242 = scmp.lt.s32.totalorder %s241, 95
      %s243 = scalar_select %p242, %s241, 95
      %s244 = smul.addr %s243, 8
      %s245 = scalar_lea.vmem %s3, %s244
      %s246 = smul.u32 %s21, 3
      %s247 = sadd.s32 %s246, %s22
      %s248 = smul.u32 16, %s247
      %p249 = scmp.lt.s32.totalorder %s21, 1
      %s250 = scalar_select %p249, %s21, 1
      %s251 = scalar_lea.vmem %s4, %s250
      %p252 = scmp.lt.s32.totalorder %s21, 1
      %s253 = scalar_select %p252, %s21, 1
      %s254 = scalar_lea.vmem %s5, %s253
      %s255 = smul.u32 %s21, 3
      %s256 = sadd.s32 %s255, %s22
      %p257 = scmp.lt.s32.totalorder %s22, 0
      %s258 = ssub.s32 0, %s22
      %s259 = scalar_select %p257, %s258, %s22
      %s260 = sand.u32 %s259, 1
      %s261 = ssub.s32 0, %s260
      %s262 = scalar_select %p257, %s261, %s260
      %p263 = scmp.eq.s32.totalorder %s22, 0
      // Predicated region
      $region29: #{double_conv_forward.4} parent=27 // pred_check
        %p264 = pneg %p263
      $region30: #{double_conv_forward.4} parent=27 // pred_check_branch
        %266 = sbr.rel (%p264) target = $region32
      $region31: #{double_conv_forward.4} parent=27 // pred_region
        %s267 = smul.u32 %s256, 128
        %s268 = sadd.s32 %s267, 104
        %s269 = sshra.s32 %s268, 3
        %s270 = sand.u32 %s268, 7
        %s271 = smul.addr %s269, 4
        %s272 = scalar_lea.vmem %s0, %s271
        %s273 = smul.u32 %s262, 22
        %s274 = smul.addr %s273, 4
        %s275 = scalar_lea.vmem [#allocation2], %s274
        %s276 = scalar_lea.sflag [#allocation3], %s262
        // Predicated region
        $region33: #{double_conv_forward.4} parent=31 // pred_check
          _
        $region34: #{double_conv_forward.4} parent=31 // pred_check_branch
          %278 = sbr.rel (0) target = $region36
        $region35: #{double_conv_forward.4} parent=31 // pred_region
          loop: start=0, step=1, limit=1
          $region37: #{double_conv_forward.4} parent=35 // loop_pre_header
            _
          $region38: #{double_conv_forward.4} parent=35 // loop_header
            %s280 = sphi 0, %s284
            %p281 = scmp.ge.s32.totalorder %s280, 1
            %s285 = sphi %s272, %s272
            %s286 = sphi %s275, %s275
          $region39: #{double_conv_forward.4} parent=35 // loop_header_branch
            %283 = sbr.rel (%p281) target = $region43
          $region40: #{double_conv_forward.4} parent=35 // loop_body
            %v287 = vld [vmem:[%s285] sm:$0xff]
            %288 = vst [vmem:[%s286] sm:$0xff] %v287
            %v289 = vld [vmem:[%s285 + $0x8] sm:$0xff]
            %290 = vst [vmem:[%s286 + $0x8] sm:$0xff] %v289
            %v291 = vld [vmem:[%s285 + $0x10] sm:$0xff]
            %292 = vst [vmem:[%s286 + $0x10] sm:$0xff] %v291
            %v293 = vld [vmem:[%s285 + $0x18] sm:$0xff]
            %294 = vst [vmem:[%s286 + $0x18] sm:$0xff] %v293
            %v295 = vld [vmem:[%s285 + $0x20] sm:$0xff]
            %296 = vst [vmem:[%s286 + $0x20] sm:$0xff] %v295
            %v297 = vld [vmem:[%s285 + $0x28] sm:$0xff]
            %298 = vst [vmem:[%s286 + $0x28] sm:$0xff] %v297
            %v299 = vld [vmem:[%s285 + $0x30] sm:$0xff]
            %300 = vst [vmem:[%s286 + $0x30] sm:$0xff] %v299
            %v301 = vld [vmem:[%s285 + $0x38] sm:$0xff]
            %302 = vst [vmem:[%s286 + $0x38] sm:$0xff] %v301
            %v303 = vld [vmem:[%s285 + $0x40] sm:$0xff]
            %304 = vst [vmem:[%s286 + $0x40] sm:$0xff] %v303
            %v305 = vld [vmem:[%s285 + $0x48] sm:$0xff]
            %306 = vst [vmem:[%s286 + $0x48] sm:$0xff] %v305
            %v307 = vld [vmem:[%s285 + $0x50] sm:$0xff]
            %308 = vst [vmem:[%s286 + $0x50] sm:$0xff] %v307
          $region41: #{double_conv_forward.4} parent=35 // loop_footer
            %s284 = sadd.s32 1, %s280
          $region42: #{double_conv_forward.4} parent=35 // loop_footer_branch
            %279 = sbr.rel target = $region38
          $region43: #{double_conv_forward.4} parent=35 // loop_exit
            _
        $region36: #{double_conv_forward.4} parent=31 // pred_fallthru
          _
        // Predicated region
        $region44: #{double_conv_forward.4} parent=31 // pred_check
          _
        $region45: #{double_conv_forward.4} parent=31 // pred_check_branch
          %310 = sbr.rel target = $region47
        $region46: #{double_conv_forward.4} parent=31 // pred_region
          _
        $region47: #{double_conv_forward.4} parent=31 // pred_fallthru
          _
        // Predicated region
        $region48: #{double_conv_forward.4} parent=31 // pred_check
          _
        $region49: #{double_conv_forward.4} parent=31 // pred_check_branch
          %313 = sbr.rel (0) target = $region51
        $region50: #{double_conv_forward.4} parent=31 // pred_region
          %314 = vsyncadd %s276, 1408
        $region51: #{double_conv_forward.4} parent=31 // pred_fallthru
          _
        %315 = vst [vmem:[%s251] sm:$0x1] 0.0
        %316 = vst [vmem:[%s254] sm:$0x1] 0.0
      $region32: #{double_conv_forward.4} parent=27 // pred_fallthru
        _
      %s317 = sadd.s32 %s22, 1
      %p318 = scmp.lt.s32.totalorder %s317, 3
      // Predicated region
      $region52: #{double_conv_forward.4} parent=27 // pred_check
        %p319 = pneg %p318
      $region53: #{double_conv_forward.4} parent=27 // pred_check_branch
        %321 = sbr.rel (%p319) target = $region55
      $region54: #{double_conv_forward.4} parent=27 // pred_region
        %s322 = sadd.s32 %s256, 1
        %s323 = ssub.s32 1, %s262
        %s324 = smul.u32 %s322, 128
        %s325 = sadd.s32 %s324, 104
        %s326 = sshra.s32 %s325, 3
        %s327 = sand.u32 %s325, 7
        %s328 = smul.addr %s326, 4
        %s329 = scalar_lea.vmem %s0, %s328
        %s330 = smul.u32 %s323, 22
        %s331 = smul.addr %s330, 4
        %s332 = scalar_lea.vmem [#allocation2], %s331
        %s333 = scalar_lea.sflag [#allocation3], %s323
        // Predicated region
        $region56: #{double_conv_forward.4} parent=54 // pred_check
          _
        $region57: #{double_conv_forward.4} parent=54 // pred_check_branch
          %335 = sbr.rel (0) target = $region59
        $region58: #{double_conv_forward.4} parent=54 // pred_region
          loop: start=0, step=1, limit=1
          $region60: #{double_conv_forward.4} parent=58 // loop_pre_header
            _
          $region61: #{double_conv_forward.4} parent=58 // loop_header
            %s337 = sphi 0, %s341
            %p338 = scmp.ge.s32.totalorder %s337, 1
            %s342 = sphi %s329, %s329
            %s343 = sphi %s332, %s332
          $region62: #{double_conv_forward.4} parent=58 // loop_header_branch
            %340 = sbr.rel (%p338) target = $region66
          $region63: #{double_conv_forward.4} parent=58 // loop_body
            %v344 = vld [vmem:[%s342] sm:$0xff]
            %345 = vst [vmem:[%s343] sm:$0xff] %v344
            %v346 = vld [vmem:[%s342 + $0x8] sm:$0xff]
            %347 = vst [vmem:[%s343 + $0x8] sm:$0xff] %v346
            %v348 = vld [vmem:[%s342 + $0x10] sm:$0xff]
            %349 = vst [vmem:[%s343 + $0x10] sm:$0xff] %v348
            %v350 = vld [vmem:[%s342 + $0x18] sm:$0xff]
            %351 = vst [vmem:[%s343 + $0x18] sm:$0xff] %v350
            %v352 = vld [vmem:[%s342 + $0x20] sm:$0xff]
            %353 = vst [vmem:[%s343 + $0x20] sm:$0xff] %v352
            %v354 = vld [vmem:[%s342 + $0x28] sm:$0xff]
            %355 = vst [vmem:[%s343 + $0x28] sm:$0xff] %v354
            %v356 = vld [vmem:[%s342 + $0x30] sm:$0xff]
            %357 = vst [vmem:[%s343 + $0x30] sm:$0xff] %v356
            %v358 = vld [vmem:[%s342 + $0x38] sm:$0xff]
            %359 = vst [vmem:[%s343 + $0x38] sm:$0xff] %v358
            %v360 = vld [vmem:[%s342 + $0x40] sm:$0xff]
            %361 = vst [vmem:[%s343 + $0x40] sm:$0xff] %v360
            %v362 = vld [vmem:[%s342 + $0x48] sm:$0xff]
            %363 = vst [vmem:[%s343 + $0x48] sm:$0xff] %v362
            %v364 = vld [vmem:[%s342 + $0x50] sm:$0xff]
            %365 = vst [vmem:[%s343 + $0x50] sm:$0xff] %v364
          $region64: #{double_conv_forward.4} parent=58 // loop_footer
            %s341 = sadd.s32 1, %s337
          $region65: #{double_conv_forward.4} parent=58 // loop_footer_branch
            %336 = sbr.rel target = $region61
          $region66: #{double_conv_forward.4} parent=58 // loop_exit
            _
        $region59: #{double_conv_forward.4} parent=54 // pred_fallthru
          _
        // Predicated region
        $region67: #{double_conv_forward.4} parent=54 // pred_check
          _
        $region68: #{double_conv_forward.4} parent=54 // pred_check_branch
          %367 = sbr.rel target = $region70
        $region69: #{double_conv_forward.4} parent=54 // pred_region
          _
        $region70: #{double_conv_forward.4} parent=54 // pred_fallthru
          _
        // Predicated region
        $region71: #{double_conv_forward.4} parent=54 // pred_check
          _
        $region72: #{double_conv_forward.4} parent=54 // pred_check_branch
          %370 = sbr.rel (0) target = $region74
        $region73: #{double_conv_forward.4} parent=54 // pred_region
          %371 = vsyncadd %s333, 1408
        $region74: #{double_conv_forward.4} parent=54 // pred_fallthru
          _
      $region55: #{double_conv_forward.4} parent=27 // pred_fallthru
        _
      %s372 = smul.u32 %s256, 128
      %s373 = sadd.s32 %s372, 104
      %s374 = smul.u32 %s262, 22
      %s375 = smul.addr %s374, 4
      %s376 = scalar_lea.vmem [#allocation2], %s375
      %s377 = scalar_lea.sflag [#allocation3], %s262
      %s378 = smul.u32 4, 22
      %s379 = smul.u32 %s378, 1
      %s380 = sshll.u32 %s379, 4
      %381 = dma.done %s377, %s380
      %v382 = vld [vmem:[%s376] sm:$0xc]
      %v383 = vld [vmem:[%s376 + $0x4] sm:$0xf]
      %v384 = vld [vmem:[%s376 + $0x8] sm:$0xf]
      %v385 = vld [vmem:[%s376 + $0xc] sm:$0xf]
      %v386 = vld [vmem:[%s376 + $0x10] sm:$0xf]
      %v387 = vld [vmem:[%s376 + $0x14] sm:$0xf]
      %v388 = vld [vmem:[%s376 + $0x18] sm:$0xf]
      %v389 = vld [vmem:[%s376 + $0x1c] sm:$0xf]
      %v390 = vld [vmem:[%s376 + $0x20] sm:$0xf]
      %v391 = vld [vmem:[%s376 + $0x24] sm:$0xf]
      %v392 = vld [vmem:[%s376 + $0x28] sm:$0xf]
      %v393 = vld [vmem:[%s376 + $0x2c] sm:$0xf]
      %v394 = vld [vmem:[%s376 + $0x30] sm:$0xf]
      %v395 = vld [vmem:[%s376 + $0x34] sm:$0xf]
      %v396 = vld [vmem:[%s376 + $0x38] sm:$0xf]
      %v397 = vld [vmem:[%s376 + $0x3c] sm:$0xf]
      %v398 = vld [vmem:[%s376 + $0x40] sm:$0x7]
      %v399 = vld [vmem:[%s1] sm:$0xf]
      %v400 = vld [vmem:[%s1 + $0x4] sm:$0xf]
      %v401 = vld [vmem:[%s1 + $0x8] sm:$0xf]
      %v402 = vld [vmem:[%s1 + $0xc] sm:$0xf]
      %v403 = vld [vmem:[%s1 + $0x10] sm:$0xf]
      %v404 = vld [vmem:[%s1 + $0x14] sm:$0xf]
      %v405 = vld [vmem:[%s1 + $0x18] sm:$0xf]
      %v406 = vld [vmem:[%s1 + $0x1c] sm:$0xf]
      %v407 = vld [vmem:[%s1 + $0x20] sm:$0xf]
      %v408 = vld [vmem:[%s1 + $0x24] sm:$0xf]
      %v409 = vld [vmem:[%s1 + $0x28] sm:$0xf]
      %v410 = vld [vmem:[%s1 + $0x2c] sm:$0xf]
      %v411 = vld [vmem:[%s1 + $0x30] sm:$0xf]
      %v412 = vld [vmem:[%s1 + $0x34] sm:$0xf]
      %v413 = vld [vmem:[%s1 + $0x38] sm:$0xf]
      %v414 = vld [vmem:[%s1 + $0x3c] sm:$0xf]
      %v415 = vld [vmem:[%s376] sm:$0x8]
      %s416 = scalar_lea.vmem %s1, 64
      %v417 = vld [vmem:[%s416] sm:$0xf]
      %v418 = vld [vmem:[%s416 + $0x4] sm:$0xf]
      %v419 = vld [vmem:[%s416 + $0x8] sm:$0xf]
      %v420 = vld [vmem:[%s416 + $0xc] sm:$0xf]
      %v421 = vld [vmem:[%s416 + $0x10] sm:$0xf]
      %v422 = vld [vmem:[%s416 + $0x14] sm:$0xf]
      %v423 = vld [vmem:[%s416 + $0x18] sm:$0xf]
      %v424 = vld [vmem:[%s416 + $0x1c] sm:$0xf]
      %v425 = vld [vmem:[%s416 + $0x20] sm:$0xf]
      %v426 = vld [vmem:[%s416 + $0x24] sm:$0xf]
      %v427 = vld [vmem:[%s416 + $0x28] sm:$0xf]
      %v428 = vld [vmem:[%s416 + $0x2c] sm:$0xf]
      %v429 = vld [vmem:[%s416 + $0x30] sm:$0xf]
      %v430 = vld [vmem:[%s416 + $0x34] sm:$0xf]
      %v431 = vld [vmem:[%s416 + $0x38] sm:$0xf]
      %v432 = vld [vmem:[%s416 + $0x3c] sm:$0xf]
      %v450 = vunpack.c.l.b16 %v415
      %v451 = vunpack.c.l.b16 %v383
      %v452 = vunpack.c.l.b16 %v384
      %v453 = vunpack.c.l.b16 %v385
      %v454 = vunpack.c.l.b16 %v386
      %v455 = vunpack.c.l.b16 %v387
      %v456 = vunpack.c.l.b16 %v388
      %v457 = vunpack.c.l.b16 %v389
      %v458 = vunpack.c.l.b16 %v390
      %v459 = vunpack.c.l.b16 %v391
      %v460 = vunpack.c.l.b16 %v392
      %v461 = vunpack.c.l.b16 %v393
      %v462 = vunpack.c.l.b16 %v394
      %v463 = vunpack.c.l.b16 %v395
      %v464 = vunpack.c.l.b16 %v396
      %v465 = vunpack.c.l.b16 %v397
      %v466 = vunpack.c.l.b16 %v398
      %v467 = vpack.c.b16 %v451, %v450
      %v468 = vpack.c.b16 %v453, %v452
      %v469 = vpack.c.b16 %v455, %v454
      %v470 = vpack.c.b16 %v457, %v456
      %v471 = vpack.c.b16 %v459, %v458
      %v472 = vpack.c.b16 %v461, %v460
      %v473 = vpack.c.b16 %v463, %v462
      %v474 = vpack.c.b16 %v465, %v464
      %v475 = vpack.c.b16 %v466, %v466
      %vm476 = vcmask 1044480
      %v477 = vrot.slane %v467, 3
      %v478 = vrot.slane %v468, 3
      %v479 = vsel %vm476, %v477, %v478
      %v480 = vrot.slane %v469, 3
      %v481 = vsel %vm476, %v478, %v480
      %v482 = vrot.slane %v470, 3
      %v483 = vsel %vm476, %v480, %v482
      %v484 = vrot.slane %v471, 3
      %v485 = vsel %vm476, %v482, %v484
      %v486 = vrot.slane %v472, 3
      %v487 = vsel %vm476, %v484, %v486
      %v488 = vrot.slane %v473, 3
      %v489 = vsel %vm476, %v486, %v488
      %v490 = vrot.slane %v474, 3
      %v491 = vsel %vm476, %v488, %v490
      %v492 = vrot.slane %v475, 3
      %v493 = vsel %vm476, %v490, %v492
      %v518 = vunpack.c.l.b16 %v417
      %v519 = vunpack.c.l.b16 %v418
      %v520 = vunpack.c.l.b16 %v419
      %v521 = vunpack.c.l.b16 %v420
      %v522 = vunpack.c.l.b16 %v421
      %v523 = vunpack.c.l.b16 %v422
      %v524 = vunpack.c.l.b16 %v423
      %v525 = vunpack.c.l.b16 %v424
      %v526 = vunpack.c.l.b16 %v425
      %v527 = vunpack.c.l.b16 %v426
      %v528 = vunpack.c.l.b16 %v427
      %v529 = vunpack.c.l.b16 %v428
      %v530 = vunpack.c.l.b16 %v429
      %v531 = vunpack.c.l.b16 %v430
      %v532 = vunpack.c.l.b16 %v431
      %v533 = vunpack.c.l.b16 %v432
      %v534 = vpack.c.b16 %v519, %v518
      %v535 = vpack.c.b16 %v521, %v520
      %v536 = vpack.c.b16 %v523, %v522
      %v537 = vpack.c.b16 %v525, %v524
      %v538 = vpack.c.b16 %v527, %v526
      %v539 = vpack.c.b16 %v529, %v528
      %v540 = vpack.c.b16 %v531, %v530
      %v541 = vpack.c.b16 %v533, %v532
      %550 = vmatpush.bf16.msra.mxu0 %v541
      %551 = vmatpush.bf16.msra.mxu0 %v540
      %552 = vmatpush.bf16.msra.mxu0 %v539
      %553 = vmatpush.bf16.msra.mxu0 %v538
      %554 = vmatpush.bf16.msra.mxu0 %v537
      %555 = vmatpush.bf16.msra.mxu0 %v536
      %556 = vmatpush.bf16.msra.mxu0 %v535
      %557 = vmatpush.bf16.msra.mxu0 %v534
      %558 = vmatmul.bf16.gmra.mxu0 %v479
      %v559 = vpop.f32.mrf.mxu0
      %v560 = vadd.f32 0.0, %v559
      %v561 = vpop.f32.mrf.mxu0
      %v562 = vadd.f32 0.0, %v561
      %563 = vmatmul.bf16.gmra.mxu0 %v481
      %v564 = vpop.f32.mrf.mxu0
      %v565 = vadd.f32 0.0, %v564
      %v566 = vpop.f32.mrf.mxu0
      %v567 = vadd.f32 0.0, %v566
      %568 = vmatmul.bf16.gmra.mxu0 %v483
      %v569 = vpop.f32.mrf.mxu0
      %v570 = vadd.f32 0.0, %v569
      %v571 = vpop.f32.mrf.mxu0
      %v572 = vadd.f32 0.0, %v571
      %573 = vmatmul.bf16.gmra.mxu0 %v485
      %v574 = vpop.f32.mrf.mxu0
      %v575 = vadd.f32 0.0, %v574
      %v576 = vpop.f32.mrf.mxu0
      %v577 = vadd.f32 0.0, %v576
      %578 = vmatmul.bf16.gmra.mxu0 %v487
      %v579 = vpop.f32.mrf.mxu0
      %v580 = vadd.f32 0.0, %v579
      %v581 = vpop.f32.mrf.mxu0
      %v582 = vadd.f32 0.0, %v581
      %583 = vmatmul.bf16.gmra.mxu0 %v489
      %v584 = vpop.f32.mrf.mxu0
      %v585 = vadd.f32 0.0, %v584
      %v586 = vpop.f32.mrf.mxu0
      %v587 = vadd.f32 0.0, %v586
      %588 = vmatmul.bf16.gmra.mxu0 %v491
      %v589 = vpop.f32.mrf.mxu0
      %v590 = vadd.f32 0.0, %v589
      %v591 = vpop.f32.mrf.mxu0
      %v592 = vadd.f32 0.0, %v591
      %593 = vmatmul.bf16.gmra.mxu0 %v493
      %v594 = vpop.f32.mrf.mxu0
      %v595 = vadd.f32 0.0, %v594
      %v596 = vpop.f32.mrf.mxu0
      %v597 = vadd.f32 0.0, %v596
      %598 = vdwg.mxu0
      %v600 = vunpack.c.l.b16 %v382
      %v601 = vpack.c.b16 %v451, %v600
      %vm602 = vsmask.f32 5376
      %v604 = vshrl.u32 %v601, 16
      %v606 = vrot.slane %v604, 2
      %v607 = vshll.u32 %v601, 16
      %v609 = vrot.slane %v607, 3
      %v610 = vor.u32 %v606, %v609
      %v612 = vshrl.u32 %v468, 16
      %v614 = vrot.slane %v612, 2
      %v615 = vshll.u32 %v468, 16
      %v617 = vrot.slane %v615, 3
      %v618 = vor.u32 %v614, %v617
      %v619 = vsel %vm602, %v610, %v618
      %v621 = vshrl.u32 %v469, 16
      %v623 = vrot.slane %v621, 2
      %v624 = vshll.u32 %v469, 16
      %v626 = vrot.slane %v624, 3
      %v627 = vor.u32 %v623, %v626
      %v628 = vsel %vm602, %v618, %v627
      %v630 = vshrl.u32 %v470, 16
      %v632 = vrot.slane %v630, 2
      %v633 = vshll.u32 %v470, 16
      %v635 = vrot.slane %v633, 3
      %v636 = vor.u32 %v632, %v635
      %v637 = vsel %vm602, %v627, %v636
      %v639 = vshrl.u32 %v471, 16
      %v641 = vrot.slane %v639, 2
      %v642 = vshll.u32 %v471, 16
      %v644 = vrot.slane %v642, 3
      %v645 = vor.u32 %v641, %v644
      %v646 = vsel %vm602, %v636, %v645
      %v648 = vshrl.u32 %v472, 16
      %v650 = vrot.slane %v648, 2
      %v651 = vshll.u32 %v472, 16
      %v653 = vrot.slane %v651, 3
      %v654 = vor.u32 %v650, %v653
      %v655 = vsel %vm602, %v645, %v654
      %v657 = vshrl.u32 %v473, 16
      %v659 = vrot.slane %v657, 2
      %v660 = vshll.u32 %v473, 16
      %v662 = vrot.slane %v660, 3
      %v663 = vor.u32 %v659, %v662
      %v664 = vsel %vm602, %v654, %v663
      %v666 = vshrl.u32 %v474, 16
      %v668 = vrot.slane %v666, 2
      %v669 = vshll.u32 %v474, 16
      %v671 = vrot.slane %v669, 3
      %v672 = vor.u32 %v668, %v671
      %v673 = vsel %vm602, %v663, %v672
      %v675 = vshrl.u32 %v475, 16
      %v677 = vrot.slane %v675, 2
      %v678 = vshll.u32 %v475, 16
      %v680 = vrot.slane %v678, 3
      %v681 = vor.u32 %v677, %v680
      %v682 = vsel %vm602, %v672, %v681
      %v707 = vunpack.c.l.b16 %v399
      %v708 = vunpack.c.l.b16 %v400
      %v709 = vunpack.c.l.b16 %v401
      %v710 = vunpack.c.l.b16 %v402
      %v711 = vunpack.c.l.b16 %v403
      %v712 = vunpack.c.l.b16 %v404
      %v713 = vunpack.c.l.b16 %v405
      %v714 = vunpack.c.l.b16 %v406
      %v715 = vunpack.c.l.b16 %v407
      %v716 = vunpack.c.l.b16 %v408
      %v717 = vunpack.c.l.b16 %v409
      %v718 = vunpack.c.l.b16 %v410
      %v719 = vunpack.c.l.b16 %v411
      %v720 = vunpack.c.l.b16 %v412
      %v721 = vunpack.c.l.b16 %v413
      %v722 = vunpack.c.l.b16 %v414
      %v723 = vpack.c.b16 %v708, %v707
      %v724 = vpack.c.b16 %v710, %v709
      %v725 = vpack.c.b16 %v712, %v711
      %v726 = vpack.c.b16 %v714, %v713
      %v727 = vpack.c.b16 %v716, %v715
      %v728 = vpack.c.b16 %v718, %v717
      %v729 = vpack.c.b16 %v720, %v719
      %v730 = vpack.c.b16 %v722, %v721
      %739 = vmatpush.bf16.msra.mxu0 %v730
      %740 = vmatpush.bf16.msra.mxu0 %v729
      %741 = vmatpush.bf16.msra.mxu0 %v728
      %742 = vmatpush.bf16.msra.mxu0 %v727
      %743 = vmatpush.bf16.msra.mxu0 %v726
      %744 = vmatpush.bf16.msra.mxu0 %v725
      %745 = vmatpush.bf16.msra.mxu0 %v724
      %746 = vmatpush.bf16.msra.mxu0 %v723
      %747 = vmatmul.bf16.gmra.mxu0 %v619
      %v748 = vpop.f32.mrf.mxu0
      %v749 = vadd.f32 %v560, %v748
      %v750 = vpop.f32.mrf.mxu0
      %v751 = vadd.f32 %v562, %v750
      %752 = vmatmul.bf16.gmra.mxu0 %v628
      %v753 = vpop.f32.mrf.mxu0
      %v754 = vadd.f32 %v565, %v753
      %v755 = vpop.f32.mrf.mxu0
      %v756 = vadd.f32 %v567, %v755
      %757 = vmatmul.bf16.gmra.mxu0 %v637
      %v758 = vpop.f32.mrf.mxu0
      %v759 = vadd.f32 %v570, %v758
      %v760 = vpop.f32.mrf.mxu0
      %v761 = vadd.f32 %v572, %v760
      %762 = vmatmul.bf16.gmra.mxu0 %v646
      %v763 = vpop.f32.mrf.mxu0
      %v764 = vadd.f32 %v575, %v763
      %v765 = vpop.f32.mrf.mxu0
      %v766 = vadd.f32 %v577, %v765
      %767 = vmatmul.bf16.gmra.mxu0 %v655
      %v768 = vpop.f32.mrf.mxu0
      %v769 = vadd.f32 %v580, %v768
      %v770 = vpop.f32.mrf.mxu0
      %v771 = vadd.f32 %v582, %v770
      %772 = vmatmul.bf16.gmra.mxu0 %v664
      %v773 = vpop.f32.mrf.mxu0
      %v774 = vadd.f32 %v585, %v773
      %v775 = vpop.f32.mrf.mxu0
      %v776 = vadd.f32 %v587, %v775
      %777 = vmatmul.bf16.gmra.mxu0 %v673
      %v778 = vpop.f32.mrf.mxu0
      %v779 = vadd.f32 %v590, %v778
      %v780 = vpop.f32.mrf.mxu0
      %v781 = vadd.f32 %v592, %v780
      %782 = vmatmul.bf16.gmra.mxu0 %v682
      %v783 = vpop.f32.mrf.mxu0
      %v784 = vadd.f32 %v595, %v783
      %v785 = vpop.f32.mrf.mxu0
      %v786 = vadd.f32 %v597, %v785
      %787 = vdwg.mxu0
      %v788 = vld [vmem:[%s376 + $0x40] sm:$0xf]
      %s789 = scalar_lea.vmem %s1, 128
      %v790 = vld [vmem:[%s789] sm:$0xf]
      %v791 = vld [vmem:[%s789 + $0x4] sm:$0xf]
      %v792 = vld [vmem:[%s789 + $0x8] sm:$0xf]
      %v793 = vld [vmem:[%s789 + $0xc] sm:$0xf]
      %v794 = vld [vmem:[%s789 + $0x10] sm:$0xf]
      %v795 = vld [vmem:[%s789 + $0x14] sm:$0xf]
      %v796 = vld [vmem:[%s789 + $0x18] sm:$0xf]
      %v797 = vld [vmem:[%s789 + $0x1c] sm:$0xf]
      %v798 = vld [vmem:[%s789 + $0x20] sm:$0xf]
      %v799 = vld [vmem:[%s789 + $0x24] sm:$0xf]
      %v800 = vld [vmem:[%s789 + $0x28] sm:$0xf]
      %v801 = vld [vmem:[%s789 + $0x2c] sm:$0xf]
      %v802 = vld [vmem:[%s789 + $0x30] sm:$0xf]
      %v803 = vld [vmem:[%s789 + $0x34] sm:$0xf]
      %v804 = vld [vmem:[%s789 + $0x38] sm:$0xf]
      %v805 = vld [vmem:[%s789 + $0x3c] sm:$0xf]
      %v807 = vunpack.c.l.b16 %v788
      %v808 = vpack.c.b16 %v807, %v807
      %vm809 = vsmask.f32 4352
      %v811 = vshrl.u32 %v467, 16
      %v813 = vrot.slane %v811, 3
      %v814 = vshll.u32 %v467, 16
      %v816 = vrot.slane %v814, 4
      %v817 = vor.u32 %v813, %v816
      %v818 = vrot.slane %v612, 3
      %v819 = vrot.slane %v615, 4
      %v820 = vor.u32 %v818, %v819
      %v821 = vsel %vm809, %v817, %v820
      %v822 = vrot.slane %v621, 3
      %v823 = vrot.slane %v624, 4
      %v824 = vor.u32 %v822, %v823
      %v825 = vsel %vm809, %v820, %v824
      %v826 = vrot.slane %v630, 3
      %v827 = vrot.slane %v633, 4
      %v828 = vor.u32 %v826, %v827
      %v829 = vsel %vm809, %v824, %v828
      %v830 = vrot.slane %v639, 3
      %v831 = vrot.slane %v642, 4
      %v832 = vor.u32 %v830, %v831
      %v833 = vsel %vm809, %v828, %v832
      %v834 = vrot.slane %v648, 3
      %v835 = vrot.slane %v651, 4
      %v836 = vor.u32 %v834, %v835
      %v837 = vsel %vm809, %v832, %v836
      %v838 = vrot.slane %v657, 3
      %v839 = vrot.slane %v660, 4
      %v840 = vor.u32 %v838, %v839
      %v841 = vsel %vm809, %v836, %v840
      %v842 = vrot.slane %v666, 3
      %v843 = vrot.slane %v669, 4
      %v844 = vor.u32 %v842, %v843
      %v845 = vsel %vm809, %v840, %v844
      %v847 = vshrl.u32 %v808, 16
      %v849 = vrot.slane %v847, 3
      %v850 = vshll.u32 %v808, 16
      %v852 = vrot.slane %v850, 4
      %v853 = vor.u32 %v849, %v852
      %v854 = vsel %vm809, %v844, %v853
      %v879 = vunpack.c.l.b16 %v790
      %v880 = vunpack.c.l.b16 %v791
      %v881 = vunpack.c.l.b16 %v792
      %v882 = vunpack.c.l.b16 %v793
      %v883 = vunpack.c.l.b16 %v794
      %v884 = vunpack.c.l.b16 %v795
      %v885 = vunpack.c.l.b16 %v796
      %v886 = vunpack.c.l.b16 %v797
      %v887 = vunpack.c.l.b16 %v798
      %v888 = vunpack.c.l.b16 %v799
      %v889 = vunpack.c.l.b16 %v800
      %v890 = vunpack.c.l.b16 %v801
      %v891 = vunpack.c.l.b16 %v802
      %v892 = vunpack.c.l.b16 %v803
      %v893 = vunpack.c.l.b16 %v804
      %v894 = vunpack.c.l.b16 %v805
      %v895 = vpack.c.b16 %v880, %v879
      %v896 = vpack.c.b16 %v882, %v881
      %v897 = vpack.c.b16 %v884, %v883
      %v898 = vpack.c.b16 %v886, %v885
      %v899 = vpack.c.b16 %v888, %v887
      %v900 = vpack.c.b16 %v890, %v889
      %v901 = vpack.c.b16 %v892, %v891
      %v902 = vpack.c.b16 %v894, %v893
      %911 = vmatpush.bf16.msra.mxu0 %v902
      %912 = vmatpush.bf16.msra.mxu0 %v901
      %913 = vmatpush.bf16.msra.mxu0 %v900
      %914 = vmatpush.bf16.msra.mxu0 %v899
      %915 = vmatpush.bf16.msra.mxu0 %v898
      %916 = vmatpush.bf16.msra.mxu0 %v897
      %917 = vmatpush.bf16.msra.mxu0 %v896
      %918 = vmatpush.bf16.msra.mxu0 %v895
      %919 = vmatmul.bf16.gmra.mxu0 %v821
      %v920 = vpop.f32.mrf.mxu0
      %v921 = vadd.f32 0.0, %v920
      %v922 = vpop.f32.mrf.mxu0
      %v923 = vadd.f32 0.0, %v922
      %924 = vmatmul.bf16.gmra.mxu0 %v825
      %v925 = vpop.f32.mrf.mxu0
      %v926 = vadd.f32 0.0, %v925
      %v927 = vpop.f32.mrf.mxu0
      %v928 = vadd.f32 0.0, %v927
      %929 = vmatmul.bf16.gmra.mxu0 %v829
      %v930 = vpop.f32.mrf.mxu0
      %v931 = vadd.f32 0.0, %v930
      %v932 = vpop.f32.mrf.mxu0
      %v933 = vadd.f32 0.0, %v932
      %934 = vmatmul.bf16.gmra.mxu0 %v833
      %v935 = vpop.f32.mrf.mxu0
      %v936 = vadd.f32 0.0, %v935
      %v937 = vpop.f32.mrf.mxu0
      %v938 = vadd.f32 0.0, %v937
      %939 = vmatmul.bf16.gmra.mxu0 %v837
      %v940 = vpop.f32.mrf.mxu0
      %v941 = vadd.f32 0.0, %v940
      %v942 = vpop.f32.mrf.mxu0
      %v943 = vadd.f32 0.0, %v942
      %944 = vmatmul.bf16.gmra.mxu0 %v841
      %v945 = vpop.f32.mrf.mxu0
      %v946 = vadd.f32 0.0, %v945
      %v947 = vpop.f32.mrf.mxu0
      %v948 = vadd.f32 0.0, %v947
      %949 = vmatmul.bf16.gmra.mxu0 %v845
      %v950 = vpop.f32.mrf.mxu0
      %v951 = vadd.f32 0.0, %v950
      %v952 = vpop.f32.mrf.mxu0
      %v953 = vadd.f32 0.0, %v952
      %954 = vmatmul.bf16.gmra.mxu0 %v854
      %v955 = vpop.f32.mrf.mxu0
      %v956 = vadd.f32 0.0, %v955
      %v957 = vpop.f32.mrf.mxu0
      %v958 = vadd.f32 0.0, %v957
      %959 = vdwg.mxu0
      %v960 = vadd.f32 %v749, %v921
      %v961 = vadd.f32 %v751, %v923
      %v962 = vadd.f32 %v754, %v926
      %v963 = vadd.f32 %v756, %v928
      %v964 = vadd.f32 %v759, %v931
      %v965 = vadd.f32 %v761, %v933
      %v966 = vadd.f32 %v764, %v936
      %v967 = vadd.f32 %v766, %v938
      %v968 = vadd.f32 %v769, %v941
      %v969 = vadd.f32 %v771, %v943
      %v970 = vadd.f32 %v774, %v946
      %v971 = vadd.f32 %v776, %v948
      %v972 = vadd.f32 %v779, %v951
      %v973 = vadd.f32 %v781, %v953
      %v974 = vadd.f32 %v784, %v956
      %v975 = vadd.f32 %v786, %v958
      %v976 = vld [vmem:[%s376 + $0x8] sm:$0x8]
      %v977 = vld [vmem:[%s376 + $0xc] sm:$0xf]
      %v978 = vld [vmem:[%s376 + $0x10] sm:$0xf]
      %v979 = vld [vmem:[%s376 + $0x14] sm:$0xf]
      %v980 = vld [vmem:[%s376 + $0x18] sm:$0xf]
      %v981 = vld [vmem:[%s376 + $0x1c] sm:$0xf]
      %v982 = vld [vmem:[%s376 + $0x20] sm:$0xf]
      %v983 = vld [vmem:[%s376 + $0x24] sm:$0xf]
      %v984 = vld [vmem:[%s376 + $0x28] sm:$0xf]
      %v985 = vld [vmem:[%s376 + $0x2c] sm:$0xf]
      %v986 = vld [vmem:[%s376 + $0x30] sm:$0xf]
      %v987 = vld [vmem:[%s376 + $0x34] sm:$0xf]
      %v988 = vld [vmem:[%s376 + $0x38] sm:$0xf]
      %v989 = vld [vmem:[%s376 + $0x3c] sm:$0xf]
      %v990 = vld [vmem:[%s376 + $0x40] sm:$0xf]
      %v991 = vld [vmem:[%s376 + $0x44] sm:$0xf]
      %v992 = vld [vmem:[%s376 + $0x48] sm:$0xf]
      %s993 = scalar_lea.vmem %s1, 192
      %v994 = vld [vmem:[%s993] sm:$0xf]
      %v995 = vld [vmem:[%s993 + $0x4] sm:$0xf]
      %v996 = vld [vmem:[%s993 + $0x8] sm:$0xf]
      %v997 = vld [vmem:[%s993 + $0xc] sm:$0xf]
      %v998 = vld [vmem:[%s993 + $0x10] sm:$0xf]
      %v999 = vld [vmem:[%s993 + $0x14] sm:$0xf]
      %v1000 = vld [vmem:[%s993 + $0x18] sm:$0xf]
      %v1001 = vld [vmem:[%s993 + $0x1c] sm:$0xf]
      %v1002 = vld [vmem:[%s993 + $0x20] sm:$0xf]
      %v1003 = vld [vmem:[%s993 + $0x24] sm:$0xf]
      %v1004 = vld [vmem:[%s993 + $0x28] sm:$0xf]
      %v1005 = vld [vmem:[%s993 + $0x2c] sm:$0xf]
      %v1006 = vld [vmem:[%s993 + $0x30] sm:$0xf]
      %v1007 = vld [vmem:[%s993 + $0x34] sm:$0xf]
      %v1008 = vld [vmem:[%s993 + $0x38] sm:$0xf]
      %v1009 = vld [vmem:[%s993 + $0x3c] sm:$0xf]
      %v1027 = vunpack.c.l.b16 %v976
      %v1028 = vunpack.c.l.b16 %v977
      %v1029 = vunpack.c.l.b16 %v978
      %v1030 = vunpack.c.l.b16 %v979
      %v1031 = vunpack.c.l.b16 %v980
      %v1032 = vunpack.c.l.b16 %v981
      %v1033 = vunpack.c.l.b16 %v982
      %v1034 = vunpack.c.l.b16 %v983
      %v1035 = vunpack.c.l.b16 %v984
      %v1036 = vunpack.c.l.b16 %v985
      %v1037 = vunpack.c.l.b16 %v986
      %v1038 = vunpack.c.l.b16 %v987
      %v1039 = vunpack.c.l.b16 %v988
      %v1040 = vunpack.c.l.b16 %v989
      %v1041 = vunpack.c.l.b16 %v990
      %v1042 = vunpack.c.l.b16 %v991
      %v1043 = vunpack.c.l.b16 %v992
      %v1044 = vpack.c.b16 %v1028, %v1027
      %v1045 = vpack.c.b16 %v1030, %v1029
      %v1046 = vpack.c.b16 %v1032, %v1031
      %v1047 = vpack.c.b16 %v1034, %v1033
      %v1048 = vpack.c.b16 %v1036, %v1035
      %v1049 = vpack.c.b16 %v1038, %v1037
      %v1050 = vpack.c.b16 %v1040, %v1039
      %v1051 = vpack.c.b16 %v1042, %v1041
      %v1052 = vpack.c.b16 %v1043, %v1043
      %v1054 = vshrl.u32 %v1044, 16
      %v1056 = vrot.slane %v1054, 3
      %v1057 = vshll.u32 %v1044, 16
      %v1059 = vrot.slane %v1057, 4
      %v1060 = vor.u32 %v1056, %v1059
      %v1062 = vshrl.u32 %v1045, 16
      %v1064 = vrot.slane %v1062, 3
      %v1065 = vshll.u32 %v1045, 16
      %v1067 = vrot.slane %v1065, 4
      %v1068 = vor.u32 %v1064, %v1067
      %v1069 = vsel %vm809, %v1060, %v1068
      %v1071 = vshrl.u32 %v1046, 16
      %v1073 = vrot.slane %v1071, 3
      %v1074 = vshll.u32 %v1046, 16
      %v1076 = vrot.slane %v1074, 4
      %v1077 = vor.u32 %v1073, %v1076
      %v1078 = vsel %vm809, %v1068, %v1077
      %v1080 = vshrl.u32 %v1047, 16
      %v1082 = vrot.slane %v1080, 3
      %v1083 = vshll.u32 %v1047, 16
      %v1085 = vrot.slane %v1083, 4
      %v1086 = vor.u32 %v1082, %v1085
      %v1087 = vsel %vm809, %v1077, %v1086
      %v1089 = vshrl.u32 %v1048, 16
      %v1091 = vrot.slane %v1089, 3
      %v1092 = vshll.u32 %v1048, 16
      %v1094 = vrot.slane %v1092, 4
      %v1095 = vor.u32 %v1091, %v1094
      %v1096 = vsel %vm809, %v1086, %v1095
      %v1098 = vshrl.u32 %v1049, 16
      %v1100 = vrot.slane %v1098, 3
      %v1101 = vshll.u32 %v1049, 16
      %v1103 = vrot.slane %v1101, 4
      %v1104 = vor.u32 %v1100, %v1103
      %v1105 = vsel %vm809, %v1095, %v1104
      %v1107 = vshrl.u32 %v1050, 16
      %v1109 = vrot.slane %v1107, 3
      %v1110 = vshll.u32 %v1050, 16
      %v1112 = vrot.slane %v1110, 4
      %v1113 = vor.u32 %v1109, %v1112
      %v1114 = vsel %vm809, %v1104, %v1113
      %v1116 = vshrl.u32 %v1051, 16
      %v1118 = vrot.slane %v1116, 3
      %v1119 = vshll.u32 %v1051, 16
      %v1121 = vrot.slane %v1119, 4
      %v1122 = vor.u32 %v1118, %v1121
      %v1123 = vsel %vm809, %v1113, %v1122
      %v1125 = vshrl.u32 %v1052, 16
      %v1127 = vrot.slane %v1125, 3
      %v1128 = vshll.u32 %v1052, 16
      %v1130 = vrot.slane %v1128, 4
      %v1131 = vor.u32 %v1127, %v1130
      %v1132 = vsel %vm809, %v1122, %v1131
      %v1157 = vunpack.c.l.b16 %v994
      %v1158 = vunpack.c.l.b16 %v995
      %v1159 = vunpack.c.l.b16 %v996
      %v1160 = vunpack.c.l.b16 %v997
      %v1161 = vunpack.c.l.b16 %v998
      %v1162 = vunpack.c.l.b16 %v999
      %v1163 = vunpack.c.l.b16 %v1000
      %v1164 = vunpack.c.l.b16 %v1001
      %v1165 = vunpack.c.l.b16 %v1002
      %v1166 = vunpack.c.l.b16 %v1003
      %v1167 = vunpack.c.l.b16 %v1004
      %v1168 = vunpack.c.l.b16 %v1005
      %v1169 = vunpack.c.l.b16 %v1006
      %v1170 = vunpack.c.l.b16 %v1007
      %v1171 = vunpack.c.l.b16 %v1008
      %v1172 = vunpack.c.l.b16 %v1009
      %v1173 = vpack.c.b16 %v1158, %v1157
      %v1174 = vpack.c.b16 %v1160, %v1159
      %v1175 = vpack.c.b16 %v1162, %v1161
      %v1176 = vpack.c.b16 %v1164, %v1163
      %v1177 = vpack.c.b16 %v1166, %v1165
      %v1178 = vpack.c.b16 %v1168, %v1167
      %v1179 = vpack.c.b16 %v1170, %v1169
      %v1180 = vpack.c.b16 %v1172, %v1171
      %1189 = vmatpush.bf16.msra.mxu0 %v1180
      %1190 = vmatpush.bf16.msra.mxu0 %v1179
      %1191 = vmatpush.bf16.msra.mxu0 %v1178
      %1192 = vmatpush.bf16.msra.mxu0 %v1177
      %1193 = vmatpush.bf16.msra.mxu0 %v1176
      %1194 = vmatpush.bf16.msra.mxu0 %v1175
      %1195 = vmatpush.bf16.msra.mxu0 %v1174
      %1196 = vmatpush.bf16.msra.mxu0 %v1173
      %1197 = vmatmul.bf16.gmra.mxu0 %v1069
      %v1198 = vpop.f32.mrf.mxu0
      %v1199 = vadd.f32 0.0, %v1198
      %v1200 = vpop.f32.mrf.mxu0
      %v1201 = vadd.f32 0.0, %v1200
      %1202 = vmatmul.bf16.gmra.mxu0 %v1078
      %v1203 = vpop.f32.mrf.mxu0
      %v1204 = vadd.f32 0.0, %v1203
      %v1205 = vpop.f32.mrf.mxu0
      %v1206 = vadd.f32 0.0, %v1205
      %1207 = vmatmul.bf16.gmra.mxu0 %v1087
      %v1208 = vpop.f32.mrf.mxu0
      %v1209 = vadd.f32 0.0, %v1208
      %v1210 = vpop.f32.mrf.mxu0
      %v1211 = vadd.f32 0.0, %v1210
      %1212 = vmatmul.bf16.gmra.mxu0 %v1096
      %v1213 = vpop.f32.mrf.mxu0
      %v1214 = vadd.f32 0.0, %v1213
      %v1215 = vpop.f32.mrf.mxu0
      %v1216 = vadd.f32 0.0, %v1215
      %1217 = vmatmul.bf16.gmra.mxu0 %v1105
      %v1218 = vpop.f32.mrf.mxu0
      %v1219 = vadd.f32 0.0, %v1218
      %v1220 = vpop.f32.mrf.mxu0
      %v1221 = vadd.f32 0.0, %v1220
      %1222 = vmatmul.bf16.gmra.mxu0 %v1114
      %v1223 = vpop.f32.mrf.mxu0
      %v1224 = vadd.f32 0.0, %v1223
      %v1225 = vpop.f32.mrf.mxu0
      %v1226 = vadd.f32 0.0, %v1225
      %1227 = vmatmul.bf16.gmra.mxu0 %v1123
      %v1228 = vpop.f32.mrf.mxu0
      %v1229 = vadd.f32 0.0, %v1228
      %v1230 = vpop.f32.mrf.mxu0
      %v1231 = vadd.f32 0.0, %v1230
      %1232 = vmatmul.bf16.gmra.mxu0 %v1132
      %v1233 = vpop.f32.mrf.mxu0
      %v1234 = vadd.f32 0.0, %v1233
      %v1235 = vpop.f32.mrf.mxu0
      %v1236 = vadd.f32 0.0, %v1235
      %1237 = vdwg.mxu0
      %v1238 = vadd.f32 %v960, %v1199
      %v1239 = vadd.f32 %v961, %v1201
      %v1240 = vadd.f32 %v962, %v1204
      %v1241 = vadd.f32 %v963, %v1206
      %v1242 = vadd.f32 %v964, %v1209
      %v1243 = vadd.f32 %v965, %v1211
      %v1244 = vadd.f32 %v966, %v1214
      %v1245 = vadd.f32 %v967, %v1216
      %v1246 = vadd.f32 %v968, %v1219
      %v1247 = vadd.f32 %v969, %v1221
      %v1248 = vadd.f32 %v970, %v1224
      %v1249 = vadd.f32 %v971, %v1226
      %v1250 = vadd.f32 %v972, %v1229
      %v1251 = vadd.f32 %v973, %v1231
      %v1252 = vadd.f32 %v974, %v1234
      %v1253 = vadd.f32 %v975, %v1236
      %s1254 = scalar_lea.vmem %s1, 256
      %v1255 = vld [vmem:[%s1254] sm:$0xf]
      %v1256 = vld [vmem:[%s1254 + $0x4] sm:$0xf]
      %v1257 = vld [vmem:[%s1254 + $0x8] sm:$0xf]
      %v1258 = vld [vmem:[%s1254 + $0xc] sm:$0xf]
      %v1259 = vld [vmem:[%s1254 + $0x10] sm:$0xf]
      %v1260 = vld [vmem:[%s1254 + $0x14] sm:$0xf]
      %v1261 = vld [vmem:[%s1254 + $0x18] sm:$0xf]
      %v1262 = vld [vmem:[%s1254 + $0x1c] sm:$0xf]
      %v1263 = vld [vmem:[%s1254 + $0x20] sm:$0xf]
      %v1264 = vld [vmem:[%s1254 + $0x24] sm:$0xf]
      %v1265 = vld [vmem:[%s1254 + $0x28] sm:$0xf]
      %v1266 = vld [vmem:[%s1254 + $0x2c] sm:$0xf]
      %v1267 = vld [vmem:[%s1254 + $0x30] sm:$0xf]
      %v1268 = vld [vmem:[%s1254 + $0x34] sm:$0xf]
      %v1269 = vld [vmem:[%s1254 + $0x38] sm:$0xf]
      %v1270 = vld [vmem:[%s1254 + $0x3c] sm:$0xf]
      %v1271 = vpack.c.b16 %v1029, %v1028
      %v1272 = vpack.c.b16 %v1031, %v1030
      %v1273 = vpack.c.b16 %v1033, %v1032
      %v1274 = vpack.c.b16 %v1035, %v1034
      %v1275 = vpack.c.b16 %v1037, %v1036
      %v1276 = vpack.c.b16 %v1039, %v1038
      %v1277 = vpack.c.b16 %v1041, %v1040
      %v1278 = vpack.c.b16 %v1043, %v1042
      %v1303 = vunpack.c.l.b16 %v1255
      %v1304 = vunpack.c.l.b16 %v1256
      %v1305 = vunpack.c.l.b16 %v1257
      %v1306 = vunpack.c.l.b16 %v1258
      %v1307 = vunpack.c.l.b16 %v1259
      %v1308 = vunpack.c.l.b16 %v1260
      %v1309 = vunpack.c.l.b16 %v1261
      %v1310 = vunpack.c.l.b16 %v1262
      %v1311 = vunpack.c.l.b16 %v1263
      %v1312 = vunpack.c.l.b16 %v1264
      %v1313 = vunpack.c.l.b16 %v1265
      %v1314 = vunpack.c.l.b16 %v1266
      %v1315 = vunpack.c.l.b16 %v1267
      %v1316 = vunpack.c.l.b16 %v1268
      %v1317 = vunpack.c.l.b16 %v1269
      %v1318 = vunpack.c.l.b16 %v1270
      %v1319 = vpack.c.b16 %v1304, %v1303
      %v1320 = vpack.c.b16 %v1306, %v1305
      %v1321 = vpack.c.b16 %v1308, %v1307
      %v1322 = vpack.c.b16 %v1310, %v1309
      %v1323 = vpack.c.b16 %v1312, %v1311
      %v1324 = vpack.c.b16 %v1314, %v1313
      %v1325 = vpack.c.b16 %v1316, %v1315
      %v1326 = vpack.c.b16 %v1318, %v1317
      %1335 = vmatpush.bf16.msra.mxu0 %v1326
      %1336 = vmatpush.bf16.msra.mxu0 %v1325
      %1337 = vmatpush.bf16.msra.mxu0 %v1324
      %1338 = vmatpush.bf16.msra.mxu0 %v1323
      %1339 = vmatpush.bf16.msra.mxu0 %v1322
      %1340 = vmatpush.bf16.msra.mxu0 %v1321
      %1341 = vmatpush.bf16.msra.mxu0 %v1320
      %1342 = vmatpush.bf16.msra.mxu0 %v1319
      %1343 = vmatmul.bf16.gmra.mxu0 %v1271
      %v1344 = vpop.f32.mrf.mxu0
      %v1345 = vadd.f32 0.0, %v1344
      %v1346 = vpop.f32.mrf.mxu0
      %v1347 = vadd.f32 0.0, %v1346
      %1348 = vmatmul.bf16.gmra.mxu0 %v1272
      %v1349 = vpop.f32.mrf.mxu0
      %v1350 = vadd.f32 0.0, %v1349
      %v1351 = vpop.f32.mrf.mxu0
      %v1352 = vadd.f32 0.0, %v1351
      %1353 = vmatmul.bf16.gmra.mxu0 %v1273
      %v1354 = vpop.f32.mrf.mxu0
      %v1355 = vadd.f32 0.0, %v1354
      %v1356 = vpop.f32.mrf.mxu0
      %v1357 = vadd.f32 0.0, %v1356
      %1358 = vmatmul.bf16.gmra.mxu0 %v1274
      %v1359 = vpop.f32.mrf.mxu0
      %v1360 = vadd.f32 0.0, %v1359
      %v1361 = vpop.f32.mrf.mxu0
      %v1362 = vadd.f32 0.0, %v1361
      %1363 = vmatmul.bf16.gmra.mxu0 %v1275
      %v1364 = vpop.f32.mrf.mxu0
      %v1365 = vadd.f32 0.0, %v1364
      %v1366 = vpop.f32.mrf.mxu0
      %v1367 = vadd.f32 0.0, %v1366
      %1368 = vmatmul.bf16.gmra.mxu0 %v1276
      %v1369 = vpop.f32.mrf.mxu0
      %v1370 = vadd.f32 0.0, %v1369
      %v1371 = vpop.f32.mrf.mxu0
      %v1372 = vadd.f32 0.0, %v1371
      %1373 = vmatmul.bf16.gmra.mxu0 %v1277
      %v1374 = vpop.f32.mrf.mxu0
      %v1375 = vadd.f32 0.0, %v1374
      %v1376 = vpop.f32.mrf.mxu0
      %v1377 = vadd.f32 0.0, %v1376
      %1378 = vmatmul.bf16.gmra.mxu0 %v1278
      %v1379 = vpop.f32.mrf.mxu0
      %v1380 = vadd.f32 0.0, %v1379
      %v1381 = vpop.f32.mrf.mxu0
      %v1382 = vadd.f32 0.0, %v1381
      %1383 = vdwg.mxu0
      %v1384 = vadd.f32 %v1238, %v1345
      %v1385 = vadd.f32 %v1239, %v1347
      %v1386 = vadd.f32 %v1240, %v1350
      %v1387 = vadd.f32 %v1241, %v1352
      %v1388 = vadd.f32 %v1242, %v1355
      %v1389 = vadd.f32 %v1243, %v1357
      %v1390 = vadd.f32 %v1244, %v1360
      %v1391 = vadd.f32 %v1245, %v1362
      %v1392 = vadd.f32 %v1246, %v1365
      %v1393 = vadd.f32 %v1247, %v1367
      %v1394 = vadd.f32 %v1248, %v1370
      %v1395 = vadd.f32 %v1249, %v1372
      %v1396 = vadd.f32 %v1250, %v1375
      %v1397 = vadd.f32 %v1251, %v1377
      %v1398 = vadd.f32 %v1252, %v1380
      %v1399 = vadd.f32 %v1253, %v1382
      %v1400 = vld [vmem:[%s376 + $0xc] sm:$0xf]
      %v1401 = vld [vmem:[%s376 + $0x10] sm:$0xf]
      %v1402 = vld [vmem:[%s376 + $0x14] sm:$0xf]
      %v1403 = vld [vmem:[%s376 + $0x18] sm:$0xf]
      %v1404 = vld [vmem:[%s376 + $0x1c] sm:$0xf]
      %v1405 = vld [vmem:[%s376 + $0x20] sm:$0xf]
      %v1406 = vld [vmem:[%s376 + $0x24] sm:$0xf]
      %v1407 = vld [vmem:[%s376 + $0x28] sm:$0xf]
      %v1408 = vld [vmem:[%s376 + $0x2c] sm:$0xf]
      %v1409 = vld [vmem:[%s376 + $0x30] sm:$0xf]
      %v1410 = vld [vmem:[%s376 + $0x34] sm:$0xf]
      %v1411 = vld [vmem:[%s376 + $0x38] sm:$0xf]
      %v1412 = vld [vmem:[%s376 + $0x3c] sm:$0xf]
      %v1413 = vld [vmem:[%s376 + $0x40] sm:$0xf]
      %v1414 = vld [vmem:[%s376 + $0x44] sm:$0xf]
      %v1415 = vld [vmem:[%s376 + $0x48] sm:$0xf]
      %v1416 = vld [vmem:[%s376 + $0x4c] sm:$0x1]
      %s1417 = scalar_lea.vmem %s1, 320
      %v1418 = vld [vmem:[%s1417] sm:$0xf]
      %v1419 = vld [vmem:[%s1417 + $0x4] sm:$0xf]
      %v1420 = vld [vmem:[%s1417 + $0x8] sm:$0xf]
      %v1421 = vld [vmem:[%s1417 + $0xc] sm:$0xf]
      %v1422 = vld [vmem:[%s1417 + $0x10] sm:$0xf]
      %v1423 = vld [vmem:[%s1417 + $0x14] sm:$0xf]
      %v1424 = vld [vmem:[%s1417 + $0x18] sm:$0xf]
      %v1425 = vld [vmem:[%s1417 + $0x1c] sm:$0xf]
      %v1426 = vld [vmem:[%s1417 + $0x20] sm:$0xf]
      %v1427 = vld [vmem:[%s1417 + $0x24] sm:$0xf]
      %v1428 = vld [vmem:[%s1417 + $0x28] sm:$0xf]
      %v1429 = vld [vmem:[%s1417 + $0x2c] sm:$0xf]
      %v1430 = vld [vmem:[%s1417 + $0x30] sm:$0xf]
      %v1431 = vld [vmem:[%s1417 + $0x34] sm:$0xf]
      %v1432 = vld [vmem:[%s1417 + $0x38] sm:$0xf]
      %v1433 = vld [vmem:[%s1417 + $0x3c] sm:$0xf]
      %v1451 = vunpack.c.l.b16 %v1400
      %v1452 = vunpack.c.l.b16 %v1401
      %v1453 = vunpack.c.l.b16 %v1402
      %v1454 = vunpack.c.l.b16 %v1403
      %v1455 = vunpack.c.l.b16 %v1404
      %v1456 = vunpack.c.l.b16 %v1405
      %v1457 = vunpack.c.l.b16 %v1406
      %v1458 = vunpack.c.l.b16 %v1407
      %v1459 = vunpack.c.l.b16 %v1408
      %v1460 = vunpack.c.l.b16 %v1409
      %v1461 = vunpack.c.l.b16 %v1410
      %v1462 = vunpack.c.l.b16 %v1411
      %v1463 = vunpack.c.l.b16 %v1412
      %v1464 = vunpack.c.l.b16 %v1413
      %v1465 = vunpack.c.l.b16 %v1414
      %v1466 = vunpack.c.l.b16 %v1415
      %v1467 = vunpack.c.l.b16 %v1416
      %v1468 = vpack.c.b16 %v1452, %v1451
      %v1469 = vpack.c.b16 %v1454, %v1453
      %v1470 = vpack.c.b16 %v1456, %v1455
      %v1471 = vpack.c.b16 %v1458, %v1457
      %v1472 = vpack.c.b16 %v1460, %v1459
      %v1473 = vpack.c.b16 %v1462, %v1461
      %v1474 = vpack.c.b16 %v1464, %v1463
      %v1475 = vpack.c.b16 %v1466, %v1465
      %v1476 = vpack.c.b16 %v1467, %v1467
      %vm1477 = vsmask.f32 7424
      %v1479 = vshrl.u32 %v1468, 16
      %v1481 = vshll.u32 %v1468, 16
      %v1483 = vrot.slane %v1481, 1
      %v1484 = vor.u32 %v1479, %v1483
      %v1486 = vshll.u32 %v1469, 16
      %v1488 = vrot.slane %v1486, 1
      %v1489 = vsel %vm1477, %v1484, %v1488
      %v1490 = vshrl.u32 %v1469, 16
      %v1492 = vor.u32 %v1490, %v1488
      %v1494 = vshll.u32 %v1470, 16
      %v1496 = vrot.slane %v1494, 1
      %v1497 = vsel %vm1477, %v1492, %v1496
      %v1498 = vshrl.u32 %v1470, 16
      %v1500 = vor.u32 %v1498, %v1496
      %v1502 = vshll.u32 %v1471, 16
      %v1504 = vrot.slane %v1502, 1
      %v1505 = vsel %vm1477, %v1500, %v1504
      %v1506 = vshrl.u32 %v1471, 16
      %v1508 = vor.u32 %v1506, %v1504
      %v1510 = vshll.u32 %v1472, 16
      %v1512 = vrot.slane %v1510, 1
      %v1513 = vsel %vm1477, %v1508, %v1512
      %v1514 = vshrl.u32 %v1472, 16
      %v1516 = vor.u32 %v1514, %v1512
      %v1518 = vshll.u32 %v1473, 16
      %v1520 = vrot.slane %v1518, 1
      %v1521 = vsel %vm1477, %v1516, %v1520
      %v1522 = vshrl.u32 %v1473, 16
      %v1524 = vor.u32 %v1522, %v1520
      %v1526 = vshll.u32 %v1474, 16
      %v1528 = vrot.slane %v1526, 1
      %v1529 = vsel %vm1477, %v1524, %v1528
      %v1530 = vshrl.u32 %v1474, 16
      %v1532 = vor.u32 %v1530, %v1528
      %v1534 = vshll.u32 %v1475, 16
      %v1536 = vrot.slane %v1534, 1
      %v1537 = vsel %vm1477, %v1532, %v1536
      %v1538 = vshrl.u32 %v1475, 16
      %v1540 = vor.u32 %v1538, %v1536
      %v1542 = vshll.u32 %v1476, 16
      %v1544 = vrot.slane %v1542, 1
      %v1545 = vsel %vm1477, %v1540, %v1544
      %v1570 = vunpack.c.l.b16 %v1418
      %v1571 = vunpack.c.l.b16 %v1419
      %v1572 = vunpack.c.l.b16 %v1420
      %v1573 = vunpack.c.l.b16 %v1421
      %v1574 = vunpack.c.l.b16 %v1422
      %v1575 = vunpack.c.l.b16 %v1423
      %v1576 = vunpack.c.l.b16 %v1424
      %v1577 = vunpack.c.l.b16 %v1425
      %v1578 = vunpack.c.l.b16 %v1426
      %v1579 = vunpack.c.l.b16 %v1427
      %v1580 = vunpack.c.l.b16 %v1428
      %v1581 = vunpack.c.l.b16 %v1429
      %v1582 = vunpack.c.l.b16 %v1430
      %v1583 = vunpack.c.l.b16 %v1431
      %v1584 = vunpack.c.l.b16 %v1432
      %v1585 = vunpack.c.l.b16 %v1433
      %v1586 = vpack.c.b16 %v1571, %v1570
      %v1587 = vpack.c.b16 %v1573, %v1572
      %v1588 = vpack.c.b16 %v1575, %v1574
      %v1589 = vpack.c.b16 %v1577, %v1576
      %v1590 = vpack.c.b16 %v1579, %v1578
      %v1591 = vpack.c.b16 %v1581, %v1580
      %v1592 = vpack.c.b16 %v1583, %v1582
      %v1593 = vpack.c.b16 %v1585, %v1584
      %1602 = vmatpush.bf16.msra.mxu0 %v1593
      %1603 = vmatpush.bf16.msra.mxu0 %v1592
      %1604 = vmatpush.bf16.msra.mxu0 %v1591
      %1605 = vmatpush.bf16.msra.mxu0 %v1590
      %1606 = vmatpush.bf16.msra.mxu0 %v1589
      %1607 = vmatpush.bf16.msra.mxu0 %v1588
      %1608 = vmatpush.bf16.msra.mxu0 %v1587
      %1609 = vmatpush.bf16.msra.mxu0 %v1586
      %1610 = vmatmul.bf16.gmra.mxu0 %v1489
      %v1611 = vpop.f32.mrf.mxu0
      %v1612 = vadd.f32 0.0, %v1611
      %v1613 = vpop.f32.mrf.mxu0
      %v1614 = vadd.f32 0.0, %v1613
      %1615 = vmatmul.bf16.gmra.mxu0 %v1497
      %v1616 = vpop.f32.mrf.mxu0
      %v1617 = vadd.f32 0.0, %v1616
      %v1618 = vpop.f32.mrf.mxu0
      %v1619 = vadd.f32 0.0, %v1618
      %1620 = vmatmul.bf16.gmra.mxu0 %v1505
      %v1621 = vpop.f32.mrf.mxu0
      %v1622 = vadd.f32 0.0, %v1621
      %v1623 = vpop.f32.mrf.mxu0
      %v1624 = vadd.f32 0.0, %v1623
      %1625 = vmatmul.bf16.gmra.mxu0 %v1513
      %v1626 = vpop.f32.mrf.mxu0
      %v1627 = vadd.f32 0.0, %v1626
      %v1628 = vpop.f32.mrf.mxu0
      %v1629 = vadd.f32 0.0, %v1628
      %1630 = vmatmul.bf16.gmra.mxu0 %v1521
      %v1631 = vpop.f32.mrf.mxu0
      %v1632 = vadd.f32 0.0, %v1631
      %v1633 = vpop.f32.mrf.mxu0
      %v1634 = vadd.f32 0.0, %v1633
      %1635 = vmatmul.bf16.gmra.mxu0 %v1529
      %v1636 = vpop.f32.mrf.mxu0
      %v1637 = vadd.f32 0.0, %v1636
      %v1638 = vpop.f32.mrf.mxu0
      %v1639 = vadd.f32 0.0, %v1638
      %1640 = vmatmul.bf16.gmra.mxu0 %v1537
      %v1641 = vpop.f32.mrf.mxu0
      %v1642 = vadd.f32 0.0, %v1641
      %v1643 = vpop.f32.mrf.mxu0
      %v1644 = vadd.f32 0.0, %v1643
      %1645 = vmatmul.bf16.gmra.mxu0 %v1545
      %v1646 = vpop.f32.mrf.mxu0
      %v1647 = vadd.f32 0.0, %v1646
      %v1648 = vpop.f32.mrf.mxu0
      %v1649 = vadd.f32 0.0, %v1648
      %1650 = vdwg.mxu0
      %v1651 = vadd.f32 %v1384, %v1612
      %v1652 = vadd.f32 %v1385, %v1614
      %v1653 = vadd.f32 %v1386, %v1617
      %v1654 = vadd.f32 %v1387, %v1619
      %v1655 = vadd.f32 %v1388, %v1622
      %v1656 = vadd.f32 %v1389, %v1624
      %v1657 = vadd.f32 %v1390, %v1627
      %v1658 = vadd.f32 %v1391, %v1629
      %v1659 = vadd.f32 %v1392, %v1632
      %v1660 = vadd.f32 %v1393, %v1634
      %v1661 = vadd.f32 %v1394, %v1637
      %v1662 = vadd.f32 %v1395, %v1639
      %v1663 = vadd.f32 %v1396, %v1642
      %v1664 = vadd.f32 %v1397, %v1644
      %v1665 = vadd.f32 %v1398, %v1647
      %v1666 = vadd.f32 %v1399, %v1649
      %v1667 = vld [vmem:[%s376 + $0x14] sm:$0xf]
      %v1668 = vld [vmem:[%s376 + $0x18] sm:$0xf]
      %v1669 = vld [vmem:[%s376 + $0x1c] sm:$0xf]
      %v1670 = vld [vmem:[%s376 + $0x20] sm:$0xf]
      %v1671 = vld [vmem:[%s376 + $0x24] sm:$0xf]
      %v1672 = vld [vmem:[%s376 + $0x28] sm:$0xf]
      %v1673 = vld [vmem:[%s376 + $0x2c] sm:$0xf]
      %v1674 = vld [vmem:[%s376 + $0x30] sm:$0xf]
      %v1675 = vld [vmem:[%s376 + $0x34] sm:$0xf]
      %v1676 = vld [vmem:[%s376 + $0x38] sm:$0xf]
      %v1677 = vld [vmem:[%s376 + $0x3c] sm:$0xf]
      %v1678 = vld [vmem:[%s376 + $0x40] sm:$0xf]
      %v1679 = vld [vmem:[%s376 + $0x44] sm:$0xf]
      %v1680 = vld [vmem:[%s376 + $0x48] sm:$0xf]
      %v1681 = vld [vmem:[%s376 + $0x4c] sm:$0xf]
      %v1682 = vld [vmem:[%s376 + $0x50] sm:$0xf]
      %v1683 = vld [vmem:[%s376 + $0x54] sm:$0x1]
      %s1684 = scalar_lea.vmem %s1, 384
      %v1685 = vld [vmem:[%s1684] sm:$0xf]
      %v1686 = vld [vmem:[%s1684 + $0x4] sm:$0xf]
      %v1687 = vld [vmem:[%s1684 + $0x8] sm:$0xf]
      %v1688 = vld [vmem:[%s1684 + $0xc] sm:$0xf]
      %v1689 = vld [vmem:[%s1684 + $0x10] sm:$0xf]
      %v1690 = vld [vmem:[%s1684 + $0x14] sm:$0xf]
      %v1691 = vld [vmem:[%s1684 + $0x18] sm:$0xf]
      %v1692 = vld [vmem:[%s1684 + $0x1c] sm:$0xf]
      %v1693 = vld [vmem:[%s1684 + $0x20] sm:$0xf]
      %v1694 = vld [vmem:[%s1684 + $0x24] sm:$0xf]
      %v1695 = vld [vmem:[%s1684 + $0x28] sm:$0xf]
      %v1696 = vld [vmem:[%s1684 + $0x2c] sm:$0xf]
      %v1697 = vld [vmem:[%s1684 + $0x30] sm:$0xf]
      %v1698 = vld [vmem:[%s1684 + $0x34] sm:$0xf]
      %v1699 = vld [vmem:[%s1684 + $0x38] sm:$0xf]
      %v1700 = vld [vmem:[%s1684 + $0x3c] sm:$0xf]
      %v1718 = vunpack.c.l.b16 %v1667
      %v1719 = vunpack.c.l.b16 %v1668
      %v1720 = vunpack.c.l.b16 %v1669
      %v1721 = vunpack.c.l.b16 %v1670
      %v1722 = vunpack.c.l.b16 %v1671
      %v1723 = vunpack.c.l.b16 %v1672
      %v1724 = vunpack.c.l.b16 %v1673
      %v1725 = vunpack.c.l.b16 %v1674
      %v1726 = vunpack.c.l.b16 %v1675
      %v1727 = vunpack.c.l.b16 %v1676
      %v1728 = vunpack.c.l.b16 %v1677
      %v1729 = vunpack.c.l.b16 %v1678
      %v1730 = vunpack.c.l.b16 %v1679
      %v1731 = vunpack.c.l.b16 %v1680
      %v1732 = vunpack.c.l.b16 %v1681
      %v1733 = vunpack.c.l.b16 %v1682
      %v1734 = vunpack.c.l.b16 %v1683
      %v1735 = vpack.c.b16 %v1719, %v1718
      %v1736 = vpack.c.b16 %v1721, %v1720
      %v1737 = vpack.c.b16 %v1723, %v1722
      %v1738 = vpack.c.b16 %v1725, %v1724
      %v1739 = vpack.c.b16 %v1727, %v1726
      %v1740 = vpack.c.b16 %v1729, %v1728
      %v1741 = vpack.c.b16 %v1731, %v1730
      %v1742 = vpack.c.b16 %v1733, %v1732
      %v1743 = vpack.c.b16 %v1734, %v1734
      %v1745 = vshrl.u32 %v1735, 16
      %v1747 = vshll.u32 %v1735, 16
      %v1749 = vrot.slane %v1747, 1
      %v1750 = vor.u32 %v1745, %v1749
      %v1752 = vshll.u32 %v1736, 16
      %v1754 = vrot.slane %v1752, 1
      %v1755 = vsel %vm1477, %v1750, %v1754
      %v1756 = vshrl.u32 %v1736, 16
      %v1758 = vor.u32 %v1756, %v1754
      %v1760 = vshll.u32 %v1737, 16
      %v1762 = vrot.slane %v1760, 1
      %v1763 = vsel %vm1477, %v1758, %v1762
      %v1764 = vshrl.u32 %v1737, 16
      %v1766 = vor.u32 %v1764, %v1762
      %v1768 = vshll.u32 %v1738, 16
      %v1770 = vrot.slane %v1768, 1
      %v1771 = vsel %vm1477, %v1766, %v1770
      %v1772 = vshrl.u32 %v1738, 16
      %v1774 = vor.u32 %v1772, %v1770
      %v1776 = vshll.u32 %v1739, 16
      %v1778 = vrot.slane %v1776, 1
      %v1779 = vsel %vm1477, %v1774, %v1778
      %v1780 = vshrl.u32 %v1739, 16
      %v1782 = vor.u32 %v1780, %v1778
      %v1784 = vshll.u32 %v1740, 16
      %v1786 = vrot.slane %v1784, 1
      %v1787 = vsel %vm1477, %v1782, %v1786
      %v1788 = vshrl.u32 %v1740, 16
      %v1790 = vor.u32 %v1788, %v1786
      %v1792 = vshll.u32 %v1741, 16
      %v1794 = vrot.slane %v1792, 1
      %v1795 = vsel %vm1477, %v1790, %v1794
      %v1796 = vshrl.u32 %v1741, 16
      %v1798 = vor.u32 %v1796, %v1794
      %v1800 = vshll.u32 %v1742, 16
      %v1802 = vrot.slane %v1800, 1
      %v1803 = vsel %vm1477, %v1798, %v1802
      %v1804 = vshrl.u32 %v1742, 16
      %v1806 = vor.u32 %v1804, %v1802
      %v1808 = vshll.u32 %v1743, 16
      %v1810 = vrot.slane %v1808, 1
      %v1811 = vsel %vm1477, %v1806, %v1810
      %v1836 = vunpack.c.l.b16 %v1685
      %v1837 = vunpack.c.l.b16 %v1686
      %v1838 = vunpack.c.l.b16 %v1687
      %v1839 = vunpack.c.l.b16 %v1688
      %v1840 = vunpack.c.l.b16 %v1689
      %v1841 = vunpack.c.l.b16 %v1690
      %v1842 = vunpack.c.l.b16 %v1691
      %v1843 = vunpack.c.l.b16 %v1692
      %v1844 = vunpack.c.l.b16 %v1693
      %v1845 = vunpack.c.l.b16 %v1694
      %v1846 = vunpack.c.l.b16 %v1695
      %v1847 = vunpack.c.l.b16 %v1696
      %v1848 = vunpack.c.l.b16 %v1697
      %v1849 = vunpack.c.l.b16 %v1698
      %v1850 = vunpack.c.l.b16 %v1699
      %v1851 = vunpack.c.l.b16 %v1700
      %v1852 = vpack.c.b16 %v1837, %v1836
      %v1853 = vpack.c.b16 %v1839, %v1838
      %v1854 = vpack.c.b16 %v1841, %v1840
      %v1855 = vpack.c.b16 %v1843, %v1842
      %v1856 = vpack.c.b16 %v1845, %v1844
      %v1857 = vpack.c.b16 %v1847, %v1846
      %v1858 = vpack.c.b16 %v1849, %v1848
      %v1859 = vpack.c.b16 %v1851, %v1850
      %1868 = vmatpush.bf16.msra.mxu0 %v1859
      %1869 = vmatpush.bf16.msra.mxu0 %v1858
      %1870 = vmatpush.bf16.msra.mxu0 %v1857
      %1871 = vmatpush.bf16.msra.mxu0 %v1856
      %1872 = vmatpush.bf16.msra.mxu0 %v1855
      %1873 = vmatpush.bf16.msra.mxu0 %v1854
      %1874 = vmatpush.bf16.msra.mxu0 %v1853
      %1875 = vmatpush.bf16.msra.mxu0 %v1852
      %1876 = vmatmul.bf16.gmra.mxu0 %v1755
      %v1877 = vpop.f32.mrf.mxu0
      %v1878 = vadd.f32 0.0, %v1877
      %v1879 = vpop.f32.mrf.mxu0
      %v1880 = vadd.f32 0.0, %v1879
      %1881 = vmatmul.bf16.gmra.mxu0 %v1763
      %v1882 = vpop.f32.mrf.mxu0
      %v1883 = vadd.f32 0.0, %v1882
      %v1884 = vpop.f32.mrf.mxu0
      %v1885 = vadd.f32 0.0, %v1884
      %1886 = vmatmul.bf16.gmra.mxu0 %v1771
      %v1887 = vpop.f32.mrf.mxu0
      %v1888 = vadd.f32 0.0, %v1887
      %v1889 = vpop.f32.mrf.mxu0
      %v1890 = vadd.f32 0.0, %v1889
      %1891 = vmatmul.bf16.gmra.mxu0 %v1779
      %v1892 = vpop.f32.mrf.mxu0
      %v1893 = vadd.f32 0.0, %v1892
      %v1894 = vpop.f32.mrf.mxu0
      %v1895 = vadd.f32 0.0, %v1894
      %1896 = vmatmul.bf16.gmra.mxu0 %v1787
      %v1897 = vpop.f32.mrf.mxu0
      %v1898 = vadd.f32 0.0, %v1897
      %v1899 = vpop.f32.mrf.mxu0
      %v1900 = vadd.f32 0.0, %v1899
      %1901 = vmatmul.bf16.gmra.mxu0 %v1795
      %v1902 = vpop.f32.mrf.mxu0
      %v1903 = vadd.f32 0.0, %v1902
      %v1904 = vpop.f32.mrf.mxu0
      %v1905 = vadd.f32 0.0, %v1904
      %1906 = vmatmul.bf16.gmra.mxu0 %v1803
      %v1907 = vpop.f32.mrf.mxu0
      %v1908 = vadd.f32 0.0, %v1907
      %v1909 = vpop.f32.mrf.mxu0
      %v1910 = vadd.f32 0.0, %v1909
      %1911 = vmatmul.bf16.gmra.mxu0 %v1811
      %v1912 = vpop.f32.mrf.mxu0
      %v1913 = vadd.f32 0.0, %v1912
      %v1914 = vpop.f32.mrf.mxu0
      %v1915 = vadd.f32 0.0, %v1914
      %1916 = vdwg.mxu0
      %v1917 = vadd.f32 %v1651, %v1878
      %v1918 = vadd.f32 %v1652, %v1880
      %v1919 = vadd.f32 %v1653, %v1883
      %v1920 = vadd.f32 %v1654, %v1885
      %v1921 = vadd.f32 %v1655, %v1888
      %v1922 = vadd.f32 %v1656, %v1890
      %v1923 = vadd.f32 %v1657, %v1893
      %v1924 = vadd.f32 %v1658, %v1895
      %v1925 = vadd.f32 %v1659, %v1898
      %v1926 = vadd.f32 %v1660, %v1900
      %v1927 = vadd.f32 %v1661, %v1903
      %v1928 = vadd.f32 %v1662, %v1905
      %v1929 = vadd.f32 %v1663, %v1908
      %v1930 = vadd.f32 %v1664, %v1910
      %v1931 = vadd.f32 %v1665, %v1913
      %v1932 = vadd.f32 %v1666, %v1915
      %v1933 = vld [vmem:[%s376 + $0x14] sm:$0xe]
      %s1934 = scalar_lea.vmem %s1, 448
      %v1935 = vld [vmem:[%s1934] sm:$0xf]
      %v1936 = vld [vmem:[%s1934 + $0x4] sm:$0xf]
      %v1937 = vld [vmem:[%s1934 + $0x8] sm:$0xf]
      %v1938 = vld [vmem:[%s1934 + $0xc] sm:$0xf]
      %v1939 = vld [vmem:[%s1934 + $0x10] sm:$0xf]
      %v1940 = vld [vmem:[%s1934 + $0x14] sm:$0xf]
      %v1941 = vld [vmem:[%s1934 + $0x18] sm:$0xf]
      %v1942 = vld [vmem:[%s1934 + $0x1c] sm:$0xf]
      %v1943 = vld [vmem:[%s1934 + $0x20] sm:$0xf]
      %v1944 = vld [vmem:[%s1934 + $0x24] sm:$0xf]
      %v1945 = vld [vmem:[%s1934 + $0x28] sm:$0xf]
      %v1946 = vld [vmem:[%s1934 + $0x2c] sm:$0xf]
      %v1947 = vld [vmem:[%s1934 + $0x30] sm:$0xf]
      %v1948 = vld [vmem:[%s1934 + $0x34] sm:$0xf]
      %v1949 = vld [vmem:[%s1934 + $0x38] sm:$0xf]
      %v1950 = vld [vmem:[%s1934 + $0x3c] sm:$0xf]
      %v1952 = vunpack.c.l.b16 %v1933
      %v1953 = vpack.c.b16 %v1719, %v1952
      %vm1954 = vcmask 1046528
      %v1955 = vrot.slane %v1953, 1
      %v1956 = vrot.slane %v1736, 1
      %v1957 = vsel %vm1954, %v1955, %v1956
      %v1958 = vrot.slane %v1737, 1
      %v1959 = vsel %vm1954, %v1956, %v1958
      %v1960 = vrot.slane %v1738, 1
      %v1961 = vsel %vm1954, %v1958, %v1960
      %v1962 = vrot.slane %v1739, 1
      %v1963 = vsel %vm1954, %v1960, %v1962
      %v1964 = vrot.slane %v1740, 1
      %v1965 = vsel %vm1954, %v1962, %v1964
      %v1966 = vrot.slane %v1741, 1
      %v1967 = vsel %vm1954, %v1964, %v1966
      %v1968 = vrot.slane %v1742, 1
      %v1969 = vsel %vm1954, %v1966, %v1968
      %v1970 = vrot.slane %v1743, 1
      %v1971 = vsel %vm1954, %v1968, %v1970
      %v1996 = vunpack.c.l.b16 %v1935
      %v1997 = vunpack.c.l.b16 %v1936
      %v1998 = vunpack.c.l.b16 %v1937
      %v1999 = vunpack.c.l.b16 %v1938
      %v2000 = vunpack.c.l.b16 %v1939
      %v2001 = vunpack.c.l.b16 %v1940
      %v2002 = vunpack.c.l.b16 %v1941
      %v2003 = vunpack.c.l.b16 %v1942
      %v2004 = vunpack.c.l.b16 %v1943
      %v2005 = vunpack.c.l.b16 %v1944
      %v2006 = vunpack.c.l.b16 %v1945
      %v2007 = vunpack.c.l.b16 %v1946
      %v2008 = vunpack.c.l.b16 %v1947
      %v2009 = vunpack.c.l.b16 %v1948
      %v2010 = vunpack.c.l.b16 %v1949
      %v2011 = vunpack.c.l.b16 %v1950
      %v2012 = vpack.c.b16 %v1997, %v1996
      %v2013 = vpack.c.b16 %v1999, %v1998
      %v2014 = vpack.c.b16 %v2001, %v2000
      %v2015 = vpack.c.b16 %v2003, %v2002
      %v2016 = vpack.c.b16 %v2005, %v2004
      %v2017 = vpack.c.b16 %v2007, %v2006
      %v2018 = vpack.c.b16 %v2009, %v2008
      %v2019 = vpack.c.b16 %v2011, %v2010
      %2028 = vmatpush.bf16.msra.mxu0 %v2019
      %2029 = vmatpush.bf16.msra.mxu0 %v2018
      %2030 = vmatpush.bf16.msra.mxu0 %v2017
      %2031 = vmatpush.bf16.msra.mxu0 %v2016
      %2032 = vmatpush.bf16.msra.mxu0 %v2015
      %2033 = vmatpush.bf16.msra.mxu0 %v2014
      %2034 = vmatpush.bf16.msra.mxu0 %v2013
      %2035 = vmatpush.bf16.msra.mxu0 %v2012
      %2036 = vmatmul.bf16.gmra.mxu0 %v1957
      %v2037 = vpop.f32.mrf.mxu0
      %v2038 = vadd.f32 0.0, %v2037
      %v2039 = vpop.f32.mrf.mxu0
      %v2040 = vadd.f32 0.0, %v2039
      %2041 = vmatmul.bf16.gmra.mxu0 %v1959
      %v2042 = vpop.f32.mrf.mxu0
      %v2043 = vadd.f32 0.0, %v2042
      %v2044 = vpop.f32.mrf.mxu0
      %v2045 = vadd.f32 0.0, %v2044
      %2046 = vmatmul.bf16.gmra.mxu0 %v1961
      %v2047 = vpop.f32.mrf.mxu0
      %v2048 = vadd.f32 0.0, %v2047
      %v2049 = vpop.f32.mrf.mxu0
      %v2050 = vadd.f32 0.0, %v2049
      %2051 = vmatmul.bf16.gmra.mxu0 %v1963
      %v2052 = vpop.f32.mrf.mxu0
      %v2053 = vadd.f32 0.0, %v2052
      %v2054 = vpop.f32.mrf.mxu0
      %v2055 = vadd.f32 0.0, %v2054
      %2056 = vmatmul.bf16.gmra.mxu0 %v1965
      %v2057 = vpop.f32.mrf.mxu0
      %v2058 = vadd.f32 0.0, %v2057
      %v2059 = vpop.f32.mrf.mxu0
      %v2060 = vadd.f32 0.0, %v2059
      %2061 = vmatmul.bf16.gmra.mxu0 %v1967
      %v2062 = vpop.f32.mrf.mxu0
      %v2063 = vadd.f32 0.0, %v2062
      %v2064 = vpop.f32.mrf.mxu0
      %v2065 = vadd.f32 0.0, %v2064
      %2066 = vmatmul.bf16.gmra.mxu0 %v1969
      %v2067 = vpop.f32.mrf.mxu0
      %v2068 = vadd.f32 0.0, %v2067
      %v2069 = vpop.f32.mrf.mxu0
      %v2070 = vadd.f32 0.0, %v2069
      %2071 = vmatmul.bf16.gmra.mxu0 %v1971
      %v2072 = vpop.f32.mrf.mxu0
      %v2073 = vadd.f32 0.0, %v2072
      %v2074 = vpop.f32.mrf.mxu0
      %v2075 = vadd.f32 0.0, %v2074
      %2076 = vdwg.mxu0
      %v2077 = vadd.f32 %v1917, %v2038
      %v2078 = vadd.f32 %v1918, %v2040
      %v2079 = vadd.f32 %v1919, %v2043
      %v2080 = vadd.f32 %v1920, %v2045
      %v2081 = vadd.f32 %v1921, %v2048
      %v2082 = vadd.f32 %v1922, %v2050
      %v2083 = vadd.f32 %v1923, %v2053
      %v2084 = vadd.f32 %v1924, %v2055
      %v2085 = vadd.f32 %v1925, %v2058
      %v2086 = vadd.f32 %v1926, %v2060
      %v2087 = vadd.f32 %v1927, %v2063
      %v2088 = vadd.f32 %v1928, %v2065
      %v2089 = vadd.f32 %v1929, %v2068
      %v2090 = vadd.f32 %v1930, %v2070
      %v2091 = vadd.f32 %v1931, %v2073
      %v2092 = vadd.f32 %v1932, %v2075
      %v2093 = vld [vmem:[%s376 + $0x54] sm:$0x3]
      %s2094 = scalar_lea.vmem %s1, 512
      %v2095 = vld [vmem:[%s2094] sm:$0xf]
      %v2096 = vld [vmem:[%s2094 + $0x4] sm:$0xf]
      %v2097 = vld [vmem:[%s2094 + $0x8] sm:$0xf]
      %v2098 = vld [vmem:[%s2094 + $0xc] sm:$0xf]
      %v2099 = vld [vmem:[%s2094 + $0x10] sm:$0xf]
      %v2100 = vld [vmem:[%s2094 + $0x14] sm:$0xf]
      %v2101 = vld [vmem:[%s2094 + $0x18] sm:$0xf]
      %v2102 = vld [vmem:[%s2094 + $0x1c] sm:$0xf]
      %v2103 = vld [vmem:[%s2094 + $0x20] sm:$0xf]
      %v2104 = vld [vmem:[%s2094 + $0x24] sm:$0xf]
      %v2105 = vld [vmem:[%s2094 + $0x28] sm:$0xf]
      %v2106 = vld [vmem:[%s2094 + $0x2c] sm:$0xf]
      %v2107 = vld [vmem:[%s2094 + $0x30] sm:$0xf]
      %v2108 = vld [vmem:[%s2094 + $0x34] sm:$0xf]
      %v2109 = vld [vmem:[%s2094 + $0x38] sm:$0xf]
      %v2110 = vld [vmem:[%s2094 + $0x3c] sm:$0xf]
      %v2112 = vunpack.c.l.b16 %v2093
      %v2113 = vpack.c.b16 %v2112, %v2112
      %vm2114 = vsmask.f32 6400
      %v2116 = vshrl.u32 %v1953, 16
      %v2118 = vrot.slane %v2116, 1
      %v2119 = vshll.u32 %v1953, 16
      %v2121 = vrot.slane %v2119, 2
      %v2122 = vor.u32 %v2118, %v2121
      %v2123 = vrot.slane %v1756, 1
      %v2124 = vrot.slane %v1752, 2
      %v2125 = vor.u32 %v2123, %v2124
      %v2126 = vsel %vm2114, %v2122, %v2125
      %v2127 = vrot.slane %v1764, 1
      %v2128 = vrot.slane %v1760, 2
      %v2129 = vor.u32 %v2127, %v2128
      %v2130 = vsel %vm2114, %v2125, %v2129
      %v2131 = vrot.slane %v1772, 1
      %v2132 = vrot.slane %v1768, 2
      %v2133 = vor.u32 %v2131, %v2132
      %v2134 = vsel %vm2114, %v2129, %v2133
      %v2135 = vrot.slane %v1780, 1
      %v2136 = vrot.slane %v1776, 2
      %v2137 = vor.u32 %v2135, %v2136
      %v2138 = vsel %vm2114, %v2133, %v2137
      %v2139 = vrot.slane %v1788, 1
      %v2140 = vrot.slane %v1784, 2
      %v2141 = vor.u32 %v2139, %v2140
      %v2142 = vsel %vm2114, %v2137, %v2141
      %v2143 = vrot.slane %v1796, 1
      %v2144 = vrot.slane %v1792, 2
      %v2145 = vor.u32 %v2143, %v2144
      %v2146 = vsel %vm2114, %v2141, %v2145
      %v2147 = vrot.slane %v1804, 1
      %v2148 = vrot.slane %v1800, 2
      %v2149 = vor.u32 %v2147, %v2148
      %v2150 = vsel %vm2114, %v2145, %v2149
      %v2152 = vshrl.u32 %v2113, 16
      %v2154 = vrot.slane %v2152, 1
      %v2155 = vshll.u32 %v2113, 16
      %v2157 = vrot.slane %v2155, 2
      %v2158 = vor.u32 %v2154, %v2157
      %v2159 = vsel %vm2114, %v2149, %v2158
      %v2184 = vunpack.c.l.b16 %v2095
      %v2185 = vunpack.c.l.b16 %v2096
      %v2186 = vunpack.c.l.b16 %v2097
      %v2187 = vunpack.c.l.b16 %v2098
      %v2188 = vunpack.c.l.b16 %v2099
      %v2189 = vunpack.c.l.b16 %v2100
      %v2190 = vunpack.c.l.b16 %v2101
      %v2191 = vunpack.c.l.b16 %v2102
      %v2192 = vunpack.c.l.b16 %v2103
      %v2193 = vunpack.c.l.b16 %v2104
      %v2194 = vunpack.c.l.b16 %v2105
      %v2195 = vunpack.c.l.b16 %v2106
      %v2196 = vunpack.c.l.b16 %v2107
      %v2197 = vunpack.c.l.b16 %v2108
      %v2198 = vunpack.c.l.b16 %v2109
      %v2199 = vunpack.c.l.b16 %v2110
      %v2200 = vpack.c.b16 %v2185, %v2184
      %v2201 = vpack.c.b16 %v2187, %v2186
      %v2202 = vpack.c.b16 %v2189, %v2188
      %v2203 = vpack.c.b16 %v2191, %v2190
      %v2204 = vpack.c.b16 %v2193, %v2192
      %v2205 = vpack.c.b16 %v2195, %v2194
      %v2206 = vpack.c.b16 %v2197, %v2196
      %v2207 = vpack.c.b16 %v2199, %v2198
      %2216 = vmatpush.bf16.msra.mxu0 %v2207
      %2217 = vmatpush.bf16.msra.mxu0 %v2206
      %2218 = vmatpush.bf16.msra.mxu0 %v2205
      %2219 = vmatpush.bf16.msra.mxu0 %v2204
      %2220 = vmatpush.bf16.msra.mxu0 %v2203
      %2221 = vmatpush.bf16.msra.mxu0 %v2202
      %2222 = vmatpush.bf16.msra.mxu0 %v2201
      %2223 = vmatpush.bf16.msra.mxu0 %v2200
      %2224 = vmatmul.bf16.gmra.mxu0 %v2126
      %v2225 = vpop.f32.mrf.mxu0
      %v2226 = vadd.f32 0.0, %v2225
      %v2227 = vpop.f32.mrf.mxu0
      %v2228 = vadd.f32 0.0, %v2227
      %2229 = vmatmul.bf16.gmra.mxu0 %v2130
      %v2230 = vpop.f32.mrf.mxu0
      %v2231 = vadd.f32 0.0, %v2230
      %v2232 = vpop.f32.mrf.mxu0
      %v2233 = vadd.f32 0.0, %v2232
      %2234 = vmatmul.bf16.gmra.mxu0 %v2134
      %v2235 = vpop.f32.mrf.mxu0
      %v2236 = vadd.f32 0.0, %v2235
      %v2237 = vpop.f32.mrf.mxu0
      %v2238 = vadd.f32 0.0, %v2237
      %2239 = vmatmul.bf16.gmra.mxu0 %v2138
      %v2240 = vpop.f32.mrf.mxu0
      %v2241 = vadd.f32 0.0, %v2240
      %v2242 = vpop.f32.mrf.mxu0
      %v2243 = vadd.f32 0.0, %v2242
      %2244 = vmatmul.bf16.gmra.mxu0 %v2142
      %v2245 = vpop.f32.mrf.mxu0
      %v2246 = vadd.f32 0.0, %v2245
      %v2247 = vpop.f32.mrf.mxu0
      %v2248 = vadd.f32 0.0, %v2247
      %2249 = vmatmul.bf16.gmra.mxu0 %v2146
      %v2250 = vpop.f32.mrf.mxu0
      %v2251 = vadd.f32 0.0, %v2250
      %v2252 = vpop.f32.mrf.mxu0
      %v2253 = vadd.f32 0.0, %v2252
      %2254 = vmatmul.bf16.gmra.mxu0 %v2150
      %v2255 = vpop.f32.mrf.mxu0
      %v2256 = vadd.f32 0.0, %v2255
      %v2257 = vpop.f32.mrf.mxu0
      %v2258 = vadd.f32 0.0, %v2257
      %2259 = vmatmul.bf16.gmra.mxu0 %v2159
      %v2260 = vpop.f32.mrf.mxu0
      %v2261 = vadd.f32 0.0, %v2260
      %v2262 = vpop.f32.mrf.mxu0
      %v2263 = vadd.f32 0.0, %v2262
      %2264 = vdwg.mxu0
      %v2265 = vadd.f32 %v2077, %v2226
      %v2266 = vadd.f32 %v2078, %v2228
      %v2267 = vadd.f32 %v2079, %v2231
      %v2268 = vadd.f32 %v2080, %v2233
      %v2269 = vadd.f32 %v2081, %v2236
      %v2270 = vadd.f32 %v2082, %v2238
      %v2271 = vadd.f32 %v2083, %v2241
      %v2272 = vadd.f32 %v2084, %v2243
      %v2273 = vadd.f32 %v2085, %v2246
      %v2274 = vadd.f32 %v2086, %v2248
      %v2275 = vadd.f32 %v2087, %v2251
      %v2276 = vadd.f32 %v2088, %v2253
      %v2277 = vadd.f32 %v2089, %v2256
      %v2278 = vadd.f32 %v2090, %v2258
      %v2279 = vadd.f32 %v2091, %v2261
      %v2280 = vadd.f32 %v2092, %v2263
      %2281 = vst [vmem:[%s245] sm:$0xff] %v2265
      %2282 = vst [vmem:[%s245 + $0x8] sm:$0xff] %v2266
      %2283 = vst [vmem:[%s245 + $0x10] sm:$0xff] %v2267
      %2284 = vst [vmem:[%s245 + $0x18] sm:$0xff] %v2268
      %2285 = vst [vmem:[%s245 + $0x20] sm:$0xff] %v2269
      %2286 = vst [vmem:[%s245 + $0x28] sm:$0xff] %v2270
      %2287 = vst [vmem:[%s245 + $0x30] sm:$0xff] %v2271
      %2288 = vst [vmem:[%s245 + $0x38] sm:$0xff] %v2272
      %2289 = vst [vmem:[%s245 + $0x40] sm:$0xff] %v2273
      %2290 = vst [vmem:[%s245 + $0x48] sm:$0xff] %v2274
      %2291 = vst [vmem:[%s245 + $0x50] sm:$0xff] %v2275
      %2292 = vst [vmem:[%s245 + $0x58] sm:$0xff] %v2276
      %2293 = vst [vmem:[%s245 + $0x60] sm:$0xff] %v2277
      %2294 = vst [vmem:[%s245 + $0x68] sm:$0xff] %v2278
      %2295 = vst [vmem:[%s245 + $0x70] sm:$0xff] %v2279
      %2296 = vst [vmem:[%s245 + $0x78] sm:$0xff] %v2280
      %v2297 = vld [vmem:[%s235] sm:$0xff]
      %v2298 = vld [vmem:[%s235 + $0x8] sm:$0xff]
      %v2299 = vld [vmem:[%s235 + $0x10] sm:$0xff]
      %v2300 = vld [vmem:[%s235 + $0x18] sm:$0xff]
      %v2301 = vld [vmem:[%s235 + $0x20] sm:$0xff]
      %v2302 = vld [vmem:[%s235 + $0x28] sm:$0xff]
      %v2303 = vld [vmem:[%s235 + $0x30] sm:$0xff]
      %v2304 = vld [vmem:[%s235 + $0x38] sm:$0xff]
      %v2305 = vld [vmem:[%s235 + $0x40] sm:$0xff]
      %v2306 = vld [vmem:[%s235 + $0x48] sm:$0xff]
      %v2307 = vld [vmem:[%s235 + $0x50] sm:$0xff]
      %v2308 = vld [vmem:[%s235 + $0x58] sm:$0xff]
      %v2309 = vld [vmem:[%s235 + $0x60] sm:$0xff]
      %v2310 = vld [vmem:[%s235 + $0x68] sm:$0xff]
      %v2311 = vld [vmem:[%s235 + $0x70] sm:$0xff]
      %v2312 = vld [vmem:[%s235 + $0x78] sm:$0xff]
      %vm2313 = vcmp.gt.f32.partialorder %v2297, 0.0
      %vm2314 = vcmp.gt.f32.partialorder %v2298, 0.0
      %vm2315 = vcmp.gt.f32.partialorder %v2299, 0.0
      %vm2316 = vcmp.gt.f32.partialorder %v2300, 0.0
      %vm2317 = vcmp.gt.f32.partialorder %v2301, 0.0
      %vm2318 = vcmp.gt.f32.partialorder %v2302, 0.0
      %vm2319 = vcmp.gt.f32.partialorder %v2303, 0.0
      %vm2320 = vcmp.gt.f32.partialorder %v2304, 0.0
      %vm2321 = vcmp.gt.f32.partialorder %v2305, 0.0
      %vm2322 = vcmp.gt.f32.partialorder %v2306, 0.0
      %vm2323 = vcmp.gt.f32.partialorder %v2307, 0.0
      %vm2324 = vcmp.gt.f32.partialorder %v2308, 0.0
      %vm2325 = vcmp.gt.f32.partialorder %v2309, 0.0
      %vm2326 = vcmp.gt.f32.partialorder %v2310, 0.0
      %vm2327 = vcmp.gt.f32.partialorder %v2311, 0.0
      %vm2328 = vcmp.gt.f32.partialorder %v2312, 0.0
      %v2329 = vsel %vm2313, 1, 0
      %v2330 = vsel %vm2314, 1, 0
      %v2331 = vsel %vm2315, 1, 0
      %v2332 = vsel %vm2316, 1, 0
      %v2333 = vsel %vm2317, 1, 0
      %v2334 = vsel %vm2318, 1, 0
      %v2335 = vsel %vm2319, 1, 0
      %v2336 = vsel %vm2320, 1, 0
      %v2337 = vsel %vm2321, 1, 0
      %v2338 = vsel %vm2322, 1, 0
      %v2339 = vsel %vm2323, 1, 0
      %v2340 = vsel %vm2324, 1, 0
      %v2341 = vsel %vm2325, 1, 0
      %v2342 = vsel %vm2326, 1, 0
      %v2343 = vsel %vm2327, 1, 0
      %v2344 = vsel %vm2328, 1, 0
      %2345 = vset.pattern.permute.xlu0 0
      %2346 = vperm.xlu0 %2345, %v2329
      %v2347 = vpop.permute.xlu0 %2346
      %2348 = vset.pattern.permute.xlu0 0
      %2349 = vperm.xlu0 %2348, %v2330
      %v2350 = vpop.permute.xlu0 %2349
      %2351 = vset.pattern.permute.xlu0 0
      %2352 = vperm.xlu0 %2351, %v2331
      %v2353 = vpop.permute.xlu0 %2352
      %2354 = vset.pattern.permute.xlu0 0
      %2355 = vperm.xlu0 %2354, %v2332
      %v2356 = vpop.permute.xlu0 %2355
      %2357 = vset.pattern.permute.xlu0 0
      %2358 = vperm.xlu0 %2357, %v2333
      %v2359 = vpop.permute.xlu0 %2358
      %2360 = vset.pattern.permute.xlu0 0
      %2361 = vperm.xlu0 %2360, %v2334
      %v2362 = vpop.permute.xlu0 %2361
      %2363 = vset.pattern.permute.xlu0 0
      %2364 = vperm.xlu0 %2363, %v2335
      %v2365 = vpop.permute.xlu0 %2364
      %2366 = vset.pattern.permute.xlu0 0
      %2367 = vperm.xlu0 %2366, %v2336
      %v2368 = vpop.permute.xlu0 %2367
      %2369 = vset.pattern.permute.xlu0 0
      %2370 = vperm.xlu0 %2369, %v2337
      %v2371 = vpop.permute.xlu0 %2370
      %2372 = vset.pattern.permute.xlu0 0
      %2373 = vperm.xlu0 %2372, %v2338
      %v2374 = vpop.permute.xlu0 %2373
      %2375 = vset.pattern.permute.xlu0 0
      %2376 = vperm.xlu0 %2375, %v2339
      %v2377 = vpop.permute.xlu0 %2376
      %2378 = vset.pattern.permute.xlu0 0
      %2379 = vperm.xlu0 %2378, %v2340
      %v2380 = vpop.permute.xlu0 %2379
      %2381 = vset.pattern.permute.xlu0 0
      %2382 = vperm.xlu0 %2381, %v2341
      %v2383 = vpop.permute.xlu0 %2382
      %2384 = vset.pattern.permute.xlu0 0
      %2385 = vperm.xlu0 %2384, %v2342
      %v2386 = vpop.permute.xlu0 %2385
      %2387 = vset.pattern.permute.xlu0 0
      %2388 = vperm.xlu0 %2387, %v2343
      %v2389 = vpop.permute.xlu0 %2388
      %2390 = vset.pattern.permute.xlu0 0
      %2391 = vperm.xlu0 %2390, %v2344
      %v2392 = vpop.permute.xlu0 %2391
      %vm2393 = vcmp.eq.s32.totalorder %v2347, 1
      %vm2394 = vcmp.eq.s32.totalorder %v2350, 1
      %vm2395 = vcmp.eq.s32.totalorder %v2353, 1
      %vm2396 = vcmp.eq.s32.totalorder %v2356, 1
      %vm2397 = vcmp.eq.s32.totalorder %v2359, 1
      %vm2398 = vcmp.eq.s32.totalorder %v2362, 1
      %vm2399 = vcmp.eq.s32.totalorder %v2365, 1
      %vm2400 = vcmp.eq.s32.totalorder %v2368, 1
      %vm2401 = vcmp.eq.s32.totalorder %v2371, 1
      %vm2402 = vcmp.eq.s32.totalorder %v2374, 1
      %vm2403 = vcmp.eq.s32.totalorder %v2377, 1
      %vm2404 = vcmp.eq.s32.totalorder %v2380, 1
      %vm2405 = vcmp.eq.s32.totalorder %v2383, 1
      %vm2406 = vcmp.eq.s32.totalorder %v2386, 1
      %vm2407 = vcmp.eq.s32.totalorder %v2389, 1
      %vm2408 = vcmp.eq.s32.totalorder %v2392, 1
      %v2409 = vsel %vm2393, %v2265, 0.0
      %v2410 = vsel %vm2394, %v2266, 0.0
      %v2411 = vsel %vm2395, %v2267, 0.0
      %v2412 = vsel %vm2396, %v2268, 0.0
      %v2413 = vsel %vm2397, %v2269, 0.0
      %v2414 = vsel %vm2398, %v2270, 0.0
      %v2415 = vsel %vm2399, %v2271, 0.0
      %v2416 = vsel %vm2400, %v2272, 0.0
      %v2417 = vsel %vm2401, %v2273, 0.0
      %v2418 = vsel %vm2402, %v2274, 0.0
      %v2419 = vsel %vm2403, %v2275, 0.0
      %v2420 = vsel %vm2404, %v2276, 0.0
      %v2421 = vsel %vm2405, %v2277, 0.0
      %v2422 = vsel %vm2406, %v2278, 0.0
      %v2423 = vsel %vm2407, %v2279, 0.0
      %v2424 = vsel %vm2408, %v2280, 0.0
      %v2425 = vld [vmem:[%s251] sm:$0x1]
      %v2426 = vadd.f32 %v2409, %v2410
      %v2427 = vadd.f32 %v2426, %v2411
      %v2428 = vadd.f32 %v2427, %v2412
      %v2429 = vadd.f32 %v2428, %v2413
      %v2430 = vadd.f32 %v2429, %v2414
      %v2431 = vadd.f32 %v2430, %v2415
      %v2432 = vadd.f32 %v2431, %v2416
      %v2433 = vadd.f32 %v2432, %v2417
      %v2434 = vadd.f32 %v2433, %v2418
      %v2435 = vadd.f32 %v2434, %v2419
      %v2436 = vadd.f32 %v2435, %v2420
      %v2437 = vadd.f32 %v2436, %v2421
      %v2438 = vadd.f32 %v2437, %v2422
      %v2439 = vadd.f32 %v2438, %v2423
      %v2440 = vadd.f32 %v2439, %v2424
      %v2441 = vrot.slane %v2440, 4
      %v2442 = vadd.f32 %v2440, %v2441
      %v2443 = vrot.slane %v2442, 2
      %v2444 = vadd.f32 %v2442, %v2443
      %v2445 = vrot.slane %v2444, 1
      %v2446 = vadd.f32 %v2444, %v2445
      %v2447 = vadd.f32 %v2425, %v2446
      %2448 = vst [vmem:[%s251] sm:$0x1] %v2447
      %v2449 = vld [vmem:[%s254] sm:$0x1]
      %v2450 = vmul.f32 %v2409, %v2409
      %v2451 = vmul.f32 %v2410, %v2410
      %v2452 = vmul.f32 %v2411, %v2411
      %v2453 = vmul.f32 %v2412, %v2412
      %v2454 = vmul.f32 %v2413, %v2413
      %v2455 = vmul.f32 %v2414, %v2414
      %v2456 = vmul.f32 %v2415, %v2415
      %v2457 = vmul.f32 %v2416, %v2416
      %v2458 = vmul.f32 %v2417, %v2417
      %v2459 = vmul.f32 %v2418, %v2418
      %v2460 = vmul.f32 %v2419, %v2419
      %v2461 = vmul.f32 %v2420, %v2420
      %v2462 = vmul.f32 %v2421, %v2421
      %v2463 = vmul.f32 %v2422, %v2422
      %v2464 = vmul.f32 %v2423, %v2423
      %v2465 = vmul.f32 %v2424, %v2424
      %v2466 = vadd.f32 %v2450, %v2451
      %v2467 = vadd.f32 %v2466, %v2452
      %v2468 = vadd.f32 %v2467, %v2453
      %v2469 = vadd.f32 %v2468, %v2454
      %v2470 = vadd.f32 %v2469, %v2455
      %v2471 = vadd.f32 %v2470, %v2456
      %v2472 = vadd.f32 %v2471, %v2457
      %v2473 = vadd.f32 %v2472, %v2458
      %v2474 = vadd.f32 %v2473, %v2459
      %v2475 = vadd.f32 %v2474, %v2460
      %v2476 = vadd.f32 %v2475, %v2461
      %v2477 = vadd.f32 %v2476, %v2462
      %v2478 = vadd.f32 %v2477, %v2463
      %v2479 = vadd.f32 %v2478, %v2464
      %v2480 = vadd.f32 %v2479, %v2465
      %v2481 = vrot.slane %v2480, 4
      %v2482 = vadd.f32 %v2480, %v2481
      %v2483 = vrot.slane %v2482, 2
      %v2484 = vadd.f32 %v2482, %v2483
      %v2485 = vrot.slane %v2484, 1
      %v2486 = vadd.f32 %v2484, %v2485
      %v2487 = vadd.f32 %v2449, %v2486
      %2488 = vst [vmem:[%s254] sm:$0x1] %v2487
      %s2489 = smul.u32 %s21, 3
      %s2490 = sadd.s32 %s2489, %s22
      %s2491 = smul.u32 16, %s2490
      %p2492 = scmp.lt.s32.totalorder %s2491, 95
      %s2493 = scalar_select %p2492, %s2491, 95
      %s2494 = smul.addr %s2493, 8
      %s2495 = scalar_lea.vmem %s3, %s2494
      %p2496 = scmp.lt.s32.totalorder %s21, 1
      %s2497 = scalar_select %p2496, %s21, 1
      %s2498 = scalar_lea.vmem %s4, %s2497
      %p2499 = scmp.lt.s32.totalorder %s21, 1
      %s2500 = scalar_select %p2499, %s21, 1
      %s2501 = scalar_lea.vmem %s5, %s2500
      // Predicated region
      $region75: #{double_conv_forward.4} parent=27 // pred_check
        %p2502 = pneg %p102
      $region76: #{double_conv_forward.4} parent=27 // pred_check_branch
        %2504 = sbr.rel (%p2502) target = $region78
      $region77: #{double_conv_forward.4} parent=27 // pred_region
        %s2505 = smul.u32 %s21, 3
        %s2506 = sadd.s32 %s2505, %s22
        %s2507 = smul.u32 16, %s2506
      $region78: #{double_conv_forward.4} parent=27 // pred_fallthru
        _
      // Predicated region
      $region79: #{double_conv_forward.4} parent=27 // pred_check
        %p2508 = pneg %p128
      $region80: #{double_conv_forward.4} parent=27 // pred_check_branch
        %2510 = sbr.rel (%p2508) target = $region82
      $region81: #{double_conv_forward.4} parent=27 // pred_region
        _
      $region82: #{double_conv_forward.4} parent=27 // pred_fallthru
        _
      // Predicated region
      $region83: #{double_conv_forward.4} parent=27 // pred_check
        %p2511 = pneg %p154
      $region84: #{double_conv_forward.4} parent=27 // pred_check_branch
        %2513 = sbr.rel (%p2511) target = $region86
      $region85: #{double_conv_forward.4} parent=27 // pred_region
        _
      $region86: #{double_conv_forward.4} parent=27 // pred_fallthru
        _
    $region28: #{double_conv_forward.4} parent=5 // pred_fallthru
      _
    %p2514 = scmp.le.s32.totalorder 2, %s12
    // Predicated region
    $region87: #{double_conv_forward.4} parent=5 // pred_check
      %p2515 = pneg %p2514
    $region88: #{double_conv_forward.4} parent=5 // pred_check_branch
      %2517 = sbr.rel (%p2515) target = $region90
    $region89: #{double_conv_forward.4} parent=5 // pred_region
      %s2518 = ssub.s32 %s12, 2
      // Predicated region
      $region91: #{double_conv_forward.4} parent=89 // pred_check
        %p2519 = pneg %p108
      $region92: #{double_conv_forward.4} parent=89 // pred_check_branch
        %2521 = sbr.rel (%p2519) target = $region94
      $region93: #{double_conv_forward.4} parent=89 // pred_region
        %s2522 = smul.u32 %s23, 3
        %s2523 = sadd.s32 %s2522, %s24
        %s2524 = smul.u32 16, %s2523
        %p2525 = scmp.lt.s32.totalorder %s2524, 95
        %s2526 = scalar_select %p2525, %s2524, 95
        %s2527 = smul.addr %s2526, 8
        %s2528 = scalar_lea.vmem %s3, %s2527
      $region94: #{double_conv_forward.4} parent=89 // pred_fallthru
        _
      // Predicated region
      $region95: #{double_conv_forward.4} parent=89 // pred_check
        %p2529 = pneg %p134
      $region96: #{double_conv_forward.4} parent=89 // pred_check_branch
        %2531 = sbr.rel (%p2529) target = $region98
      $region97: #{double_conv_forward.4} parent=89 // pred_region
        %p2532 = scmp.lt.s32.totalorder %s23, 1
        %s2533 = scalar_select %p2532, %s23, 1
        %s2534 = scalar_lea.vmem %s4, %s2533
      $region98: #{double_conv_forward.4} parent=89 // pred_fallthru
        _
      // Predicated region
      $region99: #{double_conv_forward.4} parent=89 // pred_check
        %p2535 = pneg %p160
      $region100: #{double_conv_forward.4} parent=89 // pred_check_branch
        %2537 = sbr.rel (%p2535) target = $region102
      $region101: #{double_conv_forward.4} parent=89 // pred_region
        %p2538 = scmp.lt.s32.totalorder %s23, 1
        %s2539 = scalar_select %p2538, %s23, 1
        %s2540 = scalar_lea.vmem %s5, %s2539
      $region102: #{double_conv_forward.4} parent=89 // pred_fallthru
        _
    $region90: #{double_conv_forward.4} parent=5 // pred_fallthru
      _
  $region6: #{double_conv_forward.4} parent=0 // loop_footer
    %s16 = sadd.s32 1, %s12
  $region7: #{double_conv_forward.4} parent=0 // loop_footer_branch
    %11 = sbr.rel target = $region3
  $region8: #{double_conv_forward.4} parent=0 // loop_exit
    _
  %2541 = vsyncmov [#allocation3]
  %s2542 = vpop.sfrf %2541
  %p2543 = scmp.eq.s32.totalorder %s2542, 0
  %p2544 = pneg %p2543
  %2546 = shalt.err (%p2544)
  %s2547 = scalar_lea.sflag [#allocation3], 1
  %2548 = vsyncmov %s2547
  %s2549 = vpop.sfrf %2548
  %p2550 = scmp.eq.s32.totalorder %s2549, 0
  %p2551 = pneg %p2550
  %2553 = shalt.err (%p2551)

</llo_original>
